<compile_context>
chip_gen: v5e
topology: v5e:2x2
jax: 0.10.0
libtpu: 0.0.40
codegen_flags: <defaults>
</compile_context>

<pallas_src>
import jax
import jax.numpy as jnp
from jax.experimental import pallas as pl
from jax.experimental.pallas import tpu as pltpu


def _round_up(x, m):
    return (x + m - 1) // m * m


def _vmem_limit_bytes():
    """Generation-aware VMEM budget with ~15% headroom for internal scratch."""
    try:
        cap = pltpu.get_tpu_info().vmem_capacity_bytes
    except Exception:
        cap = 64 << 20  # conservative fallback (v7x-sized)
    return int(cap * 0.85)


def decoder_kernel(x_ref, w1_ref, b1_ref, w2_ref, b2_ref, w3_ref, b3_ref,
                   o_ref, h2_ref):
    # Dropout(0.5) layers are identity in eval mode.
    j = pl.program_id(1)

    @pl.when(j == 0)
    def _():
        # Layers 1 & 2 do not depend on the output-feature tile: compute them
        # once per batch tile and cache h2 (bf16) in VMEM scratch.
        h1 = jnp.dot(x_ref[...], w1_ref[...],
                     preferred_element_type=jnp.float32)
        h1 = jnp.maximum(h1 + b1_ref[...], 0.0).astype(jnp.bfloat16)
        h2 = jnp.dot(h1, w2_ref[...], preferred_element_type=jnp.float32)
        h2_ref[...] = jnp.maximum(h2 + b2_ref[...], 0.0).astype(h2_ref.dtype)

    # Layer 3 on this output-feature tile (W3 tile streamed via BlockSpec).
    h3 = jnp.dot(h2_ref[...], w3_ref[...], preferred_element_type=jnp.float32)
    o_ref[...] = jnp.maximum(h3 + b3_ref[...], 0.0).astype(o_ref.dtype)


def decoder_forward(x, params, *, tile_b=256, tile_n=512):
    """x: [B, z_dim] float32 -> [B, input_dim] float32.

    tile_b: batch rows per grid step (use 128 on v5e, 256 on v6e/v7x).
    tile_n: output features per grid step (multiple of 128).
    """
    (w1, b1), (w2, b2), (w3, b3) = params
    B, zd = x.shape
    h1d = w1.shape[1]
    h2d = w2.shape[1]
    out_dim = w3.shape[1]

    # ---- tile sizes & padded shapes -------------------------------------
    tile_b = min(tile_b, _round_up(B, 8))
    B_pad = _round_up(B, tile_b)
    out_128 = _round_up(out_dim, 128)
    tile_n = min(tile_n, out_128)
    out_pad = _round_up(out_dim, tile_n)

    # ---- bf16 weights/activations, f32 accumulation ----------------------
    xb = x.astype(jnp.bfloat16)
    if B_pad != B:
        xb = jnp.pad(xb, ((0, B_pad - B), (0, 0)))
    w1b = w1.astype(jnp.bfloat16)
    w2b = w2.astype(jnp.bfloat16)
    w3b = w3.astype(jnp.bfloat16)
    b3p = b3
    if out_pad != out_dim:
        w3b = jnp.pad(w3b, ((0, 0), (0, out_pad - out_dim)))
        b3p = jnp.pad(b3, ((0, 0), (0, out_pad - out_dim)))

    grid = (B_pad // tile_b, out_pad // tile_n)

    # W1/b1/W2/b2 are grid-invariant (fetched once by the pipeline); W3/b3 and
    # the output are tiled along the output-feature axis.
    in_specs = [
        pl.BlockSpec((tile_b, zd), lambda i, j: (i, 0)),     # x tile
        pl.BlockSpec((zd, h1d), lambda i, j: (0, 0)),        # W1
        pl.BlockSpec((1, h1d), lambda i, j: (0, 0)),         # b1
        pl.BlockSpec((h1d, h2d), lambda i, j: (0, 0)),       # W2
        pl.BlockSpec((1, h2d), lambda i, j: (0, 0)),         # b2
        pl.BlockSpec((h2d, tile_n), lambda i, j: (0, j)),    # W3 N-tile
        pl.BlockSpec((1, tile_n), lambda i, j: (0, j)),      # b3 N-tile
    ]
    out_spec = pl.BlockSpec((tile_b, tile_n), lambda i, j: (i, j))

    flops = 2 * B_pad * (zd * h1d + h1d * h2d + h2d * out_pad)
    bytes_accessed = (
        xb.size * 2 + w1b.size * 2 + w2b.size * 2
        + grid[0] * (w3b.size * 2)            # W3 streamed once per batch tile
        + b1.size * 4 + b2.size * 4 + b3p.size * 4
        + B_pad * out_pad * 4
    )

    out = pl.pallas_call(
        decoder_kernel,
        out_shape=jax.ShapeDtypeStruct((B_pad, out_pad), jnp.float32),
        grid_spec=pltpu.PrefetchScalarGridSpec(
            num_scalar_prefetch=0,
            grid=grid,
            in_specs=in_specs,
            out_specs=out_spec,
            scratch_shapes=[pltpu.VMEM((tile_b, h2d), jnp.bfloat16)],
        ),
        compiler_params=pltpu.CompilerParams(
            dimension_semantics=("parallel", "arbitrary"),
            vmem_limit_bytes=_vmem_limit_bytes(),
        ),
        cost_estimate=pl.CostEstimate(
            flops=int(flops),
            transcendentals=0,
            bytes_accessed=int(bytes_accessed),
        ),
    )(xb, w1b, b1, w2b, b2, w3b, b3p)

    return out[:B, :out_dim]


def init_decoder_params(key, input_dim, z_dim):
    """Deterministic PyTorch-Linear-style init: U(-1/sqrt(fan_in), 1/sqrt(fan_in))."""
    dims = [(z_dim, 256), (256, 2048), (2048, input_dim)]
    params = []
    for (fan_in, fan_out) in dims:
        key, kw, kb = jax.random.split(key, 3)
        bound = 1.0 / jnp.sqrt(jnp.float32(fan_in))
        w = jax.random.uniform(kw, (fan_in, fan_out), jnp.float32, -bound, bound)
        b = jax.random.uniform(kb, (1, fan_out), jnp.float32, -bound, bound)
        params.append((w, b))
    return params


def decoder_reference(x, params):
    """Pure-JAX reference matching the kernel's bf16-weight / f32-accumulate path.

    Dropout = identity (eval mode).
    """
    (w1, b1), (w2, b2), (w3, b3) = params
    h = x.astype(jnp.bfloat16)
    h = jnp.maximum(
        jnp.dot(h, w1.astype(jnp.bfloat16), preferred_element_type=jnp.float32)
        + b1, 0.0).astype(jnp.bfloat16)
    h = jnp.maximum(
        jnp.dot(h, w2.astype(jnp.bfloat16), preferred_element_type=jnp.float32)
        + b2, 0.0).astype(jnp.bfloat16)
    h = jnp.maximum(
        jnp.dot(h, w3.astype(jnp.bfloat16), preferred_element_type=jnp.float32)
        + b3, 0.0)
    return h  # float32


if __name__ == "__main__":
    Z_DIM = 20
    INPUT_DIM = 600     # deliberately NOT a multiple of 128: exercises N padding
    BATCH = 12          # deliberately NOT a multiple of 8: exercises batch padding

    key = jax.random.PRNGKey(0)
    key, kx = jax.random.split(key)
    x = jax.random.normal(kx, (BATCH, Z_DIM), jnp.float32)
    params = init_decoder_params(key, INPUT_DIM, Z_DIM)

    out = decoder_forward(x, params)
    out = jax.block_until_ready(out)

    ref = decoder_reference(x, params)
    assert out.shape == (BATCH, INPUT_DIM)
    assert jnp.allclose(out, ref, atol=2e-2, rtol=2e-2), "mismatch vs reference"

    print("KERNEL_OK")
</pallas_src>

<mosaic_0001>
module attributes {stable_mosaic.version = 11 : i64} {
  func.func @decoder_kernel(%arg0: i32, %arg1: i32, %arg2: memref<16x20xbf16, #tpu.memory_space<vmem>>, %arg3: memref<20x256xbf16, #tpu.memory_space<vmem>>, %arg4: memref<1x256xf32, #tpu.memory_space<vmem>>, %arg5: memref<256x2048xbf16, #tpu.memory_space<vmem>>, %arg6: memref<1x2048xf32, #tpu.memory_space<vmem>>, %arg7: memref<2048x512xbf16, #tpu.memory_space<vmem>>, %arg8: memref<1x512xf32, #tpu.memory_space<vmem>>, %arg9: memref<16x512xf32, #tpu.memory_space<vmem>>, %arg10: memref<16x2048xbf16, #tpu.memory_space<vmem>>) attributes {dimension_semantics = [#tpu.dimension_semantics<parallel>, #tpu.dimension_semantics<arbitrary>], iteration_bounds = array<i64: 1, 2>, scalar_prefetch = 0 : i64, scratch_operands = 1 : i64, tpu.core_type = #tpu.core_type<tc>, window_params = [{transform_indices = @transform_0, window_bounds = array<i64: 16, 20>}, {pipeline_mode = #tpu.pipeline_mode<synchronous>, transform_indices = @transform_1, window_bounds = array<i64: 20, 256>}, {pipeline_mode = #tpu.pipeline_mode<synchronous>, transform_indices = @transform_2, window_bounds = array<i64: 1, 256>}, {pipeline_mode = #tpu.pipeline_mode<synchronous>, transform_indices = @transform_3, window_bounds = array<i64: 256, 2048>}, {pipeline_mode = #tpu.pipeline_mode<synchronous>, transform_indices = @transform_4, window_bounds = array<i64: 1, 2048>}, {transform_indices = @transform_5, window_bounds = array<i64: 2048, 512>}, {transform_indices = @transform_6, window_bounds = array<i64: 1, 512>}, {transform_indices = @transform_7, window_bounds = array<i64: 16, 512>}]} {
    %c0_i32 = arith.constant 0 : i32
    %0 = arith.cmpi eq, %arg1, %c0_i32 : i32
    %1 = arith.extui %0 : i1 to i32
    %c0_i32_0 = arith.constant 0 : i32
    %2 = arith.cmpi ne, %1, %c0_i32_0 : i32
    scf.if %2 {
      %c0_9 = arith.constant 0 : index
      %c0_10 = arith.constant 0 : index
      %12 = vector.load %arg2[%c0_9, %c0_10] : memref<16x20xbf16, #tpu.memory_space<vmem>>, vector<16x20xbf16>
      %c0_11 = arith.constant 0 : index
      %c0_12 = arith.constant 0 : index
      %13 = vector.load %arg3[%c0_11, %c0_12] : memref<20x256xbf16, #tpu.memory_space<vmem>>, vector<20x256xbf16>
      %cst_13 = arith.constant dense<0.000000e+00> : vector<16x256xf32>
      %14 = tpu.matmul %12, %13, %cst_13 {dimension_numbers = #tpu.dot_dimension_numbers<[1], [0], [0], [1], [0, 0, 1, 1], [], []>} : vector<16x20xbf16>, vector<20x256xbf16>, vector<16x256xf32> -> vector<16x256xf32>
      %c0_14 = arith.constant 0 : index
      %c0_15 = arith.constant 0 : index
      %15 = vector.load %arg4[%c0_14, %c0_15] : memref<1x256xf32, #tpu.memory_space<vmem>>, vector<1x256xf32>
      %16 = vector.broadcast %15 : vector<1x256xf32> to vector<16x256xf32>
      %17 = arith.addf %14, %16 : vector<16x256xf32>
      %cst_16 = arith.constant 0.000000e+00 : f32
      %18 = vector.broadcast %cst_16 : f32 to vector<16x256xf32>
      %19 = arith.maximumf %17, %18 : vector<16x256xf32>
      %20 = arith.truncf %19 : vector<16x256xf32> to vector<16x256xbf16>
      %c0_17 = arith.constant 0 : index
      %c0_18 = arith.constant 0 : index
      %21 = vector.load %arg5[%c0_17, %c0_18] : memref<256x2048xbf16, #tpu.memory_space<vmem>>, vector<256x2048xbf16>
      %cst_19 = arith.constant dense<0.000000e+00> : vector<16x2048xf32>
      %22 = tpu.matmul %20, %21, %cst_19 {dimension_numbers = #tpu.dot_dimension_numbers<[1], [0], [0], [1], [0, 0, 1, 1], [], []>} : vector<16x256xbf16>, vector<256x2048xbf16>, vector<16x2048xf32> -> vector<16x2048xf32>
      %c0_20 = arith.constant 0 : index
      %c0_21 = arith.constant 0 : index
      %23 = vector.load %arg6[%c0_20, %c0_21] : memref<1x2048xf32, #tpu.memory_space<vmem>>, vector<1x2048xf32>
      %24 = vector.broadcast %23 : vector<1x2048xf32> to vector<16x2048xf32>
      %25 = arith.addf %22, %24 : vector<16x2048xf32>
      %cst_22 = arith.constant 0.000000e+00 : f32
      %26 = vector.broadcast %cst_22 : f32 to vector<16x2048xf32>
      %27 = arith.maximumf %25, %26 : vector<16x2048xf32>
      %28 = arith.truncf %27 : vector<16x2048xf32> to vector<16x2048xbf16>
      %c0_23 = arith.constant 0 : index
      %c0_24 = arith.constant 0 : index
      %29 = vector.load %arg10[%c0_23, %c0_24] : memref<16x2048xbf16, #tpu.memory_space<vmem>>, vector<16x2048xbf16>
      tpu.vector_store %arg10[%c0_23, %c0_24], %28 {strides = array<i32>} : memref<16x2048xbf16, #tpu.memory_space<vmem>>, vector<16x2048xbf16>,
    } else {
    }
    %c0 = arith.constant 0 : index
    %c0_1 = arith.constant 0 : index
    %3 = vector.load %arg10[%c0, %c0_1] : memref<16x2048xbf16, #tpu.memory_space<vmem>>, vector<16x2048xbf16>
    %c0_2 = arith.constant 0 : index
    %c0_3 = arith.constant 0 : index
    %4 = vector.load %arg7[%c0_2, %c0_3] : memref<2048x512xbf16, #tpu.memory_space<vmem>>, vector<2048x512xbf16>
    %cst = arith.constant dense<0.000000e+00> : vector<16x512xf32>
    %5 = tpu.matmul %3, %4, %cst {dimension_numbers = #tpu.dot_dimension_numbers<[1], [0], [0], [1], [0, 0, 1, 1], [], []>} : vector<16x2048xbf16>, vector<2048x512xbf16>, vector<16x512xf32> -> vector<16x512xf32>
    %c0_4 = arith.constant 0 : index
    %c0_5 = arith.constant 0 : index
    %6 = vector.load %arg8[%c0_4, %c0_5] : memref<1x512xf32, #tpu.memory_space<vmem>>, vector<1x512xf32>
    %7 = vector.broadcast %6 : vector<1x512xf32> to vector<16x512xf32>
    %8 = arith.addf %5, %7 : vector<16x512xf32>
    %cst_6 = arith.constant 0.000000e+00 : f32
    %9 = vector.broadcast %cst_6 : f32 to vector<16x512xf32>
    %10 = arith.maximumf %8, %9 : vector<16x512xf32>
    %c0_7 = arith.constant 0 : index
    %c0_8 = arith.constant 0 : index
    %11 = vector.load %arg9[%c0_7, %c0_8] : memref<16x512xf32, #tpu.memory_space<vmem>>, vector<16x512xf32>
    tpu.vector_store %arg9[%c0_7, %c0_8], %10 {strides = array<i32>} : memref<16x512xf32, #tpu.memory_space<vmem>>, vector<16x512xf32>,
    return
  }
  func.func @transform_0(%arg0: i32, %arg1: i32) -> (i32, i32) {
    %c0_i32 = arith.constant 0 : i32
    %c0_i32_0 = arith.constant 0 : i32
    return %arg0, %c0_i32 : i32, i32
  }
  func.func @transform_1(%arg0: i32, %arg1: i32) -> (i32, i32) {
    %c0_i32 = arith.constant 0 : i32
    %c0_i32_0 = arith.constant 0 : i32
    %c0_i32_1 = arith.constant 0 : i32
    return %c0_i32, %c0_i32_0 : i32, i32
  }
  func.func @transform_2(%arg0: i32, %arg1: i32) -> (i32, i32) {
    %c0_i32 = arith.constant 0 : i32
    %c0_i32_0 = arith.constant 0 : i32
    %c0_i32_1 = arith.constant 0 : i32
    return %c0_i32, %c0_i32_0 : i32, i32
  }
  func.func @transform_3(%arg0: i32, %arg1: i32) -> (i32, i32) {
    %c0_i32 = arith.constant 0 : i32
    %c0_i32_0 = arith.constant 0 : i32
    %c0_i32_1 = arith.constant 0 : i32
    return %c0_i32, %c0_i32_0 : i32, i32
  }
  func.func @transform_4(%arg0: i32, %arg1: i32) -> (i32, i32) {
    %c0_i32 = arith.constant 0 : i32
    %c0_i32_0 = arith.constant 0 : i32
    %c0_i32_1 = arith.constant 0 : i32
    return %c0_i32, %c0_i32_0 : i32, i32
  }
  func.func @transform_5(%arg0: i32, %arg1: i32) -> (i32, i32) {
    %c0_i32 = arith.constant 0 : i32
    %c0_i32_0 = arith.constant 0 : i32
    return %c0_i32, %arg1 : i32, i32
  }
  func.func @transform_6(%arg0: i32, %arg1: i32) -> (i32, i32) {
    %c0_i32 = arith.constant 0 : i32
    %c0_i32_0 = arith.constant 0 : i32
    return %c0_i32, %arg1 : i32, i32
  }
  func.func @transform_7(%arg0: i32, %arg1: i32) -> (i32, i32) {
    %c0_i32 = arith.constant 0 : i32
    return %arg0, %arg1 : i32, i32
  }
}

</mosaic_0001>

<llo_original>
// kernel: tpu_custom_call.1
$region0: #{tpu_custom_call.1}
  #allocation0 [shape = 'u32[]', space=smem, size = 0x4, offset = 0x4, fixed_abs, tag = 'smem constant byte address 0x4 - core index']
  #allocation1 [shape = 'u32[72,128]{1,0:T(1,128)}', space=vmem, size = 0x9000, scoped, tag = 'internal scratch']
  #allocation2 [shape = 'bf16[16,2048]{1,0:T(8,128)(2,1)}', space=vmem, size = 0x10000, scoped, tag = 'scratch operand']
  %s0 = inlined_call_operand.hbm [shape: bf16[16,20], index: 0, kind: input, shape index: {}]
  %s1 = inlined_call_operand.hbm [shape: bf16[20,256], index: 1, kind: input, shape index: {}]
  %s2 = inlined_call_operand.hbm [shape: f32[1,256], index: 2, kind: input, shape index: {}]
  %s3 = inlined_call_operand.hbm [shape: bf16[256,2048], index: 3, kind: input, shape index: {}]
  %s4 = inlined_call_operand.hbm [shape: f32[1,2048], index: 4, kind: input, shape index: {}]
  %s5 = inlined_call_operand.hbm [shape: bf16[2048,1024], index: 5, kind: input, shape index: {}]
  %s6 = inlined_call_operand.hbm [shape: f32[1,1024], index: 6, kind: input, shape index: {}]
  %s7 = inlined_call_operand.hbm [shape: f32[16,1024], index: 7, kind: output, shape index: {}]
  %s8 = sld [smem:[#allocation0]]
  $region93: #{tpu_custom_call.1} parent=0
    _
  %s10 = ssub.s32 1, %s8
  %s11 = scalar_select 0, %s10, %s8
  $region1: #{tpu_custom_call.1} parent=0
    #allocation3 [shape = 'u8[4096]{0}', space=vmem, size = 0x1000, scoped, tag = 'input window, operand 0, single buffered']
    #allocation4 [shape = 's32[2]{0}', space=sflag, size = 0x8, scoped, tag = 'scoped memory for tpu_custom_call.1']
    #allocation5 [shape = 's32[2]{0}', space=sflag, size = 0x8, scoped, tag = 'scoped memory for tpu_custom_call.1']
    #allocation6 [shape = 'u8[12288]{0}', space=vmem, size = 0x3000, scoped, tag = 'input window, operand 1, single buffered']
    #allocation7 [shape = 's32[1]{0}', space=sflag, size = 0x4, scoped, tag = 'scoped memory for tpu_custom_call.1']
    #allocation8 [shape = 'u8[1024]{0}', space=vmem, size = 0x400, scoped, tag = 'input window, operand 2, single buffered']
    #allocation9 [shape = 'u8[1048576]{0}', space=vmem, size = 0x100000, scoped, tag = 'input window, operand 3, single buffered']
    #allocation10 [shape = 's32[1]{0}', space=sflag, size = 0x4, scoped, tag = 'scoped memory for tpu_custom_call.1']
    #allocation11 [shape = 'u8[8192]{0}', space=vmem, size = 0x2000, scoped, tag = 'input window, operand 4, single buffered']
    #allocation12 [shape = 'u8[4194304]{0}', space=vmem, size = 0x400000, scoped, tag = 'input window, operand 5']
    #allocation13 [shape = 's32[2]{0}', space=sflag, size = 0x8, scoped, tag = 'scoped memory for tpu_custom_call.1']
    #allocation14 [shape = 'u8[4096]{0}', space=vmem, size = 0x1000, scoped, tag = 'input window, operand 6']
    #allocation15 [shape = 'u8[65536]{0}', space=vmem, size = 0x10000, scoped, tag = 'output window, operand 0']
    %12 = vsyncpa [#allocation4], 0
    %13 = vsyncpa [#allocation7], 0
    %14 = vsyncpa [#allocation10], 0
    %15 = vsyncpa [#allocation13], 0
    %s16 = scalar_lea.sflag [#allocation13], 1
    %17 = vsyncpa %s16, 0
    %18 = vsyncpa [#allocation5], 0
    %s19 = scalar_lea.sflag [#allocation5], 1
    %20 = vsyncpa %s19, 0
    loop: start=0, step=1, limit=4
    $region2: #{tpu_custom_call.1} parent=1 // loop_pre_header
      _
    $region3: #{tpu_custom_call.1} parent=1 // loop_header
      %s22 = sphi 0, %s26
      %p23 = scmp.ge.s32.totalorder %s22, 4
      %s29 = sphi 0, %s41
      %s30 = sphi 0, %s37
      %s31 = sphi 0, %s29
      %s32 = sphi 0, %s30
      %s33 = sphi 0, %s31
      %s34 = sphi 0, %s32
      %s44 = sphi 0, %s46
      %s47 = sphi 0, %s44
      %s48 = sphi 0, %s47
      %s64 = sphi 0, %s48
      %s68 = sphi 0, %s68
      %s70 = sphi 0, %s68
      %s71 = sphi 0, %s70
      %s85 = sphi 0, %s71
      %s89 = sphi 0, %s89
      %s91 = sphi 0, %s89
      %s92 = sphi 0, %s91
      %s106 = sphi 0, %s92
      %s110 = sphi 0, %s110
      %s112 = sphi 0, %s110
      %s113 = sphi 0, %s112
      %s127 = sphi 0, %s113
      %s131 = sphi 0, %s131
      %s133 = sphi 0, %s131
      %s134 = sphi 0, %s133
      %s148 = sphi 0, %s134
      %s154 = sphi 0, %s156
      %s157 = sphi 0, %s154
      %s158 = sphi 0, %s157
      %s174 = sphi 0, %s158
      %s180 = sphi 0, %s182
      %s183 = sphi 0, %s180
      %s184 = sphi 0, %s183
      %s200 = sphi 0, %s184
      %s208 = sphi 0, %s210
      %s211 = sphi 0, %s208
      %s212 = sphi 0, %s211
      %s228 = sphi 0, %s212
    $region4: #{tpu_custom_call.1} parent=1 // loop_header_branch
      %25 = sbr.rel (%p23) target = $region8
    $region5: #{tpu_custom_call.1} parent=1 // loop_body
      %s27 = ssub.s32 %s22, 1
      %s28 = ssub.s32 %s22, 2
      %s35 = sadd.s32 1, %s30
      %p36 = scmp.ge.s32.totalorder %s35, 2
      %s37 = scalar_select %p36, 0, %s35
      %s38 = sadd.s32 1, %s29
      %s39 = scalar_select %p36, %s38, %s29
      %p40 = scmp.ge.s32.totalorder %s39, 1
      %s41 = scalar_select %p40, 0, %s39
      %s42 = ssub.s32 %s29, %s41
      %p43 = scmp.eq.s32.totalorder %s42, 0
      %s45 = sadd.s32 %s44, 1
      %s46 = scalar_select %p43, %s44, %s45
      %p49 = pneg %p43
      %p50 = scmp.eq.s32.totalorder %s22, 1
      %p51 = por %p49, %p50
      %p52 = scmp.ne.s32.totalorder %s44, %s47
      %p53 = scmp.eq.s32.totalorder %s22, 0
      %p54 = por %p52, %p53
      %p55 = scmp.ne.s32.totalorder %s44, %s47
      %p56 = scmp.eq.s32.totalorder %s27, 1
      %p57 = por %p55, %p56
      %p58 = scmp.ne.s32.totalorder %s47, %s48
      %p59 = scmp.eq.s32.totalorder %s27, 0
      %p60 = por %p58, %p59
      %p61 = scmp.ne.s32.totalorder %s47, %s48
      %p62 = scmp.eq.s32.totalorder %s28, 1
      %p63 = por %p61, %p62
      %p65 = scmp.ne.s32.totalorder %s48, %s64
      %p66 = scmp.eq.s32.totalorder %s28, 0
      %p67 = por %p65, %p66
      %s69 = sadd.s32 %s68, 1
      %p72 = scmp.eq.s32.totalorder %s22, 1
      %p73 = scmp.ne.s32.totalorder %s68, %s70
      %p74 = scmp.eq.s32.totalorder %s22, 0
      %p75 = por %p73, %p74
      %p76 = scmp.ne.s32.totalorder %s68, %s70
      %p77 = scmp.eq.s32.totalorder %s27, 1
      %p78 = por %p76, %p77
      %p79 = scmp.ne.s32.totalorder %s70, %s71
      %p80 = scmp.eq.s32.totalorder %s27, 0
      %p81 = por %p79, %p80
      %p82 = scmp.ne.s32.totalorder %s70, %s71
      %p83 = scmp.eq.s32.totalorder %s28, 1
      %p84 = por %p82, %p83
      %p86 = scmp.ne.s32.totalorder %s71, %s85
      %p87 = scmp.eq.s32.totalorder %s28, 0
      %p88 = por %p86, %p87
      %s90 = sadd.s32 %s89, 1
      %p93 = scmp.eq.s32.totalorder %s22, 1
      %p94 = scmp.ne.s32.totalorder %s89, %s91
      %p95 = scmp.eq.s32.totalorder %s22, 0
      %p96 = por %p94, %p95
      %p97 = scmp.ne.s32.totalorder %s89, %s91
      %p98 = scmp.eq.s32.totalorder %s27, 1
      %p99 = por %p97, %p98
      %p100 = scmp.ne.s32.totalorder %s91, %s92
      %p101 = scmp.eq.s32.totalorder %s27, 0
      %p102 = por %p100, %p101
      %p103 = scmp.ne.s32.totalorder %s91, %s92
      %p104 = scmp.eq.s32.totalorder %s28, 1
      %p105 = por %p103, %p104
      %p107 = scmp.ne.s32.totalorder %s92, %s106
      %p108 = scmp.eq.s32.totalorder %s28, 0
      %p109 = por %p107, %p108
      %s111 = sadd.s32 %s110, 1
      %p114 = scmp.eq.s32.totalorder %s22, 1
      %p115 = scmp.ne.s32.totalorder %s110, %s112
      %p116 = scmp.eq.s32.totalorder %s22, 0
      %p117 = por %p115, %p116
      %p118 = scmp.ne.s32.totalorder %s110, %s112
      %p119 = scmp.eq.s32.totalorder %s27, 1
      %p120 = por %p118, %p119
      %p121 = scmp.ne.s32.totalorder %s112, %s113
      %p122 = scmp.eq.s32.totalorder %s27, 0
      %p123 = por %p121, %p122
      %p124 = scmp.ne.s32.totalorder %s112, %s113
      %p125 = scmp.eq.s32.totalorder %s28, 1
      %p126 = por %p124, %p125
      %p128 = scmp.ne.s32.totalorder %s113, %s127
      %p129 = scmp.eq.s32.totalorder %s28, 0
      %p130 = por %p128, %p129
      %s132 = sadd.s32 %s131, 1
      %p135 = scmp.eq.s32.totalorder %s22, 1
      %p136 = scmp.ne.s32.totalorder %s131, %s133
      %p137 = scmp.eq.s32.totalorder %s22, 0
      %p138 = por %p136, %p137
      %p139 = scmp.ne.s32.totalorder %s131, %s133
      %p140 = scmp.eq.s32.totalorder %s27, 1
      %p141 = por %p139, %p140
      %p142 = scmp.ne.s32.totalorder %s133, %s134
      %p143 = scmp.eq.s32.totalorder %s27, 0
      %p144 = por %p142, %p143
      %p145 = scmp.ne.s32.totalorder %s133, %s134
      %p146 = scmp.eq.s32.totalorder %s28, 1
      %p147 = por %p145, %p146
      %p149 = scmp.ne.s32.totalorder %s134, %s148
      %p150 = scmp.eq.s32.totalorder %s28, 0
      %p151 = por %p149, %p150
      %s152 = ssub.s32 %s30, %s37
      %p153 = scmp.eq.s32.totalorder %s152, 0
      %s155 = sadd.s32 %s154, 1
      %s156 = scalar_select %p153, %s154, %s155
      %p159 = pneg %p153
      %p160 = scmp.eq.s32.totalorder %s22, 1
      %p161 = por %p159, %p160
      %p162 = scmp.ne.s32.totalorder %s154, %s157
      %p163 = scmp.eq.s32.totalorder %s22, 0
      %p164 = por %p162, %p163
      %p165 = scmp.ne.s32.totalorder %s154, %s157
      %p166 = scmp.eq.s32.totalorder %s27, 1
      %p167 = por %p165, %p166
      %p168 = scmp.ne.s32.totalorder %s157, %s158
      %p169 = scmp.eq.s32.totalorder %s27, 0
      %p170 = por %p168, %p169
      %p171 = scmp.ne.s32.totalorder %s157, %s158
      %p172 = scmp.eq.s32.totalorder %s28, 1
      %p173 = por %p171, %p172
      %p175 = scmp.ne.s32.totalorder %s158, %s174
      %p176 = scmp.eq.s32.totalorder %s28, 0
      %p177 = por %p175, %p176
      %s178 = ssub.s32 %s30, %s37
      %p179 = scmp.eq.s32.totalorder %s178, 0
      %s181 = sadd.s32 %s180, 1
      %s182 = scalar_select %p179, %s180, %s181
      %p185 = pneg %p179
      %p186 = scmp.eq.s32.totalorder %s22, 1
      %p187 = por %p185, %p186
      %p188 = scmp.ne.s32.totalorder %s180, %s183
      %p189 = scmp.eq.s32.totalorder %s22, 0
      %p190 = por %p188, %p189
      %p191 = scmp.ne.s32.totalorder %s180, %s183
      %p192 = scmp.eq.s32.totalorder %s27, 1
      %p193 = por %p191, %p192
      %p194 = scmp.ne.s32.totalorder %s183, %s184
      %p195 = scmp.eq.s32.totalorder %s27, 0
      %p196 = por %p194, %p195
      %p197 = scmp.ne.s32.totalorder %s183, %s184
      %p198 = scmp.eq.s32.totalorder %s28, 1
      %p199 = por %p197, %p198
      %p201 = scmp.ne.s32.totalorder %s184, %s200
      %p202 = scmp.eq.s32.totalorder %s28, 0
      %p203 = por %p201, %p202
      %s204 = ssub.s32 %s29, %s41
      %s205 = ssub.s32 %s30, %s37
      %s206 = sor.u32 %s204, %s205
      %p207 = scmp.eq.s32.totalorder %s206, 0
      %s209 = sadd.s32 %s208, 1
      %s210 = scalar_select %p207, %s208, %s209
      %p213 = pneg %p207
      %p214 = scmp.eq.s32.totalorder %s22, 1
      %p215 = por %p213, %p214
      %p216 = scmp.ne.s32.totalorder %s208, %s211
      %p217 = scmp.eq.s32.totalorder %s22, 0
      %p218 = por %p216, %p217
      %p219 = scmp.ne.s32.totalorder %s208, %s211
      %p220 = scmp.eq.s32.totalorder %s27, 1
      %p221 = por %p219, %p220
      %p222 = scmp.ne.s32.totalorder %s211, %s212
      %p223 = scmp.eq.s32.totalorder %s27, 0
      %p224 = por %p222, %p223
      %p225 = scmp.ne.s32.totalorder %s211, %s212
      %p226 = scmp.eq.s32.totalorder %s28, 1
      %p227 = por %p225, %p226
      %p229 = scmp.ne.s32.totalorder %s212, %s228
      %p230 = scmp.eq.s32.totalorder %s28, 0
      %p231 = por %p229, %p230
      %p232 = scmp.le.s32.totalorder 1, %s22
      %p233 = scmp.lt.s32.totalorder %s22, 3
      %p234 = pnand %p232, %p233
      %p235 = pneg %p234
      // Predicated region
      $region9: #{tpu_custom_call.1} parent=5 // pred_check
        _
      $region10: #{tpu_custom_call.1} parent=5 // pred_check_branch
        %237 = sbr.rel (%p234) target = $region12
      $region11: #{tpu_custom_call.1} parent=5 // pred_region
        %s238 = ssub.s32 %s22, 1
        // Predicated region
        $region13: #{tpu_custom_call.1} parent=11 // pred_check
          %p239 = pneg %p60
        $region14: #{tpu_custom_call.1} parent=11 // pred_check_branch
          %241 = sbr.rel (%p239) target = $region16
        $region15: #{tpu_custom_call.1} parent=11 // pred_region
          %s242 = smul.u32 2, %s31
          %244 = vsyncadd [#allocation4], 0
          %s245 = smul.addr %s242, 4
          %s246 = scalar_lea.hbm %s0, %s245
          %s247 = sshll.u32 %s246, 4
          %s248 = int_to_ptr.hbm [resolvable:$true] %s247
          %s249 = sshll.u32 [#allocation3], 4
          %s250 = int_to_ptr.vmem [resolvable:$true] %s249
          %255 = dma.hbm_to_vmem [thread:$0]  %s248, 128, %s250, [#allocation4], 64, 64, 4
        $region16: #{tpu_custom_call.1} parent=11 // pred_fallthru
          _
        // Predicated region
        $region17: #{tpu_custom_call.1} parent=11 // pred_check
          %p256 = pneg %p81
        $region18: #{tpu_custom_call.1} parent=11 // pred_check_branch
          %258 = sbr.rel (%p256) target = $region20
        $region19: #{tpu_custom_call.1} parent=11 // pred_region
          %260 = vsyncadd [#allocation7], 0
          %s261 = sshll.u32 %s1, 4
          %s262 = int_to_ptr.hbm [resolvable:$true] %s261
          %s263 = sshll.u32 [#allocation6], 4
          %s264 = int_to_ptr.vmem [resolvable:$true] %s263
          %269 = dma.hbm_to_vmem [thread:$0]  %s262, 384, %s264, [#allocation7], 128, 128, 8
        $region20: #{tpu_custom_call.1} parent=11 // pred_fallthru
          _
        // Predicated region
        $region21: #{tpu_custom_call.1} parent=11 // pred_check
          %p270 = pneg %p102
        $region22: #{tpu_custom_call.1} parent=11 // pred_check_branch
          %272 = sbr.rel (%p270) target = $region24
        $region23: #{tpu_custom_call.1} parent=11 // pred_region
          %274 = vsyncadd [#allocation7], 0
          %s276 = sshll.u32 %s2, 4
          %s277 = int_to_ptr.hbm [resolvable:$true] %s276
          %s278 = sshll.u32 [#allocation8], 4
          %s279 = int_to_ptr.vmem [resolvable:$true] %s278
          %281 = dma.hbm_to_vmem [thread:$0]  %s277, 32, %s279, [#allocation7]
        $region24: #{tpu_custom_call.1} parent=11 // pred_fallthru
          _
        // Predicated region
        $region25: #{tpu_custom_call.1} parent=11 // pred_check
          %p282 = pneg %p123
        $region26: #{tpu_custom_call.1} parent=11 // pred_check_branch
          %284 = sbr.rel (%p282) target = $region28
        $region27: #{tpu_custom_call.1} parent=11 // pred_region
          %286 = vsyncadd [#allocation10], 0
          %s287 = sshll.u32 %s3, 4
          %s288 = int_to_ptr.hbm [resolvable:$true] %s287
          %s289 = sshll.u32 [#allocation9], 4
          %s290 = int_to_ptr.vmem [resolvable:$true] %s289
          %295 = dma.hbm_to_vmem [thread:$0]  %s288, 32768, %s290, [#allocation10], 1024, 1024, 64
        $region28: #{tpu_custom_call.1} parent=11 // pred_fallthru
          _
        // Predicated region
        $region29: #{tpu_custom_call.1} parent=11 // pred_check
          %p296 = pneg %p144
        $region30: #{tpu_custom_call.1} parent=11 // pred_check_branch
          %298 = sbr.rel (%p296) target = $region32
        $region31: #{tpu_custom_call.1} parent=11 // pred_region
          %300 = vsyncadd [#allocation10], 0
          %s302 = sshll.u32 %s4, 4
          %s303 = int_to_ptr.hbm [resolvable:$true] %s302
          %s304 = sshll.u32 [#allocation11], 4
          %s305 = int_to_ptr.vmem [resolvable:$true] %s304
          %307 = dma.hbm_to_vmem [thread:$0]  %s303, 256, %s305, [#allocation10]
        $region32: #{tpu_custom_call.1} parent=11 // pred_fallthru
          _
      $region12: #{tpu_custom_call.1} parent=5 // pred_fallthru
        _
      %p308 = scmp.lt.s32.totalorder %s22, 2
      // Predicated region
      $region33: #{tpu_custom_call.1} parent=5 // pred_check
        %p309 = pneg %p308
      $region34: #{tpu_custom_call.1} parent=5 // pred_check_branch
        %311 = sbr.rel (%p309) target = $region36
      $region35: #{tpu_custom_call.1} parent=5 // pred_region
        // Predicated region
        $region37: #{tpu_custom_call.1} parent=35 // pred_check
          %p312 = pneg %p164
        $region38: #{tpu_custom_call.1} parent=35 // pred_check_branch
          %314 = sbr.rel (%p312) target = $region40
        $region39: #{tpu_custom_call.1} parent=35 // pred_region
          %s315 = sand.u32 %s22, 1
          %s316 = scalar_lea.sflag [#allocation13], %s315
          %s317 = sand.u32 %s154, 1
          %s318 = smul.addr %s317, 4096
          %s319 = scalar_lea.vmem [#allocation12], %s318
          %s320 = smul.u32 4, %s30
          %322 = vsyncadd %s316, 0
          %s323 = smul.addr %s320, 4
          %s324 = scalar_lea.hbm %s5, %s323
          %s325 = sshll.u32 %s324, 4
          %s326 = int_to_ptr.hbm [resolvable:$true] %s325
          %s327 = sshll.u32 %s319, 4
          %s328 = int_to_ptr.vmem [resolvable:$true] %s327
          %333 = dma.hbm_to_vmem [thread:$0]  %s326, 65536, %s328, %s316, 512, 256, 16
        $region40: #{tpu_custom_call.1} parent=35 // pred_fallthru
          _
        // Predicated region
        $region41: #{tpu_custom_call.1} parent=35 // pred_check
          %p334 = pneg %p190
        $region42: #{tpu_custom_call.1} parent=35 // pred_check_branch
          %336 = sbr.rel (%p334) target = $region44
        $region43: #{tpu_custom_call.1} parent=35 // pred_region
          %s337 = sand.u32 %s22, 1
          %s338 = scalar_lea.sflag [#allocation13], %s337
          %s339 = sand.u32 %s180, 1
          %s340 = smul.addr %s339, 4
          %s341 = scalar_lea.vmem [#allocation14], %s340
          %s342 = smul.u32 4, %s30
          %344 = vsyncadd %s338, 0
          %s345 = scalar_lea.hbm %s6, %s342
          %s347 = sshll.u32 %s345, 4
          %s348 = int_to_ptr.hbm [resolvable:$true] %s347
          %s349 = sshll.u32 %s341, 4
          %s350 = int_to_ptr.vmem [resolvable:$true] %s349
          %352 = dma.hbm_to_vmem [thread:$0]  %s348, 64, %s350, %s338
        $region44: #{tpu_custom_call.1} parent=35 // pred_fallthru
          _
      $region36: #{tpu_custom_call.1} parent=5 // pred_fallthru
        _
      %p353 = scmp.le.s32.totalorder 1, %s22
      %p354 = scmp.lt.s32.totalorder %s22, 3
      %p355 = pnand %p353, %p354
      %p356 = pneg %p355
      // Predicated region
      $region45: #{tpu_custom_call.1} parent=5 // pred_check
        _
      $region46: #{tpu_custom_call.1} parent=5 // pred_check_branch
        %358 = sbr.rel (%p355) target = $region48
      $region47: #{tpu_custom_call.1} parent=5 // pred_region
        %s359 = ssub.s32 %s22, 1
        // Predicated region
        $region49: #{tpu_custom_call.1} parent=47 // pred_check
          %p360 = pneg %p60
        $region50: #{tpu_custom_call.1} parent=47 // pred_check_branch
          %362 = sbr.rel (%p360) target = $region52
        $region51: #{tpu_custom_call.1} parent=47 // pred_region
          %364 = dma.done [#allocation4], 128
        $region52: #{tpu_custom_call.1} parent=47 // pred_fallthru
          _
        // Predicated region
        $region53: #{tpu_custom_call.1} parent=47 // pred_check
          %p365 = pneg %p81
        $region54: #{tpu_custom_call.1} parent=47 // pred_check_branch
          %367 = sbr.rel (%p365) target = $region56
        $region55: #{tpu_custom_call.1} parent=47 // pred_region
          %369 = dma.done [#allocation7], 384
        $region56: #{tpu_custom_call.1} parent=47 // pred_fallthru
          _
        // Predicated region
        $region57: #{tpu_custom_call.1} parent=47 // pred_check
          %p370 = pneg %p102
        $region58: #{tpu_custom_call.1} parent=47 // pred_check_branch
          %372 = sbr.rel (%p370) target = $region60
        $region59: #{tpu_custom_call.1} parent=47 // pred_region
          %374 = dma.done [#allocation7], 32
        $region60: #{tpu_custom_call.1} parent=47 // pred_fallthru
          _
        // Predicated region
        $region61: #{tpu_custom_call.1} parent=47 // pred_check
          %p375 = pneg %p123
        $region62: #{tpu_custom_call.1} parent=47 // pred_check_branch
          %377 = sbr.rel (%p375) target = $region64
        $region63: #{tpu_custom_call.1} parent=47 // pred_region
          %379 = dma.done [#allocation10], 32768
        $region64: #{tpu_custom_call.1} parent=47 // pred_fallthru
          _
        // Predicated region
        $region65: #{tpu_custom_call.1} parent=47 // pred_check
          %p380 = pneg %p144
        $region66: #{tpu_custom_call.1} parent=47 // pred_check_branch
          %382 = sbr.rel (%p380) target = $region68
        $region67: #{tpu_custom_call.1} parent=47 // pred_region
          %384 = dma.done [#allocation10], 256
        $region68: #{tpu_custom_call.1} parent=47 // pred_fallthru
          _
        %s385 = sand.u32 %s27, 1
        %s386 = scalar_lea.sflag [#allocation13], %s385
        %s387 = sand.u32 %s157, 1
        %s388 = smul.addr %s387, 4096
        %s389 = scalar_lea.vmem [#allocation12], %s388
        // Predicated region
        $region69: #{tpu_custom_call.1} parent=47 // pred_check
          %p390 = pneg %p170
        $region70: #{tpu_custom_call.1} parent=47 // pred_check_branch
          %392 = sbr.rel (%p390) target = $region72
        $region71: #{tpu_custom_call.1} parent=47 // pred_region
          %394 = dma.done %s386, 65536
        $region72: #{tpu_custom_call.1} parent=47 // pred_fallthru
          _
        %s395 = sand.u32 %s27, 1
        %s396 = scalar_lea.sflag [#allocation13], %s395
        %s397 = sand.u32 %s183, 1
        %s398 = smul.addr %s397, 4
        %s399 = scalar_lea.vmem [#allocation14], %s398
        // Predicated region
        $region73: #{tpu_custom_call.1} parent=47 // pred_check
          %p400 = pneg %p196
        $region74: #{tpu_custom_call.1} parent=47 // pred_check_branch
          %402 = sbr.rel (%p400) target = $region76
        $region75: #{tpu_custom_call.1} parent=47 // pred_region
          %404 = dma.done %s396, 64
        $region76: #{tpu_custom_call.1} parent=47 // pred_fallthru
          _
        %p405 = pneg %p60
        %p406 = pneg %p57
        %p407 = pneg %p81
        %p408 = pneg %p78
        %p409 = pneg %p102
        %p410 = pneg %p99
        %p411 = pneg %p123
        %p412 = pneg %p120
        %p413 = pneg %p144
        %p414 = pneg %p141
        %s415 = sand.u32 %s27, 1
        %s416 = scalar_lea.sflag [#allocation13], %s415
        %s417 = sand.u32 %s157, 1
        %s418 = smul.addr %s417, 4096
        %s419 = scalar_lea.vmem [#allocation12], %s418
        %p420 = pneg %p170
        %p421 = pneg %p167
        %s422 = sand.u32 %s27, 1
        %s423 = scalar_lea.sflag [#allocation13], %s422
        %s424 = sand.u32 %s183, 1
        %s425 = smul.addr %s424, 4
        %s426 = scalar_lea.vmem [#allocation14], %s425
        %p427 = pneg %p196
        %p428 = pneg %p193
        %p429 = pneg %p224
        %p430 = pneg %p221
        %s431 = sand.u32 %s211, 1
        %s432 = scalar_lea.sflag [#allocation5], %s431
        %s433 = sand.u32 %s211, 1
        %s434 = smul.addr %s433, 64
        %s435 = scalar_lea.vmem [#allocation15], %s434
        %s436 = smul.u32 2, %s31
        %s437 = smul.u32 4, %s32
        %s438 = smul.u32 4, %s32
        %s439 = smul.u32 2, %s31
        %s440 = smul.u32 4, %s32
        %p442 = scmp.eq.s32.totalorder %s32, 0
        // Predicated region
        $region77: #{tpu_custom_call.1} parent=47 // pred_check
          %p443 = pneg %p442
        $region78: #{tpu_custom_call.1} parent=47 // pred_check_branch
          %445 = sbr.rel (%p443) target = $region80
        $region79: #{tpu_custom_call.1} parent=47 // pred_region
          %v446 = vld [vmem:[#allocation3] sm:$0xf]
          %v447 = vld [vmem:[#allocation3 + $0x4] sm:$0xf]
          %v448 = vld [vmem:[#allocation6] sm:$0xff]
          %v449 = vld [vmem:[#allocation6 + $0x8] sm:$0xff]
          %v450 = vld [vmem:[#allocation6 + $0x10] sm:$0x33]
          %v451 = vld [vmem:[#allocation8] sm:$0x3]
          %v453 = vperm.slane %v451, 0
          %v454 = vperm.slane %v451, 1
          %v459 = vunpack.c.l.b16 %v446
          %v460 = vunpack.c.l.b16 %v447
          %v461 = vpack.c.b16 %v460, %v459
          %v465 = vunpack.c.l.b16 %v448
          %v466 = vunpack.c.h.b16 %v448
          %v467 = vunpack.c.l.b16 %v449
          %v468 = vunpack.c.h.b16 %v449
          %v469 = vunpack.c.l.b16 %v450
          %v470 = vunpack.c.h.b16 %v450
          %v471 = vpack.c.b16 %v467, %v465
          %v472 = vpack.c.b16 %v468, %v466
          %v473 = vpack.c.b16 %v469, %v469
          %v474 = vpack.c.b16 %v470, %v470
          %vm477 = vcmask 162816
          %v479 = vsel %vm477, %v461, 0
          %vm481 = vcmask 1041408
          %v483 = vsel %vm481, %v473, 0
          %v486 = vsel %vm481, %v474, 0
          %488 = vmatpush.bf16.msra.mxu0 0
          %489 = vmatpush.bf16.msra.mxu0 0
          %490 = vmatpush.bf16.msra.mxu0 0
          %491 = vmatpush.bf16.msra.mxu0 0
          %492 = vmatpush.bf16.msra.mxu0 0
          %493 = vmatpush.bf16.msra.mxu0 0
          %494 = vmatpush.bf16.msra.mxu0 %v483
          %495 = vmatpush.bf16.msra.mxu0 %v471
          %496 = vmatmul.bf16.gmra.mxu0 %v479
          %v497 = vpop.f32.mrf.mxu0
          %v498 = vadd.f32 %v453, %v497
          %v499 = vpop.f32.mrf.mxu0
          %v500 = vadd.f32 %v453, %v499
          %501 = vdwg.mxu0
          %502 = vmatpush.bf16.msra.mxu0 0
          %503 = vmatpush.bf16.msra.mxu0 0
          %504 = vmatpush.bf16.msra.mxu0 0
          %505 = vmatpush.bf16.msra.mxu0 0
          %506 = vmatpush.bf16.msra.mxu0 0
          %507 = vmatpush.bf16.msra.mxu0 0
          %508 = vmatpush.bf16.msra.mxu0 %v486
          %509 = vmatpush.bf16.msra.mxu0 %v472
          %510 = vmatmul.bf16.gmra.mxu0 %v479
          %v511 = vpop.f32.mrf.mxu0
          %v512 = vadd.f32 %v454, %v511
          %v513 = vpop.f32.mrf.mxu0
          %v514 = vadd.f32 %v454, %v513
          %515 = vdwg.mxu0
          %v516 = vmax.f32 %v498, 0.0
          %v517 = vmax.f32 %v512, 0.0
          %v518 = vmax.f32 %v500, 0.0
          %v519 = vmax.f32 %v514, 0.0
          %v520 = vpack.c.bf16 %v518, %v516
          %v521 = vpack.c.bf16 %v519, %v517
          %v522 = vld [vmem:[#allocation9] sm:$0xff]
          %v523 = vld [vmem:[#allocation9 + $0x8] sm:$0xff]
          %v524 = vld [vmem:[#allocation9 + $0x10] sm:$0xff]
          %v525 = vld [vmem:[#allocation9 + $0x18] sm:$0xff]
          %v526 = vld [vmem:[#allocation9 + $0x20] sm:$0xff]
          %v527 = vld [vmem:[#allocation9 + $0x28] sm:$0xff]
          %v528 = vld [vmem:[#allocation9 + $0x30] sm:$0xff]
          %v529 = vld [vmem:[#allocation9 + $0x38] sm:$0xff]
          %v530 = vld [vmem:[#allocation9 + $0x40] sm:$0xff]
          %v531 = vld [vmem:[#allocation9 + $0x48] sm:$0xff]
          %v532 = vld [vmem:[#allocation9 + $0x50] sm:$0xff]
          %v533 = vld [vmem:[#allocation9 + $0x58] sm:$0xff]
          %v534 = vld [vmem:[#allocation9 + $0x60] sm:$0xff]
          %v535 = vld [vmem:[#allocation9 + $0x68] sm:$0xff]
          %v536 = vld [vmem:[#allocation9 + $0x70] sm:$0xff]
          %v537 = vld [vmem:[#allocation9 + $0x78] sm:$0xff]
          %v538 = vld [vmem:[#allocation9 + $0x80] sm:$0xff]
          %v539 = vld [vmem:[#allocation9 + $0x88] sm:$0xff]
          %v540 = vld [vmem:[#allocation9 + $0x90] sm:$0xff]
          %v541 = vld [vmem:[#allocation9 + $0x98] sm:$0xff]
          %v542 = vld [vmem:[#allocation9 + $0xa0] sm:$0xff]
          %v543 = vld [vmem:[#allocation9 + $0xa8] sm:$0xff]
          %v544 = vld [vmem:[#allocation9 + $0xb0] sm:$0xff]
          %v545 = vld [vmem:[#allocation9 + $0xb8] sm:$0xff]
          %v546 = vld [vmem:[#allocation9 + $0xc0] sm:$0xff]
          %v547 = vld [vmem:[#allocation9 + $0xc8] sm:$0xff]
          %v548 = vld [vmem:[#allocation9 + $0xd0] sm:$0xff]
          %v549 = vld [vmem:[#allocation9 + $0xd8] sm:$0xff]
          %v550 = vld [vmem:[#allocation9 + $0xe0] sm:$0xff]
          %v551 = vld [vmem:[#allocation9 + $0xe8] sm:$0xff]
          %v552 = vld [vmem:[#allocation9 + $0xf0] sm:$0xff]
          %v553 = vld [vmem:[#allocation9 + $0xf8] sm:$0xff]
          %v554 = vld [vmem:[#allocation9 + $0x100] sm:$0xff]
          %v555 = vld [vmem:[#allocation9 + $0x108] sm:$0xff]
          %v556 = vld [vmem:[#allocation9 + $0x110] sm:$0xff]
          %v557 = vld [vmem:[#allocation9 + $0x118] sm:$0xff]
          %v558 = vld [vmem:[#allocation9 + $0x120] sm:$0xff]
          %v559 = vld [vmem:[#allocation9 + $0x128] sm:$0xff]
          %v560 = vld [vmem:[#allocation9 + $0x130] sm:$0xff]
          %v561 = vld [vmem:[#allocation9 + $0x138] sm:$0xff]
          %v562 = vld [vmem:[#allocation9 + $0x140] sm:$0xff]
          %v563 = vld [vmem:[#allocation9 + $0x148] sm:$0xff]
          %v564 = vld [vmem:[#allocation9 + $0x150] sm:$0xff]
          %v565 = vld [vmem:[#allocation9 + $0x158] sm:$0xff]
          %v566 = vld [vmem:[#allocation9 + $0x160] sm:$0xff]
          %v567 = vld [vmem:[#allocation9 + $0x168] sm:$0xff]
          %v568 = vld [vmem:[#allocation9 + $0x170] sm:$0xff]
          %v569 = vld [vmem:[#allocation9 + $0x178] sm:$0xff]
          %v570 = vld [vmem:[#allocation9 + $0x180] sm:$0xff]
          %v571 = vld [vmem:[#allocation9 + $0x188] sm:$0xff]
          %v572 = vld [vmem:[#allocation9 + $0x190] sm:$0xff]
          %v573 = vld [vmem:[#allocation9 + $0x198] sm:$0xff]
          %v574 = vld [vmem:[#allocation9 + $0x1a0] sm:$0xff]
          %v575 = vld [vmem:[#allocation9 + $0x1a8] sm:$0xff]
          %v576 = vld [vmem:[#allocation9 + $0x1b0] sm:$0xff]
          %v577 = vld [vmem:[#allocation9 + $0x1b8] sm:$0xff]
          %v578 = vld [vmem:[#allocation9 + $0x1c0] sm:$0xff]
          %v579 = vld [vmem:[#allocation9 + $0x1c8] sm:$0xff]
          %v580 = vld [vmem:[#allocation9 + $0x1d0] sm:$0xff]
          %v581 = vld [vmem:[#allocation9 + $0x1d8] sm:$0xff]
          %v582 = vld [vmem:[#allocation9 + $0x1e0] sm:$0xff]
          %v583 = vld [vmem:[#allocation9 + $0x1e8] sm:$0xff]
          %v584 = vld [vmem:[#allocation9 + $0x1f0] sm:$0xff]
          %v585 = vld [vmem:[#allocation9 + $0x1f8] sm:$0xff]
          %v586 = vld [vmem:[#allocation9 + $0x200] sm:$0xff]
          %v587 = vld [vmem:[#allocation9 + $0x208] sm:$0xff]
          %v588 = vld [vmem:[#allocation9 + $0x210] sm:$0xff]
          %v589 = vld [vmem:[#allocation9 + $0x218] sm:$0xff]
          %v590 = vld [vmem:[#allocation9 + $0x220] sm:$0xff]
          %v591 = vld [vmem:[#allocation9 + $0x228] sm:$0xff]
          %v592 = vld [vmem:[#allocation9 + $0x230] sm:$0xff]
          %v593 = vld [vmem:[#allocation9 + $0x238] sm:$0xff]
          %v594 = vld [vmem:[#allocation9 + $0x240] sm:$0xff]
          %v595 = vld [vmem:[#allocation9 + $0x248] sm:$0xff]
          %v596 = vld [vmem:[#allocation9 + $0x250] sm:$0xff]
          %v597 = vld [vmem:[#allocation9 + $0x258] sm:$0xff]
          %v598 = vld [vmem:[#allocation9 + $0x260] sm:$0xff]
          %v599 = vld [vmem:[#allocation9 + $0x268] sm:$0xff]
          %v600 = vld [vmem:[#allocation9 + $0x270] sm:$0xff]
          %v601 = vld [vmem:[#allocation9 + $0x278] sm:$0xff]
          %v602 = vld [vmem:[#allocation9 + $0x280] sm:$0xff]
          %v603 = vld [vmem:[#allocation9 + $0x288] sm:$0xff]
          %v604 = vld [vmem:[#allocation9 + $0x290] sm:$0xff]
          %v605 = vld [vmem:[#allocation9 + $0x298] sm:$0xff]
          %v606 = vld [vmem:[#allocation9 + $0x2a0] sm:$0xff]
          %v607 = vld [vmem:[#allocation9 + $0x2a8] sm:$0xff]
          %v608 = vld [vmem:[#allocation9 + $0x2b0] sm:$0xff]
          %v609 = vld [vmem:[#allocation9 + $0x2b8] sm:$0xff]
          %v610 = vld [vmem:[#allocation9 + $0x2c0] sm:$0xff]
          %v611 = vld [vmem:[#allocation9 + $0x2c8] sm:$0xff]
          %v612 = vld [vmem:[#allocation9 + $0x2d0] sm:$0xff]
          %v613 = vld [vmem:[#allocation9 + $0x2d8] sm:$0xff]
          %v614 = vld [vmem:[#allocation9 + $0x2e0] sm:$0xff]
          %v615 = vld [vmem:[#allocation9 + $0x2e8] sm:$0xff]
          %v616 = vld [vmem:[#allocation9 + $0x2f0] sm:$0xff]
          %v617 = vld [vmem:[#allocation9 + $0x2f8] sm:$0xff]
          %v618 = vld [vmem:[#allocation9 + $0x300] sm:$0xff]
          %v619 = vld [vmem:[#allocation9 + $0x308] sm:$0xff]
          %v620 = vld [vmem:[#allocation9 + $0x310] sm:$0xff]
          %v621 = vld [vmem:[#allocation9 + $0x318] sm:$0xff]
          %v622 = vld [vmem:[#allocation9 + $0x320] sm:$0xff]
          %v623 = vld [vmem:[#allocation9 + $0x328] sm:$0xff]
          %v624 = vld [vmem:[#allocation9 + $0x330] sm:$0xff]
          %v625 = vld [vmem:[#allocation9 + $0x338] sm:$0xff]
          %v626 = vld [vmem:[#allocation9 + $0x340] sm:$0xff]
          %v627 = vld [vmem:[#allocation9 + $0x348] sm:$0xff]
          %v628 = vld [vmem:[#allocation9 + $0x350] sm:$0xff]
          %v629 = vld [vmem:[#allocation9 + $0x358] sm:$0xff]
          %v630 = vld [vmem:[#allocation9 + $0x360] sm:$0xff]
          %v631 = vld [vmem:[#allocation9 + $0x368] sm:$0xff]
          %v632 = vld [vmem:[#allocation9 + $0x370] sm:$0xff]
          %v633 = vld [vmem:[#allocation9 + $0x378] sm:$0xff]
          %v634 = vld [vmem:[#allocation9 + $0x380] sm:$0xff]
          %v635 = vld [vmem:[#allocation9 + $0x388] sm:$0xff]
          %v636 = vld [vmem:[#allocation9 + $0x390] sm:$0xff]
          %v637 = vld [vmem:[#allocation9 + $0x398] sm:$0xff]
          %v638 = vld [vmem:[#allocation9 + $0x3a0] sm:$0xff]
          %v639 = vld [vmem:[#allocation9 + $0x3a8] sm:$0xff]
          %v640 = vld [vmem:[#allocation9 + $0x3b0] sm:$0xff]
          %v641 = vld [vmem:[#allocation9 + $0x3b8] sm:$0xff]
          %v642 = vld [vmem:[#allocation9 + $0x3c0] sm:$0xff]
          %v643 = vld [vmem:[#allocation9 + $0x3c8] sm:$0xff]
          %v644 = vld [vmem:[#allocation9 + $0x3d0] sm:$0xff]
          %v645 = vld [vmem:[#allocation9 + $0x3d8] sm:$0xff]
          %v646 = vld [vmem:[#allocation9 + $0x3e0] sm:$0xff]
          %v647 = vld [vmem:[#allocation9 + $0x3e8] sm:$0xff]
          %v648 = vld [vmem:[#allocation9 + $0x3f0] sm:$0xff]
          %v649 = vld [vmem:[#allocation9 + $0x3f8] sm:$0xff]
          %v650 = vld [vmem:[#allocation9 + $0x400] sm:$0xff]
          %v651 = vld [vmem:[#allocation9 + $0x408] sm:$0xff]
          %v652 = vld [vmem:[#allocation9 + $0x410] sm:$0xff]
          %v653 = vld [vmem:[#allocation9 + $0x418] sm:$0xff]
          %v654 = vld [vmem:[#allocation9 + $0x420] sm:$0xff]
          %v655 = vld [vmem:[#allocation9 + $0x428] sm:$0xff]
          %v656 = vld [vmem:[#allocation9 + $0x430] sm:$0xff]
          %v657 = vld [vmem:[#allocation9 + $0x438] sm:$0xff]
          %v658 = vld [vmem:[#allocation9 + $0x440] sm:$0xff]
          %v659 = vld [vmem:[#allocation9 + $0x448] sm:$0xff]
          %v660 = vld [vmem:[#allocation9 + $0x450] sm:$0xff]
          %v661 = vld [vmem:[#allocation9 + $0x458] sm:$0xff]
          %v662 = vld [vmem:[#allocation9 + $0x460] sm:$0xff]
          %v663 = vld [vmem:[#allocation9 + $0x468] sm:$0xff]
          %v664 = vld [vmem:[#allocation9 + $0x470] sm:$0xff]
          %v665 = vld [vmem:[#allocation9 + $0x478] sm:$0xff]
          %v666 = vld [vmem:[#allocation9 + $0x480] sm:$0xff]
          %v667 = vld [vmem:[#allocation9 + $0x488] sm:$0xff]
          %v668 = vld [vmem:[#allocation9 + $0x490] sm:$0xff]
          %v669 = vld [vmem:[#allocation9 + $0x498] sm:$0xff]
          %v670 = vld [vmem:[#allocation9 + $0x4a0] sm:$0xff]
          %v671 = vld [vmem:[#allocation9 + $0x4a8] sm:$0xff]
          %v672 = vld [vmem:[#allocation9 + $0x4b0] sm:$0xff]
          %v673 = vld [vmem:[#allocation9 + $0x4b8] sm:$0xff]
          %v674 = vld [vmem:[#allocation9 + $0x4c0] sm:$0xff]
          %v675 = vld [vmem:[#allocation9 + $0x4c8] sm:$0xff]
          %v676 = vld [vmem:[#allocation9 + $0x4d0] sm:$0xff]
          %v677 = vld [vmem:[#allocation9 + $0x4d8] sm:$0xff]
          %v678 = vld [vmem:[#allocation9 + $0x4e0] sm:$0xff]
          %v679 = vld [vmem:[#allocation9 + $0x4e8] sm:$0xff]
          %v680 = vld [vmem:[#allocation9 + $0x4f0] sm:$0xff]
          %v681 = vld [vmem:[#allocation9 + $0x4f8] sm:$0xff]
          %v682 = vld [vmem:[#allocation9 + $0x500] sm:$0xff]
          %v683 = vld [vmem:[#allocation9 + $0x508] sm:$0xff]
          %v684 = vld [vmem:[#allocation9 + $0x510] sm:$0xff]
          %v685 = vld [vmem:[#allocation9 + $0x518] sm:$0xff]
          %v686 = vld [vmem:[#allocation9 + $0x520] sm:$0xff]
          %v687 = vld [vmem:[#allocation9 + $0x528] sm:$0xff]
          %v688 = vld [vmem:[#allocation9 + $0x530] sm:$0xff]
          %v689 = vld [vmem:[#allocation9 + $0x538] sm:$0xff]
          %v690 = vld [vmem:[#allocation9 + $0x540] sm:$0xff]
          %v691 = vld [vmem:[#allocation9 + $0x548] sm:$0xff]
          %v692 = vld [vmem:[#allocation9 + $0x550] sm:$0xff]
          %v693 = vld [vmem:[#allocation9 + $0x558] sm:$0xff]
          %v694 = vld [vmem:[#allocation9 + $0x560] sm:$0xff]
          %v695 = vld [vmem:[#allocation9 + $0x568] sm:$0xff]
          %v696 = vld [vmem:[#allocation9 + $0x570] sm:$0xff]
          %v697 = vld [vmem:[#allocation9 + $0x578] sm:$0xff]
          %v698 = vld [vmem:[#allocation9 + $0x580] sm:$0xff]
          %v699 = vld [vmem:[#allocation9 + $0x588] sm:$0xff]
          %v700 = vld [vmem:[#allocation9 + $0x590] sm:$0xff]
          %v701 = vld [vmem:[#allocation9 + $0x598] sm:$0xff]
          %v702 = vld [vmem:[#allocation9 + $0x5a0] sm:$0xff]
          %v703 = vld [vmem:[#allocation9 + $0x5a8] sm:$0xff]
          %v704 = vld [vmem:[#allocation9 + $0x5b0] sm:$0xff]
          %v705 = vld [vmem:[#allocation9 + $0x5b8] sm:$0xff]
          %v706 = vld [vmem:[#allocation9 + $0x5c0] sm:$0xff]
          %v707 = vld [vmem:[#allocation9 + $0x5c8] sm:$0xff]
          %v708 = vld [vmem:[#allocation9 + $0x5d0] sm:$0xff]
          %v709 = vld [vmem:[#allocation9 + $0x5d8] sm:$0xff]
          %v710 = vld [vmem:[#allocation9 + $0x5e0] sm:$0xff]
          %v711 = vld [vmem:[#allocation9 + $0x5e8] sm:$0xff]
          %v712 = vld [vmem:[#allocation9 + $0x5f0] sm:$0xff]
          %v713 = vld [vmem:[#allocation9 + $0x5f8] sm:$0xff]
          %v714 = vld [vmem:[#allocation9 + $0x600] sm:$0xff]
          %v715 = vld [vmem:[#allocation9 + $0x608] sm:$0xff]
          %v716 = vld [vmem:[#allocation9 + $0x610] sm:$0xff]
          %v717 = vld [vmem:[#allocation9 + $0x618] sm:$0xff]
          %v718 = vld [vmem:[#allocation9 + $0x620] sm:$0xff]
          %v719 = vld [vmem:[#allocation9 + $0x628] sm:$0xff]
          %v720 = vld [vmem:[#allocation9 + $0x630] sm:$0xff]
          %v721 = vld [vmem:[#allocation9 + $0x638] sm:$0xff]
          %v722 = vld [vmem:[#allocation9 + $0x640] sm:$0xff]
          %v723 = vld [vmem:[#allocation9 + $0x648] sm:$0xff]
          %v724 = vld [vmem:[#allocation9 + $0x650] sm:$0xff]
          %v725 = vld [vmem:[#allocation9 + $0x658] sm:$0xff]
          %v726 = vld [vmem:[#allocation9 + $0x660] sm:$0xff]
          %v727 = vld [vmem:[#allocation9 + $0x668] sm:$0xff]
          %v728 = vld [vmem:[#allocation9 + $0x670] sm:$0xff]
          %v729 = vld [vmem:[#allocation9 + $0x678] sm:$0xff]
          %v730 = vld [vmem:[#allocation9 + $0x680] sm:$0xff]
          %v731 = vld [vmem:[#allocation9 + $0x688] sm:$0xff]
          %v732 = vld [vmem:[#allocation9 + $0x690] sm:$0xff]
          %v733 = vld [vmem:[#allocation9 + $0x698] sm:$0xff]
          %v734 = vld [vmem:[#allocation9 + $0x6a0] sm:$0xff]
          %v735 = vld [vmem:[#allocation9 + $0x6a8] sm:$0xff]
          %v736 = vld [vmem:[#allocation9 + $0x6b0] sm:$0xff]
          %v737 = vld [vmem:[#allocation9 + $0x6b8] sm:$0xff]
          %v738 = vld [vmem:[#allocation9 + $0x6c0] sm:$0xff]
          %v739 = vld [vmem:[#allocation9 + $0x6c8] sm:$0xff]
          %v740 = vld [vmem:[#allocation9 + $0x6d0] sm:$0xff]
          %v741 = vld [vmem:[#allocation9 + $0x6d8] sm:$0xff]
          %v742 = vld [vmem:[#allocation9 + $0x6e0] sm:$0xff]
          %v743 = vld [vmem:[#allocation9 + $0x6e8] sm:$0xff]
          %v744 = vld [vmem:[#allocation9 + $0x6f0] sm:$0xff]
          %v745 = vld [vmem:[#allocation9 + $0x6f8] sm:$0xff]
          %v746 = vld [vmem:[#allocation9 + $0x700] sm:$0xff]
          %v747 = vld [vmem:[#allocation9 + $0x708] sm:$0xff]
          %v748 = vld [vmem:[#allocation9 + $0x710] sm:$0xff]
          %v749 = vld [vmem:[#allocation9 + $0x718] sm:$0xff]
          %v750 = vld [vmem:[#allocation9 + $0x720] sm:$0xff]
          %v751 = vld [vmem:[#allocation9 + $0x728] sm:$0xff]
          %v752 = vld [vmem:[#allocation9 + $0x730] sm:$0xff]
          %v753 = vld [vmem:[#allocation9 + $0x738] sm:$0xff]
          %v754 = vld [vmem:[#allocation9 + $0x740] sm:$0xff]
          %v755 = vld [vmem:[#allocation9 + $0x748] sm:$0xff]
          %v756 = vld [vmem:[#allocation9 + $0x750] sm:$0xff]
          %v757 = vld [vmem:[#allocation9 + $0x758] sm:$0xff]
          %v758 = vld [vmem:[#allocation9 + $0x760] sm:$0xff]
          %v759 = vld [vmem:[#allocation9 + $0x768] sm:$0xff]
          %v760 = vld [vmem:[#allocation9 + $0x770] sm:$0xff]
          %v761 = vld [vmem:[#allocation9 + $0x778] sm:$0xff]
          %v762 = vld [vmem:[#allocation9 + $0x780] sm:$0xff]
          %v763 = vld [vmem:[#allocation9 + $0x788] sm:$0xff]
          %v764 = vld [vmem:[#allocation9 + $0x790] sm:$0xff]
          %v765 = vld [vmem:[#allocation9 + $0x798] sm:$0xff]
          %v766 = vld [vmem:[#allocation9 + $0x7a0] sm:$0xff]
          %v767 = vld [vmem:[#allocation9 + $0x7a8] sm:$0xff]
          %v768 = vld [vmem:[#allocation9 + $0x7b0] sm:$0xff]
          %v769 = vld [vmem:[#allocation9 + $0x7b8] sm:$0xff]
          %v770 = vld [vmem:[#allocation9 + $0x7c0] sm:$0xff]
          %v771 = vld [vmem:[#allocation9 + $0x7c8] sm:$0xff]
          %v772 = vld [vmem:[#allocation9 + $0x7d0] sm:$0xff]
          %v773 = vld [vmem:[#allocation9 + $0x7d8] sm:$0xff]
          %v774 = vld [vmem:[#allocation9 + $0x7e0] sm:$0xff]
          %v775 = vld [vmem:[#allocation9 + $0x7e8] sm:$0xff]
          %v776 = vld [vmem:[#allocation9 + $0x7f0] sm:$0xff]
          %v777 = vld [vmem:[#allocation9 + $0x7f8] sm:$0xff]
          %v778 = vld [vmem:[#allocation11] sm:$0xff]
          %v779 = vld [vmem:[#allocation11 + $0x8] sm:$0xff]
          %v782 = vperm.slane %v778, 0
          %v783 = vperm.slane %v778, 1
          %v784 = vperm.slane %v778, 2
          %v785 = vperm.slane %v778, 3
          %v786 = vperm.slane %v778, 4
          %v787 = vperm.slane %v778, 5
          %v788 = vperm.slane %v778, 6
          %v789 = vperm.slane %v778, 7
          %v790 = vperm.slane %v779, 0
          %v791 = vperm.slane %v779, 1
          %v792 = vperm.slane %v779, 2
          %v793 = vperm.slane %v779, 3
          %v794 = vperm.slane %v779, 4
          %v795 = vperm.slane %v779, 5
          %v796 = vperm.slane %v779, 6
          %v797 = vperm.slane %v779, 7
          %v1070 = vunpack.c.l.b16 %v522
          %v1071 = vunpack.c.h.b16 %v522
          %v1072 = vunpack.c.l.b16 %v523
          %v1073 = vunpack.c.h.b16 %v523
          %v1074 = vunpack.c.l.b16 %v524
          %v1075 = vunpack.c.h.b16 %v524
          %v1076 = vunpack.c.l.b16 %v525
          %v1077 = vunpack.c.h.b16 %v525
          %v1078 = vunpack.c.l.b16 %v526
          %v1079 = vunpack.c.h.b16 %v526
          %v1080 = vunpack.c.l.b16 %v527
          %v1081 = vunpack.c.h.b16 %v527
          %v1082 = vunpack.c.l.b16 %v528
          %v1083 = vunpack.c.h.b16 %v528
          %v1084 = vunpack.c.l.b16 %v529
          %v1085 = vunpack.c.h.b16 %v529
          %v1086 = vunpack.c.l.b16 %v530
          %v1087 = vunpack.c.h.b16 %v530
          %v1088 = vunpack.c.l.b16 %v531
          %v1089 = vunpack.c.h.b16 %v531
          %v1090 = vunpack.c.l.b16 %v532
          %v1091 = vunpack.c.h.b16 %v532
          %v1092 = vunpack.c.l.b16 %v533
          %v1093 = vunpack.c.h.b16 %v533
          %v1094 = vunpack.c.l.b16 %v534
          %v1095 = vunpack.c.h.b16 %v534
          %v1096 = vunpack.c.l.b16 %v535
          %v1097 = vunpack.c.h.b16 %v535
          %v1098 = vunpack.c.l.b16 %v536
          %v1099 = vunpack.c.h.b16 %v536
          %v1100 = vunpack.c.l.b16 %v537
          %v1101 = vunpack.c.h.b16 %v537
          %v1102 = vunpack.c.l.b16 %v538
          %v1103 = vunpack.c.h.b16 %v538
          %v1104 = vunpack.c.l.b16 %v539
          %v1105 = vunpack.c.h.b16 %v539
          %v1106 = vunpack.c.l.b16 %v540
          %v1107 = vunpack.c.h.b16 %v540
          %v1108 = vunpack.c.l.b16 %v541
          %v1109 = vunpack.c.h.b16 %v541
          %v1110 = vunpack.c.l.b16 %v542
          %v1111 = vunpack.c.h.b16 %v542
          %v1112 = vunpack.c.l.b16 %v543
          %v1113 = vunpack.c.h.b16 %v543
          %v1114 = vunpack.c.l.b16 %v544
          %v1115 = vunpack.c.h.b16 %v544
          %v1116 = vunpack.c.l.b16 %v545
          %v1117 = vunpack.c.h.b16 %v545
          %v1118 = vunpack.c.l.b16 %v546
          %v1119 = vunpack.c.h.b16 %v546
          %v1120 = vunpack.c.l.b16 %v547
          %v1121 = vunpack.c.h.b16 %v547
          %v1122 = vunpack.c.l.b16 %v548
          %v1123 = vunpack.c.h.b16 %v548
          %v1124 = vunpack.c.l.b16 %v549
          %v1125 = vunpack.c.h.b16 %v549
          %v1126 = vunpack.c.l.b16 %v550
          %v1127 = vunpack.c.h.b16 %v550
          %v1128 = vunpack.c.l.b16 %v551
          %v1129 = vunpack.c.h.b16 %v551
          %v1130 = vunpack.c.l.b16 %v552
          %v1131 = vunpack.c.h.b16 %v552
          %v1132 = vunpack.c.l.b16 %v553
          %v1133 = vunpack.c.h.b16 %v553
          %v1134 = vunpack.c.l.b16 %v554
          %v1135 = vunpack.c.h.b16 %v554
          %v1136 = vunpack.c.l.b16 %v555
          %v1137 = vunpack.c.h.b16 %v555
          %v1138 = vunpack.c.l.b16 %v556
          %v1139 = vunpack.c.h.b16 %v556
          %v1140 = vunpack.c.l.b16 %v557
          %v1141 = vunpack.c.h.b16 %v557
          %v1142 = vunpack.c.l.b16 %v558
          %v1143 = vunpack.c.h.b16 %v558
          %v1144 = vunpack.c.l.b16 %v559
          %v1145 = vunpack.c.h.b16 %v559
          %v1146 = vunpack.c.l.b16 %v560
          %v1147 = vunpack.c.h.b16 %v560
          %v1148 = vunpack.c.l.b16 %v561
          %v1149 = vunpack.c.h.b16 %v561
          %v1150 = vunpack.c.l.b16 %v562
          %v1151 = vunpack.c.h.b16 %v562
          %v1152 = vunpack.c.l.b16 %v563
          %v1153 = vunpack.c.h.b16 %v563
          %v1154 = vunpack.c.l.b16 %v564
          %v1155 = vunpack.c.h.b16 %v564
          %v1156 = vunpack.c.l.b16 %v565
          %v1157 = vunpack.c.h.b16 %v565
          %v1158 = vunpack.c.l.b16 %v566
          %v1159 = vunpack.c.h.b16 %v566
          %v1160 = vunpack.c.l.b16 %v567
          %v1161 = vunpack.c.h.b16 %v567
          %v1162 = vunpack.c.l.b16 %v568
          %v1163 = vunpack.c.h.b16 %v568
          %v1164 = vunpack.c.l.b16 %v569
          %v1165 = vunpack.c.h.b16 %v569
          %v1166 = vunpack.c.l.b16 %v570
          %v1167 = vunpack.c.h.b16 %v570
          %v1168 = vunpack.c.l.b16 %v571
          %v1169 = vunpack.c.h.b16 %v571
          %v1170 = vunpack.c.l.b16 %v572
          %v1171 = vunpack.c.h.b16 %v572
          %v1172 = vunpack.c.l.b16 %v573
          %v1173 = vunpack.c.h.b16 %v573
          %v1174 = vunpack.c.l.b16 %v574
          %v1175 = vunpack.c.h.b16 %v574
          %v1176 = vunpack.c.l.b16 %v575
          %v1177 = vunpack.c.h.b16 %v575
          %v1178 = vunpack.c.l.b16 %v576
          %v1179 = vunpack.c.h.b16 %v576
          %v1180 = vunpack.c.l.b16 %v577
          %v1181 = vunpack.c.h.b16 %v577
          %v1182 = vunpack.c.l.b16 %v578
          %v1183 = vunpack.c.h.b16 %v578
          %v1184 = vunpack.c.l.b16 %v579
          %v1185 = vunpack.c.h.b16 %v579
          %v1186 = vunpack.c.l.b16 %v580
          %v1187 = vunpack.c.h.b16 %v580
          %v1188 = vunpack.c.l.b16 %v581
          %v1189 = vunpack.c.h.b16 %v581
          %v1190 = vunpack.c.l.b16 %v582
          %v1191 = vunpack.c.h.b16 %v582
          %v1192 = vunpack.c.l.b16 %v583
          %v1193 = vunpack.c.h.b16 %v583
          %v1194 = vunpack.c.l.b16 %v584
          %v1195 = vunpack.c.h.b16 %v584
          %v1196 = vunpack.c.l.b16 %v585
          %v1197 = vunpack.c.h.b16 %v585
          %v1198 = vunpack.c.l.b16 %v586
          %v1199 = vunpack.c.h.b16 %v586
          %v1200 = vunpack.c.l.b16 %v587
          %v1201 = vunpack.c.h.b16 %v587
          %v1202 = vunpack.c.l.b16 %v588
          %v1203 = vunpack.c.h.b16 %v588
          %v1204 = vunpack.c.l.b16 %v589
          %v1205 = vunpack.c.h.b16 %v589
          %v1206 = vunpack.c.l.b16 %v590
          %v1207 = vunpack.c.h.b16 %v590
          %v1208 = vunpack.c.l.b16 %v591
          %v1209 = vunpack.c.h.b16 %v591
          %v1210 = vunpack.c.l.b16 %v592
          %v1211 = vunpack.c.h.b16 %v592
          %v1212 = vunpack.c.l.b16 %v593
          %v1213 = vunpack.c.h.b16 %v593
          %v1214 = vunpack.c.l.b16 %v594
          %v1215 = vunpack.c.h.b16 %v594
          %v1216 = vunpack.c.l.b16 %v595
          %v1217 = vunpack.c.h.b16 %v595
          %v1218 = vunpack.c.l.b16 %v596
          %v1219 = vunpack.c.h.b16 %v596
          %v1220 = vunpack.c.l.b16 %v597
          %v1221 = vunpack.c.h.b16 %v597
          %v1222 = vunpack.c.l.b16 %v598
          %v1223 = vunpack.c.h.b16 %v598
          %v1224 = vunpack.c.l.b16 %v599
          %v1225 = vunpack.c.h.b16 %v599
          %v1226 = vunpack.c.l.b16 %v600
          %v1227 = vunpack.c.h.b16 %v600
          %v1228 = vunpack.c.l.b16 %v601
          %v1229 = vunpack.c.h.b16 %v601
          %v1230 = vunpack.c.l.b16 %v602
          %v1231 = vunpack.c.h.b16 %v602
          %v1232 = vunpack.c.l.b16 %v603
          %v1233 = vunpack.c.h.b16 %v603
          %v1234 = vunpack.c.l.b16 %v604
          %v1235 = vunpack.c.h.b16 %v604
          %v1236 = vunpack.c.l.b16 %v605
          %v1237 = vunpack.c.h.b16 %v605
          %v1238 = vunpack.c.l.b16 %v606
          %v1239 = vunpack.c.h.b16 %v606
          %v1240 = vunpack.c.l.b16 %v607
          %v1241 = vunpack.c.h.b16 %v607
          %v1242 = vunpack.c.l.b16 %v608
          %v1243 = vunpack.c.h.b16 %v608
          %v1244 = vunpack.c.l.b16 %v609
          %v1245 = vunpack.c.h.b16 %v609
          %v1246 = vunpack.c.l.b16 %v610
          %v1247 = vunpack.c.h.b16 %v610
          %v1248 = vunpack.c.l.b16 %v611
          %v1249 = vunpack.c.h.b16 %v611
          %v1250 = vunpack.c.l.b16 %v612
          %v1251 = vunpack.c.h.b16 %v612
          %v1252 = vunpack.c.l.b16 %v613
          %v1253 = vunpack.c.h.b16 %v613
          %v1254 = vunpack.c.l.b16 %v614
          %v1255 = vunpack.c.h.b16 %v614
          %v1256 = vunpack.c.l.b16 %v615
          %v1257 = vunpack.c.h.b16 %v615
          %v1258 = vunpack.c.l.b16 %v616
          %v1259 = vunpack.c.h.b16 %v616
          %v1260 = vunpack.c.l.b16 %v617
          %v1261 = vunpack.c.h.b16 %v617
          %v1262 = vunpack.c.l.b16 %v618
          %v1263 = vunpack.c.h.b16 %v618
          %v1264 = vunpack.c.l.b16 %v619
          %v1265 = vunpack.c.h.b16 %v619
          %v1266 = vunpack.c.l.b16 %v620
          %v1267 = vunpack.c.h.b16 %v620
          %v1268 = vunpack.c.l.b16 %v621
          %v1269 = vunpack.c.h.b16 %v621
          %v1270 = vunpack.c.l.b16 %v622
          %v1271 = vunpack.c.h.b16 %v622
          %v1272 = vunpack.c.l.b16 %v623
          %v1273 = vunpack.c.h.b16 %v623
          %v1274 = vunpack.c.l.b16 %v624
          %v1275 = vunpack.c.h.b16 %v624
          %v1276 = vunpack.c.l.b16 %v625
          %v1277 = vunpack.c.h.b16 %v625
          %v1278 = vunpack.c.l.b16 %v626
          %v1279 = vunpack.c.h.b16 %v626
          %v1280 = vunpack.c.l.b16 %v627
          %v1281 = vunpack.c.h.b16 %v627
          %v1282 = vunpack.c.l.b16 %v628
          %v1283 = vunpack.c.h.b16 %v628
          %v1284 = vunpack.c.l.b16 %v629
          %v1285 = vunpack.c.h.b16 %v629
          %v1286 = vunpack.c.l.b16 %v630
          %v1287 = vunpack.c.h.b16 %v630
          %v1288 = vunpack.c.l.b16 %v631
          %v1289 = vunpack.c.h.b16 %v631
          %v1290 = vunpack.c.l.b16 %v632
          %v1291 = vunpack.c.h.b16 %v632
          %v1292 = vunpack.c.l.b16 %v633
          %v1293 = vunpack.c.h.b16 %v633
          %v1294 = vunpack.c.l.b16 %v634
          %v1295 = vunpack.c.h.b16 %v634
          %v1296 = vunpack.c.l.b16 %v635
          %v1297 = vunpack.c.h.b16 %v635
          %v1298 = vunpack.c.l.b16 %v636
          %v1299 = vunpack.c.h.b16 %v636
          %v1300 = vunpack.c.l.b16 %v637
          %v1301 = vunpack.c.h.b16 %v637
          %v1302 = vunpack.c.l.b16 %v638
          %v1303 = vunpack.c.h.b16 %v638
          %v1304 = vunpack.c.l.b16 %v639
          %v1305 = vunpack.c.h.b16 %v639
          %v1306 = vunpack.c.l.b16 %v640
          %v1307 = vunpack.c.h.b16 %v640
          %v1308 = vunpack.c.l.b16 %v641
          %v1309 = vunpack.c.h.b16 %v641
          %v1310 = vunpack.c.l.b16 %v642
          %v1311 = vunpack.c.h.b16 %v642
          %v1312 = vunpack.c.l.b16 %v643
          %v1313 = vunpack.c.h.b16 %v643
          %v1314 = vunpack.c.l.b16 %v644
          %v1315 = vunpack.c.h.b16 %v644
          %v1316 = vunpack.c.l.b16 %v645
          %v1317 = vunpack.c.h.b16 %v645
          %v1318 = vunpack.c.l.b16 %v646
          %v1319 = vunpack.c.h.b16 %v646
          %v1320 = vunpack.c.l.b16 %v647
          %v1321 = vunpack.c.h.b16 %v647
          %v1322 = vunpack.c.l.b16 %v648
          %v1323 = vunpack.c.h.b16 %v648
          %v1324 = vunpack.c.l.b16 %v649
          %v1325 = vunpack.c.h.b16 %v649
          %v1326 = vunpack.c.l.b16 %v650
          %v1327 = vunpack.c.h.b16 %v650
          %v1328 = vunpack.c.l.b16 %v651
          %v1329 = vunpack.c.h.b16 %v651
          %v1330 = vunpack.c.l.b16 %v652
          %v1331 = vunpack.c.h.b16 %v652
          %v1332 = vunpack.c.l.b16 %v653
          %v1333 = vunpack.c.h.b16 %v653
          %v1334 = vunpack.c.l.b16 %v654
          %v1335 = vunpack.c.h.b16 %v654
          %v1336 = vunpack.c.l.b16 %v655
          %v1337 = vunpack.c.h.b16 %v655
          %v1338 = vunpack.c.l.b16 %v656
          %v1339 = vunpack.c.h.b16 %v656
          %v1340 = vunpack.c.l.b16 %v657
          %v1341 = vunpack.c.h.b16 %v657
          %v1342 = vunpack.c.l.b16 %v658
          %v1343 = vunpack.c.h.b16 %v658
          %v1344 = vunpack.c.l.b16 %v659
          %v1345 = vunpack.c.h.b16 %v659
          %v1346 = vunpack.c.l.b16 %v660
          %v1347 = vunpack.c.h.b16 %v660
          %v1348 = vunpack.c.l.b16 %v661
          %v1349 = vunpack.c.h.b16 %v661
          %v1350 = vunpack.c.l.b16 %v662
          %v1351 = vunpack.c.h.b16 %v662
          %v1352 = vunpack.c.l.b16 %v663
          %v1353 = vunpack.c.h.b16 %v663
          %v1354 = vunpack.c.l.b16 %v664
          %v1355 = vunpack.c.h.b16 %v664
          %v1356 = vunpack.c.l.b16 %v665
          %v1357 = vunpack.c.h.b16 %v665
          %v1358 = vunpack.c.l.b16 %v666
          %v1359 = vunpack.c.h.b16 %v666
          %v1360 = vunpack.c.l.b16 %v667
          %v1361 = vunpack.c.h.b16 %v667
          %v1362 = vunpack.c.l.b16 %v668
          %v1363 = vunpack.c.h.b16 %v668
          %v1364 = vunpack.c.l.b16 %v669
          %v1365 = vunpack.c.h.b16 %v669
          %v1366 = vunpack.c.l.b16 %v670
          %v1367 = vunpack.c.h.b16 %v670
          %v1368 = vunpack.c.l.b16 %v671
          %v1369 = vunpack.c.h.b16 %v671
          %v1370 = vunpack.c.l.b16 %v672
          %v1371 = vunpack.c.h.b16 %v672
          %v1372 = vunpack.c.l.b16 %v673
          %v1373 = vunpack.c.h.b16 %v673
          %v1374 = vunpack.c.l.b16 %v674
          %v1375 = vunpack.c.h.b16 %v674
          %v1376 = vunpack.c.l.b16 %v675
          %v1377 = vunpack.c.h.b16 %v675
          %v1378 = vunpack.c.l.b16 %v676
          %v1379 = vunpack.c.h.b16 %v676
          %v1380 = vunpack.c.l.b16 %v677
          %v1381 = vunpack.c.h.b16 %v677
          %v1382 = vunpack.c.l.b16 %v678
          %v1383 = vunpack.c.h.b16 %v678
          %v1384 = vunpack.c.l.b16 %v679
          %v1385 = vunpack.c.h.b16 %v679
          %v1386 = vunpack.c.l.b16 %v680
          %v1387 = vunpack.c.h.b16 %v680
          %v1388 = vunpack.c.l.b16 %v681
          %v1389 = vunpack.c.h.b16 %v681
          %v1390 = vunpack.c.l.b16 %v682
          %v1391 = vunpack.c.h.b16 %v682
          %v1392 = vunpack.c.l.b16 %v683
          %v1393 = vunpack.c.h.b16 %v683
          %v1394 = vunpack.c.l.b16 %v684
          %v1395 = vunpack.c.h.b16 %v684
          %v1396 = vunpack.c.l.b16 %v685
          %v1397 = vunpack.c.h.b16 %v685
          %v1398 = vunpack.c.l.b16 %v686
          %v1399 = vunpack.c.h.b16 %v686
          %v1400 = vunpack.c.l.b16 %v687
          %v1401 = vunpack.c.h.b16 %v687
          %v1402 = vunpack.c.l.b16 %v688
          %v1403 = vunpack.c.h.b16 %v688
          %v1404 = vunpack.c.l.b16 %v689
          %v1405 = vunpack.c.h.b16 %v689
          %v1406 = vunpack.c.l.b16 %v690
          %v1407 = vunpack.c.h.b16 %v690
          %v1408 = vunpack.c.l.b16 %v691
          %v1409 = vunpack.c.h.b16 %v691
          %v1410 = vunpack.c.l.b16 %v692
          %v1411 = vunpack.c.h.b16 %v692
          %v1412 = vunpack.c.l.b16 %v693
          %v1413 = vunpack.c.h.b16 %v693
          %v1414 = vunpack.c.l.b16 %v694
          %v1415 = vunpack.c.h.b16 %v694
          %v1416 = vunpack.c.l.b16 %v695
          %v1417 = vunpack.c.h.b16 %v695
          %v1418 = vunpack.c.l.b16 %v696
          %v1419 = vunpack.c.h.b16 %v696
          %v1420 = vunpack.c.l.b16 %v697
          %v1421 = vunpack.c.h.b16 %v697
          %v1422 = vunpack.c.l.b16 %v698
          %v1423 = vunpack.c.h.b16 %v698
          %v1424 = vunpack.c.l.b16 %v699
          %v1425 = vunpack.c.h.b16 %v699
          %v1426 = vunpack.c.l.b16 %v700
          %v1427 = vunpack.c.h.b16 %v700
          %v1428 = vunpack.c.l.b16 %v701
          %v1429 = vunpack.c.h.b16 %v701
          %v1430 = vunpack.c.l.b16 %v702
          %v1431 = vunpack.c.h.b16 %v702
          %v1432 = vunpack.c.l.b16 %v703
          %v1433 = vunpack.c.h.b16 %v703
          %v1434 = vunpack.c.l.b16 %v704
          %v1435 = vunpack.c.h.b16 %v704
          %v1436 = vunpack.c.l.b16 %v705
          %v1437 = vunpack.c.h.b16 %v705
          %v1438 = vunpack.c.l.b16 %v706
          %v1439 = vunpack.c.h.b16 %v706
          %v1440 = vunpack.c.l.b16 %v707
          %v1441 = vunpack.c.h.b16 %v707
          %v1442 = vunpack.c.l.b16 %v708
          %v1443 = vunpack.c.h.b16 %v708
          %v1444 = vunpack.c.l.b16 %v709
          %v1445 = vunpack.c.h.b16 %v709
          %v1446 = vunpack.c.l.b16 %v710
          %v1447 = vunpack.c.h.b16 %v710
          %v1448 = vunpack.c.l.b16 %v711
          %v1449 = vunpack.c.h.b16 %v711
          %v1450 = vunpack.c.l.b16 %v712
          %v1451 = vunpack.c.h.b16 %v712
          %v1452 = vunpack.c.l.b16 %v713
          %v1453 = vunpack.c.h.b16 %v713
          %v1454 = vunpack.c.l.b16 %v714
          %v1455 = vunpack.c.h.b16 %v714
          %v1456 = vunpack.c.l.b16 %v715
          %v1457 = vunpack.c.h.b16 %v715
          %v1458 = vunpack.c.l.b16 %v716
          %v1459 = vunpack.c.h.b16 %v716
          %v1460 = vunpack.c.l.b16 %v717
          %v1461 = vunpack.c.h.b16 %v717
          %v1462 = vunpack.c.l.b16 %v718
          %v1463 = vunpack.c.h.b16 %v718
          %v1464 = vunpack.c.l.b16 %v719
          %v1465 = vunpack.c.h.b16 %v719
          %v1466 = vunpack.c.l.b16 %v720
          %v1467 = vunpack.c.h.b16 %v720
          %v1468 = vunpack.c.l.b16 %v721
          %v1469 = vunpack.c.h.b16 %v721
          %v1470 = vunpack.c.l.b16 %v722
          %v1471 = vunpack.c.h.b16 %v722
          %v1472 = vunpack.c.l.b16 %v723
          %v1473 = vunpack.c.h.b16 %v723
          %v1474 = vunpack.c.l.b16 %v724
          %v1475 = vunpack.c.h.b16 %v724
          %v1476 = vunpack.c.l.b16 %v725
          %v1477 = vunpack.c.h.b16 %v725
          %v1478 = vunpack.c.l.b16 %v726
          %v1479 = vunpack.c.h.b16 %v726
          %v1480 = vunpack.c.l.b16 %v727
          %v1481 = vunpack.c.h.b16 %v727
          %v1482 = vunpack.c.l.b16 %v728
          %v1483 = vunpack.c.h.b16 %v728
          %v1484 = vunpack.c.l.b16 %v729
          %v1485 = vunpack.c.h.b16 %v729
          %v1486 = vunpack.c.l.b16 %v730
          %v1487 = vunpack.c.h.b16 %v730
          %v1488 = vunpack.c.l.b16 %v731
          %v1489 = vunpack.c.h.b16 %v731
          %v1490 = vunpack.c.l.b16 %v732
          %v1491 = vunpack.c.h.b16 %v732
          %v1492 = vunpack.c.l.b16 %v733
          %v1493 = vunpack.c.h.b16 %v733
          %v1494 = vunpack.c.l.b16 %v734
          %v1495 = vunpack.c.h.b16 %v734
          %v1496 = vunpack.c.l.b16 %v735
          %v1497 = vunpack.c.h.b16 %v735
          %v1498 = vunpack.c.l.b16 %v736
          %v1499 = vunpack.c.h.b16 %v736
          %v1500 = vunpack.c.l.b16 %v737
          %v1501 = vunpack.c.h.b16 %v737
          %v1502 = vunpack.c.l.b16 %v738
          %v1503 = vunpack.c.h.b16 %v738
          %v1504 = vunpack.c.l.b16 %v739
          %v1505 = vunpack.c.h.b16 %v739
          %v1506 = vunpack.c.l.b16 %v740
          %v1507 = vunpack.c.h.b16 %v740
          %v1508 = vunpack.c.l.b16 %v741
          %v1509 = vunpack.c.h.b16 %v741
          %v1510 = vunpack.c.l.b16 %v742
          %v1511 = vunpack.c.h.b16 %v742
          %v1512 = vunpack.c.l.b16 %v743
          %v1513 = vunpack.c.h.b16 %v743
          %v1514 = vunpack.c.l.b16 %v744
          %v1515 = vunpack.c.h.b16 %v744
          %v1516 = vunpack.c.l.b16 %v745
          %v1517 = vunpack.c.h.b16 %v745
          %v1518 = vunpack.c.l.b16 %v746
          %v1519 = vunpack.c.h.b16 %v746
          %v1520 = vunpack.c.l.b16 %v747
          %v1521 = vunpack.c.h.b16 %v747
          %v1522 = vunpack.c.l.b16 %v748
          %v1523 = vunpack.c.h.b16 %v748
          %v1524 = vunpack.c.l.b16 %v749
          %v1525 = vunpack.c.h.b16 %v749
          %v1526 = vunpack.c.l.b16 %v750
          %v1527 = vunpack.c.h.b16 %v750
          %v1528 = vunpack.c.l.b16 %v751
          %v1529 = vunpack.c.h.b16 %v751
          %v1530 = vunpack.c.l.b16 %v752
          %v1531 = vunpack.c.h.b16 %v752
          %v1532 = vunpack.c.l.b16 %v753
          %v1533 = vunpack.c.h.b16 %v753
          %v1534 = vunpack.c.l.b16 %v754
          %v1535 = vunpack.c.h.b16 %v754
          %v1536 = vunpack.c.l.b16 %v755
          %v1537 = vunpack.c.h.b16 %v755
          %v1538 = vunpack.c.l.b16 %v756
          %v1539 = vunpack.c.h.b16 %v756
          %v1540 = vunpack.c.l.b16 %v757
          %v1541 = vunpack.c.h.b16 %v757
          %v1542 = vunpack.c.l.b16 %v758
          %v1543 = vunpack.c.h.b16 %v758
          %v1544 = vunpack.c.l.b16 %v759
          %v1545 = vunpack.c.h.b16 %v759
          %v1546 = vunpack.c.l.b16 %v760
          %v1547 = vunpack.c.h.b16 %v760
          %v1548 = vunpack.c.l.b16 %v761
          %v1549 = vunpack.c.h.b16 %v761
          %v1550 = vunpack.c.l.b16 %v762
          %v1551 = vunpack.c.h.b16 %v762
          %v1552 = vunpack.c.l.b16 %v763
          %v1553 = vunpack.c.h.b16 %v763
          %v1554 = vunpack.c.l.b16 %v764
          %v1555 = vunpack.c.h.b16 %v764
          %v1556 = vunpack.c.l.b16 %v765
          %v1557 = vunpack.c.h.b16 %v765
          %v1558 = vunpack.c.l.b16 %v766
          %v1559 = vunpack.c.h.b16 %v766
          %v1560 = vunpack.c.l.b16 %v767
          %v1561 = vunpack.c.h.b16 %v767
          %v1562 = vunpack.c.l.b16 %v768
          %v1563 = vunpack.c.h.b16 %v768
          %v1564 = vunpack.c.l.b16 %v769
          %v1565 = vunpack.c.h.b16 %v769
          %v1566 = vunpack.c.l.b16 %v770
          %v1567 = vunpack.c.h.b16 %v770
          %v1568 = vunpack.c.l.b16 %v771
          %v1569 = vunpack.c.h.b16 %v771
          %v1570 = vunpack.c.l.b16 %v772
          %v1571 = vunpack.c.h.b16 %v772
          %v1572 = vunpack.c.l.b16 %v773
          %v1573 = vunpack.c.h.b16 %v773
          %v1574 = vunpack.c.l.b16 %v774
          %v1575 = vunpack.c.h.b16 %v774
          %v1576 = vunpack.c.l.b16 %v775
          %v1577 = vunpack.c.h.b16 %v775
          %v1578 = vunpack.c.l.b16 %v776
          %v1579 = vunpack.c.h.b16 %v776
          %v1580 = vunpack.c.l.b16 %v777
          %v1581 = vunpack.c.h.b16 %v777
          %v1582 = vpack.c.b16 %v1086, %v1070
          %v1583 = vpack.c.b16 %v1087, %v1071
          %v1584 = vpack.c.b16 %v1088, %v1072
          %v1585 = vpack.c.b16 %v1089, %v1073
          %v1586 = vpack.c.b16 %v1090, %v1074
          %v1587 = vpack.c.b16 %v1091, %v1075
          %v1588 = vpack.c.b16 %v1092, %v1076
          %v1589 = vpack.c.b16 %v1093, %v1077
          %v1590 = vpack.c.b16 %v1094, %v1078
          %v1591 = vpack.c.b16 %v1095, %v1079
          %v1592 = vpack.c.b16 %v1096, %v1080
          %v1593 = vpack.c.b16 %v1097, %v1081
          %v1594 = vpack.c.b16 %v1098, %v1082
          %v1595 = vpack.c.b16 %v1099, %v1083
          %v1596 = vpack.c.b16 %v1100, %v1084
          %v1597 = vpack.c.b16 %v1101, %v1085
          %v1598 = vpack.c.b16 %v1118, %v1102
          %v1599 = vpack.c.b16 %v1119, %v1103
          %v1600 = vpack.c.b16 %v1120, %v1104
          %v1601 = vpack.c.b16 %v1121, %v1105
          %v1602 = vpack.c.b16 %v1122, %v1106
          %v1603 = vpack.c.b16 %v1123, %v1107
          %v1604 = vpack.c.b16 %v1124, %v1108
          %v1605 = vpack.c.b16 %v1125, %v1109
          %v1606 = vpack.c.b16 %v1126, %v1110
          %v1607 = vpack.c.b16 %v1127, %v1111
          %v1608 = vpack.c.b16 %v1128, %v1112
          %v1609 = vpack.c.b16 %v1129, %v1113
          %v1610 = vpack.c.b16 %v1130, %v1114
          %v1611 = vpack.c.b16 %v1131, %v1115
          %v1612 = vpack.c.b16 %v1132, %v1116
          %v1613 = vpack.c.b16 %v1133, %v1117
          %v1614 = vpack.c.b16 %v1150, %v1134
          %v1615 = vpack.c.b16 %v1151, %v1135
          %v1616 = vpack.c.b16 %v1152, %v1136
          %v1617 = vpack.c.b16 %v1153, %v1137
          %v1618 = vpack.c.b16 %v1154, %v1138
          %v1619 = vpack.c.b16 %v1155, %v1139
          %v1620 = vpack.c.b16 %v1156, %v1140
          %v1621 = vpack.c.b16 %v1157, %v1141
          %v1622 = vpack.c.b16 %v1158, %v1142
          %v1623 = vpack.c.b16 %v1159, %v1143
          %v1624 = vpack.c.b16 %v1160, %v1144
          %v1625 = vpack.c.b16 %v1161, %v1145
          %v1626 = vpack.c.b16 %v1162, %v1146
          %v1627 = vpack.c.b16 %v1163, %v1147
          %v1628 = vpack.c.b16 %v1164, %v1148
          %v1629 = vpack.c.b16 %v1165, %v1149
          %v1630 = vpack.c.b16 %v1182, %v1166
          %v1631 = vpack.c.b16 %v1183, %v1167
          %v1632 = vpack.c.b16 %v1184, %v1168
          %v1633 = vpack.c.b16 %v1185, %v1169
          %v1634 = vpack.c.b16 %v1186, %v1170
          %v1635 = vpack.c.b16 %v1187, %v1171
          %v1636 = vpack.c.b16 %v1188, %v1172
          %v1637 = vpack.c.b16 %v1189, %v1173
          %v1638 = vpack.c.b16 %v1190, %v1174
          %v1639 = vpack.c.b16 %v1191, %v1175
          %v1640 = vpack.c.b16 %v1192, %v1176
          %v1641 = vpack.c.b16 %v1193, %v1177
          %v1642 = vpack.c.b16 %v1194, %v1178
          %v1643 = vpack.c.b16 %v1195, %v1179
          %v1644 = vpack.c.b16 %v1196, %v1180
          %v1645 = vpack.c.b16 %v1197, %v1181
          %v1646 = vpack.c.b16 %v1214, %v1198
          %v1647 = vpack.c.b16 %v1215, %v1199
          %v1648 = vpack.c.b16 %v1216, %v1200
          %v1649 = vpack.c.b16 %v1217, %v1201
          %v1650 = vpack.c.b16 %v1218, %v1202
          %v1651 = vpack.c.b16 %v1219, %v1203
          %v1652 = vpack.c.b16 %v1220, %v1204
          %v1653 = vpack.c.b16 %v1221, %v1205
          %v1654 = vpack.c.b16 %v1222, %v1206
          %v1655 = vpack.c.b16 %v1223, %v1207
          %v1656 = vpack.c.b16 %v1224, %v1208
          %v1657 = vpack.c.b16 %v1225, %v1209
          %v1658 = vpack.c.b16 %v1226, %v1210
          %v1659 = vpack.c.b16 %v1227, %v1211
          %v1660 = vpack.c.b16 %v1228, %v1212
          %v1661 = vpack.c.b16 %v1229, %v1213
          %v1662 = vpack.c.b16 %v1246, %v1230
          %v1663 = vpack.c.b16 %v1247, %v1231
          %v1664 = vpack.c.b16 %v1248, %v1232
          %v1665 = vpack.c.b16 %v1249, %v1233
          %v1666 = vpack.c.b16 %v1250, %v1234
          %v1667 = vpack.c.b16 %v1251, %v1235
          %v1668 = vpack.c.b16 %v1252, %v1236
          %v1669 = vpack.c.b16 %v1253, %v1237
          %v1670 = vpack.c.b16 %v1254, %v1238
          %v1671 = vpack.c.b16 %v1255, %v1239
          %v1672 = vpack.c.b16 %v1256, %v1240
          %v1673 = vpack.c.b16 %v1257, %v1241
          %v1674 = vpack.c.b16 %v1258, %v1242
          %v1675 = vpack.c.b16 %v1259, %v1243
          %v1676 = vpack.c.b16 %v1260, %v1244
          %v1677 = vpack.c.b16 %v1261, %v1245
          %v1678 = vpack.c.b16 %v1278, %v1262
          %v1679 = vpack.c.b16 %v1279, %v1263
          %v1680 = vpack.c.b16 %v1280, %v1264
          %v1681 = vpack.c.b16 %v1281, %v1265
          %v1682 = vpack.c.b16 %v1282, %v1266
          %v1683 = vpack.c.b16 %v1283, %v1267
          %v1684 = vpack.c.b16 %v1284, %v1268
          %v1685 = vpack.c.b16 %v1285, %v1269
          %v1686 = vpack.c.b16 %v1286, %v1270
          %v1687 = vpack.c.b16 %v1287, %v1271
          %v1688 = vpack.c.b16 %v1288, %v1272
          %v1689 = vpack.c.b16 %v1289, %v1273
          %v1690 = vpack.c.b16 %v1290, %v1274
          %v1691 = vpack.c.b16 %v1291, %v1275
          %v1692 = vpack.c.b16 %v1292, %v1276
          %v1693 = vpack.c.b16 %v1293, %v1277
          %v1694 = vpack.c.b16 %v1310, %v1294
          %v1695 = vpack.c.b16 %v1311, %v1295
          %v1696 = vpack.c.b16 %v1312, %v1296
          %v1697 = vpack.c.b16 %v1313, %v1297
          %v1698 = vpack.c.b16 %v1314, %v1298
          %v1699 = vpack.c.b16 %v1315, %v1299
          %v1700 = vpack.c.b16 %v1316, %v1300
          %v1701 = vpack.c.b16 %v1317, %v1301
          %v1702 = vpack.c.b16 %v1318, %v1302
          %v1703 = vpack.c.b16 %v1319, %v1303
          %v1704 = vpack.c.b16 %v1320, %v1304
          %v1705 = vpack.c.b16 %v1321, %v1305
          %v1706 = vpack.c.b16 %v1322, %v1306
          %v1707 = vpack.c.b16 %v1323, %v1307
          %v1708 = vpack.c.b16 %v1324, %v1308
          %v1709 = vpack.c.b16 %v1325, %v1309
          %v1710 = vpack.c.b16 %v1342, %v1326
          %v1711 = vpack.c.b16 %v1343, %v1327
          %v1712 = vpack.c.b16 %v1344, %v1328
          %v1713 = vpack.c.b16 %v1345, %v1329
          %v1714 = vpack.c.b16 %v1346, %v1330
          %v1715 = vpack.c.b16 %v1347, %v1331
          %v1716 = vpack.c.b16 %v1348, %v1332
          %v1717 = vpack.c.b16 %v1349, %v1333
          %v1718 = vpack.c.b16 %v1350, %v1334
          %v1719 = vpack.c.b16 %v1351, %v1335
          %v1720 = vpack.c.b16 %v1352, %v1336
          %v1721 = vpack.c.b16 %v1353, %v1337
          %v1722 = vpack.c.b16 %v1354, %v1338
          %v1723 = vpack.c.b16 %v1355, %v1339
          %v1724 = vpack.c.b16 %v1356, %v1340
          %v1725 = vpack.c.b16 %v1357, %v1341
          %v1726 = vpack.c.b16 %v1374, %v1358
          %v1727 = vpack.c.b16 %v1375, %v1359
          %v1728 = vpack.c.b16 %v1376, %v1360
          %v1729 = vpack.c.b16 %v1377, %v1361
          %v1730 = vpack.c.b16 %v1378, %v1362
          %v1731 = vpack.c.b16 %v1379, %v1363
          %v1732 = vpack.c.b16 %v1380, %v1364
          %v1733 = vpack.c.b16 %v1381, %v1365
          %v1734 = vpack.c.b16 %v1382, %v1366
          %v1735 = vpack.c.b16 %v1383, %v1367
          %v1736 = vpack.c.b16 %v1384, %v1368
          %v1737 = vpack.c.b16 %v1385, %v1369
          %v1738 = vpack.c.b16 %v1386, %v1370
          %v1739 = vpack.c.b16 %v1387, %v1371
          %v1740 = vpack.c.b16 %v1388, %v1372
          %v1741 = vpack.c.b16 %v1389, %v1373
          %v1742 = vpack.c.b16 %v1406, %v1390
          %v1743 = vpack.c.b16 %v1407, %v1391
          %v1744 = vpack.c.b16 %v1408, %v1392
          %v1745 = vpack.c.b16 %v1409, %v1393
          %v1746 = vpack.c.b16 %v1410, %v1394
          %v1747 = vpack.c.b16 %v1411, %v1395
          %v1748 = vpack.c.b16 %v1412, %v1396
          %v1749 = vpack.c.b16 %v1413, %v1397
          %v1750 = vpack.c.b16 %v1414, %v1398
          %v1751 = vpack.c.b16 %v1415, %v1399
          %v1752 = vpack.c.b16 %v1416, %v1400
          %v1753 = vpack.c.b16 %v1417, %v1401
          %v1754 = vpack.c.b16 %v1418, %v1402
          %v1755 = vpack.c.b16 %v1419, %v1403
          %v1756 = vpack.c.b16 %v1420, %v1404
          %v1757 = vpack.c.b16 %v1421, %v1405
          %v1758 = vpack.c.b16 %v1438, %v1422
          %v1759 = vpack.c.b16 %v1439, %v1423
          %v1760 = vpack.c.b16 %v1440, %v1424
          %v1761 = vpack.c.b16 %v1441, %v1425
          %v1762 = vpack.c.b16 %v1442, %v1426
          %v1763 = vpack.c.b16 %v1443, %v1427
          %v1764 = vpack.c.b16 %v1444, %v1428
          %v1765 = vpack.c.b16 %v1445, %v1429
          %v1766 = vpack.c.b16 %v1446, %v1430
          %v1767 = vpack.c.b16 %v1447, %v1431
          %v1768 = vpack.c.b16 %v1448, %v1432
          %v1769 = vpack.c.b16 %v1449, %v1433
          %v1770 = vpack.c.b16 %v1450, %v1434
          %v1771 = vpack.c.b16 %v1451, %v1435
          %v1772 = vpack.c.b16 %v1452, %v1436
          %v1773 = vpack.c.b16 %v1453, %v1437
          %v1774 = vpack.c.b16 %v1470, %v1454
          %v1775 = vpack.c.b16 %v1471, %v1455
          %v1776 = vpack.c.b16 %v1472, %v1456
          %v1777 = vpack.c.b16 %v1473, %v1457
          %v1778 = vpack.c.b16 %v1474, %v1458
          %v1779 = vpack.c.b16 %v1475, %v1459
          %v1780 = vpack.c.b16 %v1476, %v1460
          %v1781 = vpack.c.b16 %v1477, %v1461
          %v1782 = vpack.c.b16 %v1478, %v1462
          %v1783 = vpack.c.b16 %v1479, %v1463
          %v1784 = vpack.c.b16 %v1480, %v1464
          %v1785 = vpack.c.b16 %v1481, %v1465
          %v1786 = vpack.c.b16 %v1482, %v1466
          %v1787 = vpack.c.b16 %v1483, %v1467
          %v1788 = vpack.c.b16 %v1484, %v1468
          %v1789 = vpack.c.b16 %v1485, %v1469
          %v1790 = vpack.c.b16 %v1502, %v1486
          %v1791 = vpack.c.b16 %v1503, %v1487
          %v1792 = vpack.c.b16 %v1504, %v1488
          %v1793 = vpack.c.b16 %v1505, %v1489
          %v1794 = vpack.c.b16 %v1506, %v1490
          %v1795 = vpack.c.b16 %v1507, %v1491
          %v1796 = vpack.c.b16 %v1508, %v1492
          %v1797 = vpack.c.b16 %v1509, %v1493
          %v1798 = vpack.c.b16 %v1510, %v1494
          %v1799 = vpack.c.b16 %v1511, %v1495
          %v1800 = vpack.c.b16 %v1512, %v1496
          %v1801 = vpack.c.b16 %v1513, %v1497
          %v1802 = vpack.c.b16 %v1514, %v1498
          %v1803 = vpack.c.b16 %v1515, %v1499
          %v1804 = vpack.c.b16 %v1516, %v1500
          %v1805 = vpack.c.b16 %v1517, %v1501
          %v1806 = vpack.c.b16 %v1534, %v1518
          %v1807 = vpack.c.b16 %v1535, %v1519
          %v1808 = vpack.c.b16 %v1536, %v1520
          %v1809 = vpack.c.b16 %v1537, %v1521
          %v1810 = vpack.c.b16 %v1538, %v1522
          %v1811 = vpack.c.b16 %v1539, %v1523
          %v1812 = vpack.c.b16 %v1540, %v1524
          %v1813 = vpack.c.b16 %v1541, %v1525
          %v1814 = vpack.c.b16 %v1542, %v1526
          %v1815 = vpack.c.b16 %v1543, %v1527
          %v1816 = vpack.c.b16 %v1544, %v1528
          %v1817 = vpack.c.b16 %v1545, %v1529
          %v1818 = vpack.c.b16 %v1546, %v1530
          %v1819 = vpack.c.b16 %v1547, %v1531
          %v1820 = vpack.c.b16 %v1548, %v1532
          %v1821 = vpack.c.b16 %v1549, %v1533
          %v1822 = vpack.c.b16 %v1566, %v1550
          %v1823 = vpack.c.b16 %v1567, %v1551
          %v1824 = vpack.c.b16 %v1568, %v1552
          %v1825 = vpack.c.b16 %v1569, %v1553
          %v1826 = vpack.c.b16 %v1570, %v1554
          %v1827 = vpack.c.b16 %v1571, %v1555
          %v1828 = vpack.c.b16 %v1572, %v1556
          %v1829 = vpack.c.b16 %v1573, %v1557
          %v1830 = vpack.c.b16 %v1574, %v1558
          %v1831 = vpack.c.b16 %v1575, %v1559
          %v1832 = vpack.c.b16 %v1576, %v1560
          %v1833 = vpack.c.b16 %v1577, %v1561
          %v1834 = vpack.c.b16 %v1578, %v1562
          %v1835 = vpack.c.b16 %v1579, %v1563
          %v1836 = vpack.c.b16 %v1580, %v1564
          %v1837 = vpack.c.b16 %v1581, %v1565
          %2094 = vmatpush.bf16.msra.mxu0 %v1694
          %2095 = vmatpush.bf16.msra.mxu0 %v1678
          %2096 = vmatpush.bf16.msra.mxu0 %v1662
          %2097 = vmatpush.bf16.msra.mxu0 %v1646
          %2098 = vmatpush.bf16.msra.mxu0 %v1630
          %2099 = vmatpush.bf16.msra.mxu0 %v1614
          %2100 = vmatpush.bf16.msra.mxu0 %v1598
          %2101 = vmatpush.bf16.msra.mxu0 %v1582
          %2102 = vmatmul.bf16.gmra.mxu0 %v520
          %v2103 = vpop.f32.mrf.mxu0
          %v2104 = vadd.f32 %v782, %v2103
          %v2105 = vpop.f32.mrf.mxu0
          %v2106 = vadd.f32 %v782, %v2105
          %2107 = vdwg.mxu0
          %2108 = vmatpush.bf16.msra.mxu0 %v1822
          %2109 = vmatpush.bf16.msra.mxu0 %v1806
          %2110 = vmatpush.bf16.msra.mxu0 %v1790
          %2111 = vmatpush.bf16.msra.mxu0 %v1774
          %2112 = vmatpush.bf16.msra.mxu0 %v1758
          %2113 = vmatpush.bf16.msra.mxu0 %v1742
          %2114 = vmatpush.bf16.msra.mxu0 %v1726
          %2115 = vmatpush.bf16.msra.mxu0 %v1710
          %2116 = vmatmul.bf16.gmra.mxu0 %v521
          %v2117 = vpop.f32.mrf.mxu0
          %v2118 = vadd.f32 %v2104, %v2117
          %v2119 = vpop.f32.mrf.mxu0
          %v2120 = vadd.f32 %v2106, %v2119
          %2121 = vdwg.mxu0
          %2122 = vmatpush.bf16.msra.mxu0 %v1695
          %2123 = vmatpush.bf16.msra.mxu0 %v1679
          %2124 = vmatpush.bf16.msra.mxu0 %v1663
          %2125 = vmatpush.bf16.msra.mxu0 %v1647
          %2126 = vmatpush.bf16.msra.mxu0 %v1631
          %2127 = vmatpush.bf16.msra.mxu0 %v1615
          %2128 = vmatpush.bf16.msra.mxu0 %v1599
          %2129 = vmatpush.bf16.msra.mxu0 %v1583
          %2130 = vmatmul.bf16.gmra.mxu0 %v520
          %v2131 = vpop.f32.mrf.mxu0
          %v2132 = vadd.f32 %v783, %v2131
          %v2133 = vpop.f32.mrf.mxu0
          %v2134 = vadd.f32 %v783, %v2133
          %2135 = vdwg.mxu0
          %2136 = vmatpush.bf16.msra.mxu0 %v1823
          %2137 = vmatpush.bf16.msra.mxu0 %v1807
          %2138 = vmatpush.bf16.msra.mxu0 %v1791
          %2139 = vmatpush.bf16.msra.mxu0 %v1775
          %2140 = vmatpush.bf16.msra.mxu0 %v1759
          %2141 = vmatpush.bf16.msra.mxu0 %v1743
          %2142 = vmatpush.bf16.msra.mxu0 %v1727
          %2143 = vmatpush.bf16.msra.mxu0 %v1711
          %2144 = vmatmul.bf16.gmra.mxu0 %v521
          %v2145 = vpop.f32.mrf.mxu0
          %v2146 = vadd.f32 %v2132, %v2145
          %v2147 = vpop.f32.mrf.mxu0
          %v2148 = vadd.f32 %v2134, %v2147
          %2149 = vdwg.mxu0
          %2150 = vmatpush.bf16.msra.mxu0 %v1696
          %2151 = vmatpush.bf16.msra.mxu0 %v1680
          %2152 = vmatpush.bf16.msra.mxu0 %v1664
          %2153 = vmatpush.bf16.msra.mxu0 %v1648
          %2154 = vmatpush.bf16.msra.mxu0 %v1632
          %2155 = vmatpush.bf16.msra.mxu0 %v1616
          %2156 = vmatpush.bf16.msra.mxu0 %v1600
          %2157 = vmatpush.bf16.msra.mxu0 %v1584
          %2158 = vmatmul.bf16.gmra.mxu0 %v520
          %v2159 = vpop.f32.mrf.mxu0
          %v2160 = vadd.f32 %v784, %v2159
          %v2161 = vpop.f32.mrf.mxu0
          %v2162 = vadd.f32 %v784, %v2161
          %2163 = vdwg.mxu0
          %2164 = vmatpush.bf16.msra.mxu0 %v1824
          %2165 = vmatpush.bf16.msra.mxu0 %v1808
          %2166 = vmatpush.bf16.msra.mxu0 %v1792
          %2167 = vmatpush.bf16.msra.mxu0 %v1776
          %2168 = vmatpush.bf16.msra.mxu0 %v1760
          %2169 = vmatpush.bf16.msra.mxu0 %v1744
          %2170 = vmatpush.bf16.msra.mxu0 %v1728
          %2171 = vmatpush.bf16.msra.mxu0 %v1712
          %2172 = vmatmul.bf16.gmra.mxu0 %v521
          %v2173 = vpop.f32.mrf.mxu0
          %v2174 = vadd.f32 %v2160, %v2173
          %v2175 = vpop.f32.mrf.mxu0
          %v2176 = vadd.f32 %v2162, %v2175
          %2177 = vdwg.mxu0
          %2178 = vmatpush.bf16.msra.mxu0 %v1697
          %2179 = vmatpush.bf16.msra.mxu0 %v1681
          %2180 = vmatpush.bf16.msra.mxu0 %v1665
          %2181 = vmatpush.bf16.msra.mxu0 %v1649
          %2182 = vmatpush.bf16.msra.mxu0 %v1633
          %2183 = vmatpush.bf16.msra.mxu0 %v1617
          %2184 = vmatpush.bf16.msra.mxu0 %v1601
          %2185 = vmatpush.bf16.msra.mxu0 %v1585
          %2186 = vmatmul.bf16.gmra.mxu0 %v520
          %v2187 = vpop.f32.mrf.mxu0
          %v2188 = vadd.f32 %v785, %v2187
          %v2189 = vpop.f32.mrf.mxu0
          %v2190 = vadd.f32 %v785, %v2189
          %2191 = vdwg.mxu0
          %2192 = vmatpush.bf16.msra.mxu0 %v1825
          %2193 = vmatpush.bf16.msra.mxu0 %v1809
          %2194 = vmatpush.bf16.msra.mxu0 %v1793
          %2195 = vmatpush.bf16.msra.mxu0 %v1777
          %2196 = vmatpush.bf16.msra.mxu0 %v1761
          %2197 = vmatpush.bf16.msra.mxu0 %v1745
          %2198 = vmatpush.bf16.msra.mxu0 %v1729
          %2199 = vmatpush.bf16.msra.mxu0 %v1713
          %2200 = vmatmul.bf16.gmra.mxu0 %v521
          %v2201 = vpop.f32.mrf.mxu0
          %v2202 = vadd.f32 %v2188, %v2201
          %v2203 = vpop.f32.mrf.mxu0
          %v2204 = vadd.f32 %v2190, %v2203
          %2205 = vdwg.mxu0
          %2206 = vmatpush.bf16.msra.mxu0 %v1698
          %2207 = vmatpush.bf16.msra.mxu0 %v1682
          %2208 = vmatpush.bf16.msra.mxu0 %v1666
          %2209 = vmatpush.bf16.msra.mxu0 %v1650
          %2210 = vmatpush.bf16.msra.mxu0 %v1634
          %2211 = vmatpush.bf16.msra.mxu0 %v1618
          %2212 = vmatpush.bf16.msra.mxu0 %v1602
          %2213 = vmatpush.bf16.msra.mxu0 %v1586
          %2214 = vmatmul.bf16.gmra.mxu0 %v520
          %v2215 = vpop.f32.mrf.mxu0
          %v2216 = vadd.f32 %v786, %v2215
          %v2217 = vpop.f32.mrf.mxu0
          %v2218 = vadd.f32 %v786, %v2217
          %2219 = vdwg.mxu0
          %2220 = vmatpush.bf16.msra.mxu0 %v1826
          %2221 = vmatpush.bf16.msra.mxu0 %v1810
          %2222 = vmatpush.bf16.msra.mxu0 %v1794
          %2223 = vmatpush.bf16.msra.mxu0 %v1778
          %2224 = vmatpush.bf16.msra.mxu0 %v1762
          %2225 = vmatpush.bf16.msra.mxu0 %v1746
          %2226 = vmatpush.bf16.msra.mxu0 %v1730
          %2227 = vmatpush.bf16.msra.mxu0 %v1714
          %2228 = vmatmul.bf16.gmra.mxu0 %v521
          %v2229 = vpop.f32.mrf.mxu0
          %v2230 = vadd.f32 %v2216, %v2229
          %v2231 = vpop.f32.mrf.mxu0
          %v2232 = vadd.f32 %v2218, %v2231
          %2233 = vdwg.mxu0
          %2234 = vmatpush.bf16.msra.mxu0 %v1699
          %2235 = vmatpush.bf16.msra.mxu0 %v1683
          %2236 = vmatpush.bf16.msra.mxu0 %v1667
          %2237 = vmatpush.bf16.msra.mxu0 %v1651
          %2238 = vmatpush.bf16.msra.mxu0 %v1635
          %2239 = vmatpush.bf16.msra.mxu0 %v1619
          %2240 = vmatpush.bf16.msra.mxu0 %v1603
          %2241 = vmatpush.bf16.msra.mxu0 %v1587
          %2242 = vmatmul.bf16.gmra.mxu0 %v520
          %v2243 = vpop.f32.mrf.mxu0
          %v2244 = vadd.f32 %v787, %v2243
          %v2245 = vpop.f32.mrf.mxu0
          %v2246 = vadd.f32 %v787, %v2245
          %2247 = vdwg.mxu0
          %2248 = vmatpush.bf16.msra.mxu0 %v1827
          %2249 = vmatpush.bf16.msra.mxu0 %v1811
          %2250 = vmatpush.bf16.msra.mxu0 %v1795
          %2251 = vmatpush.bf16.msra.mxu0 %v1779
          %2252 = vmatpush.bf16.msra.mxu0 %v1763
          %2253 = vmatpush.bf16.msra.mxu0 %v1747
          %2254 = vmatpush.bf16.msra.mxu0 %v1731
          %2255 = vmatpush.bf16.msra.mxu0 %v1715
          %2256 = vmatmul.bf16.gmra.mxu0 %v521
          %v2257 = vpop.f32.mrf.mxu0
          %v2258 = vadd.f32 %v2244, %v2257
          %v2259 = vpop.f32.mrf.mxu0
          %v2260 = vadd.f32 %v2246, %v2259
          %2261 = vdwg.mxu0
          %2262 = vmatpush.bf16.msra.mxu0 %v1700
          %2263 = vmatpush.bf16.msra.mxu0 %v1684
          %2264 = vmatpush.bf16.msra.mxu0 %v1668
          %2265 = vmatpush.bf16.msra.mxu0 %v1652
          %2266 = vmatpush.bf16.msra.mxu0 %v1636
          %2267 = vmatpush.bf16.msra.mxu0 %v1620
          %2268 = vmatpush.bf16.msra.mxu0 %v1604
          %2269 = vmatpush.bf16.msra.mxu0 %v1588
          %2270 = vmatmul.bf16.gmra.mxu0 %v520
          %v2271 = vpop.f32.mrf.mxu0
          %v2272 = vadd.f32 %v788, %v2271
          %v2273 = vpop.f32.mrf.mxu0
          %v2274 = vadd.f32 %v788, %v2273
          %2275 = vdwg.mxu0
          %2276 = vmatpush.bf16.msra.mxu0 %v1828
          %2277 = vmatpush.bf16.msra.mxu0 %v1812
          %2278 = vmatpush.bf16.msra.mxu0 %v1796
          %2279 = vmatpush.bf16.msra.mxu0 %v1780
          %2280 = vmatpush.bf16.msra.mxu0 %v1764
          %2281 = vmatpush.bf16.msra.mxu0 %v1748
          %2282 = vmatpush.bf16.msra.mxu0 %v1732
          %2283 = vmatpush.bf16.msra.mxu0 %v1716
          %2284 = vmatmul.bf16.gmra.mxu0 %v521
          %v2285 = vpop.f32.mrf.mxu0
          %v2286 = vadd.f32 %v2272, %v2285
          %v2287 = vpop.f32.mrf.mxu0
          %v2288 = vadd.f32 %v2274, %v2287
          %2289 = vdwg.mxu0
          %2290 = vmatpush.bf16.msra.mxu0 %v1701
          %2291 = vmatpush.bf16.msra.mxu0 %v1685
          %2292 = vmatpush.bf16.msra.mxu0 %v1669
          %2293 = vmatpush.bf16.msra.mxu0 %v1653
          %2294 = vmatpush.bf16.msra.mxu0 %v1637
          %2295 = vmatpush.bf16.msra.mxu0 %v1621
          %2296 = vmatpush.bf16.msra.mxu0 %v1605
          %2297 = vmatpush.bf16.msra.mxu0 %v1589
          %2298 = vmatmul.bf16.gmra.mxu0 %v520
          %v2299 = vpop.f32.mrf.mxu0
          %v2300 = vadd.f32 %v789, %v2299
          %v2301 = vpop.f32.mrf.mxu0
          %v2302 = vadd.f32 %v789, %v2301
          %2303 = vdwg.mxu0
          %2304 = vmatpush.bf16.msra.mxu0 %v1829
          %2305 = vmatpush.bf16.msra.mxu0 %v1813
          %2306 = vmatpush.bf16.msra.mxu0 %v1797
          %2307 = vmatpush.bf16.msra.mxu0 %v1781
          %2308 = vmatpush.bf16.msra.mxu0 %v1765
          %2309 = vmatpush.bf16.msra.mxu0 %v1749
          %2310 = vmatpush.bf16.msra.mxu0 %v1733
          %2311 = vmatpush.bf16.msra.mxu0 %v1717
          %2312 = vmatmul.bf16.gmra.mxu0 %v521
          %v2313 = vpop.f32.mrf.mxu0
          %v2314 = vadd.f32 %v2300, %v2313
          %v2315 = vpop.f32.mrf.mxu0
          %v2316 = vadd.f32 %v2302, %v2315
          %2317 = vdwg.mxu0
          %2318 = vmatpush.bf16.msra.mxu0 %v1702
          %2319 = vmatpush.bf16.msra.mxu0 %v1686
          %2320 = vmatpush.bf16.msra.mxu0 %v1670
          %2321 = vmatpush.bf16.msra.mxu0 %v1654
          %2322 = vmatpush.bf16.msra.mxu0 %v1638
          %2323 = vmatpush.bf16.msra.mxu0 %v1622
          %2324 = vmatpush.bf16.msra.mxu0 %v1606
          %2325 = vmatpush.bf16.msra.mxu0 %v1590
          %2326 = vmatmul.bf16.gmra.mxu0 %v520
          %v2327 = vpop.f32.mrf.mxu0
          %v2328 = vadd.f32 %v790, %v2327
          %v2329 = vpop.f32.mrf.mxu0
          %v2330 = vadd.f32 %v790, %v2329
          %2331 = vdwg.mxu0
          %2332 = vmatpush.bf16.msra.mxu0 %v1830
          %2333 = vmatpush.bf16.msra.mxu0 %v1814
          %2334 = vmatpush.bf16.msra.mxu0 %v1798
          %2335 = vmatpush.bf16.msra.mxu0 %v1782
          %2336 = vmatpush.bf16.msra.mxu0 %v1766
          %2337 = vmatpush.bf16.msra.mxu0 %v1750
          %2338 = vmatpush.bf16.msra.mxu0 %v1734
          %2339 = vmatpush.bf16.msra.mxu0 %v1718
          %2340 = vmatmul.bf16.gmra.mxu0 %v521
          %v2341 = vpop.f32.mrf.mxu0
          %v2342 = vadd.f32 %v2328, %v2341
          %v2343 = vpop.f32.mrf.mxu0
          %v2344 = vadd.f32 %v2330, %v2343
          %2345 = vdwg.mxu0
          %2346 = vmatpush.bf16.msra.mxu0 %v1703
          %2347 = vmatpush.bf16.msra.mxu0 %v1687
          %2348 = vmatpush.bf16.msra.mxu0 %v1671
          %2349 = vmatpush.bf16.msra.mxu0 %v1655
          %2350 = vmatpush.bf16.msra.mxu0 %v1639
          %2351 = vmatpush.bf16.msra.mxu0 %v1623
          %2352 = vmatpush.bf16.msra.mxu0 %v1607
          %2353 = vmatpush.bf16.msra.mxu0 %v1591
          %2354 = vmatmul.bf16.gmra.mxu0 %v520
          %v2355 = vpop.f32.mrf.mxu0
          %v2356 = vadd.f32 %v791, %v2355
          %v2357 = vpop.f32.mrf.mxu0
          %v2358 = vadd.f32 %v791, %v2357
          %2359 = vdwg.mxu0
          %2360 = vmatpush.bf16.msra.mxu0 %v1831
          %2361 = vmatpush.bf16.msra.mxu0 %v1815
          %2362 = vmatpush.bf16.msra.mxu0 %v1799
          %2363 = vmatpush.bf16.msra.mxu0 %v1783
          %2364 = vmatpush.bf16.msra.mxu0 %v1767
          %2365 = vmatpush.bf16.msra.mxu0 %v1751
          %2366 = vmatpush.bf16.msra.mxu0 %v1735
          %2367 = vmatpush.bf16.msra.mxu0 %v1719
          %2368 = vmatmul.bf16.gmra.mxu0 %v521
          %v2369 = vpop.f32.mrf.mxu0
          %v2370 = vadd.f32 %v2356, %v2369
          %v2371 = vpop.f32.mrf.mxu0
          %v2372 = vadd.f32 %v2358, %v2371
          %2373 = vdwg.mxu0
          %2374 = vmatpush.bf16.msra.mxu0 %v1704
          %2375 = vmatpush.bf16.msra.mxu0 %v1688
          %2376 = vmatpush.bf16.msra.mxu0 %v1672
          %2377 = vmatpush.bf16.msra.mxu0 %v1656
          %2378 = vmatpush.bf16.msra.mxu0 %v1640
          %2379 = vmatpush.bf16.msra.mxu0 %v1624
          %2380 = vmatpush.bf16.msra.mxu0 %v1608
          %2381 = vmatpush.bf16.msra.mxu0 %v1592
          %2382 = vmatmul.bf16.gmra.mxu0 %v520
          %v2383 = vpop.f32.mrf.mxu0
          %v2384 = vadd.f32 %v792, %v2383
          %v2385 = vpop.f32.mrf.mxu0
          %v2386 = vadd.f32 %v792, %v2385
          %2387 = vdwg.mxu0
          %2388 = vmatpush.bf16.msra.mxu0 %v1832
          %2389 = vmatpush.bf16.msra.mxu0 %v1816
          %2390 = vmatpush.bf16.msra.mxu0 %v1800
          %2391 = vmatpush.bf16.msra.mxu0 %v1784
          %2392 = vmatpush.bf16.msra.mxu0 %v1768
          %2393 = vmatpush.bf16.msra.mxu0 %v1752
          %2394 = vmatpush.bf16.msra.mxu0 %v1736
          %2395 = vmatpush.bf16.msra.mxu0 %v1720
          %2396 = vmatmul.bf16.gmra.mxu0 %v521
          %v2397 = vpop.f32.mrf.mxu0
          %v2398 = vadd.f32 %v2384, %v2397
          %v2399 = vpop.f32.mrf.mxu0
          %v2400 = vadd.f32 %v2386, %v2399
          %2401 = vdwg.mxu0
          %2402 = vmatpush.bf16.msra.mxu0 %v1705
          %2403 = vmatpush.bf16.msra.mxu0 %v1689
          %2404 = vmatpush.bf16.msra.mxu0 %v1673
          %2405 = vmatpush.bf16.msra.mxu0 %v1657
          %2406 = vmatpush.bf16.msra.mxu0 %v1641
          %2407 = vmatpush.bf16.msra.mxu0 %v1625
          %2408 = vmatpush.bf16.msra.mxu0 %v1609
          %2409 = vmatpush.bf16.msra.mxu0 %v1593
          %2410 = vmatmul.bf16.gmra.mxu0 %v520
          %v2411 = vpop.f32.mrf.mxu0
          %v2412 = vadd.f32 %v793, %v2411
          %v2413 = vpop.f32.mrf.mxu0
          %v2414 = vadd.f32 %v793, %v2413
          %2415 = vdwg.mxu0
          %2416 = vmatpush.bf16.msra.mxu0 %v1833
          %2417 = vmatpush.bf16.msra.mxu0 %v1817
          %2418 = vmatpush.bf16.msra.mxu0 %v1801
          %2419 = vmatpush.bf16.msra.mxu0 %v1785
          %2420 = vmatpush.bf16.msra.mxu0 %v1769
          %2421 = vmatpush.bf16.msra.mxu0 %v1753
          %2422 = vmatpush.bf16.msra.mxu0 %v1737
          %2423 = vmatpush.bf16.msra.mxu0 %v1721
          %2424 = vmatmul.bf16.gmra.mxu0 %v521
          %v2425 = vpop.f32.mrf.mxu0
          %v2426 = vadd.f32 %v2412, %v2425
          %v2427 = vpop.f32.mrf.mxu0
          %v2428 = vadd.f32 %v2414, %v2427
          %2429 = vdwg.mxu0
          %2430 = vmatpush.bf16.msra.mxu0 %v1706
          %2431 = vmatpush.bf16.msra.mxu0 %v1690
          %2432 = vmatpush.bf16.msra.mxu0 %v1674
          %2433 = vmatpush.bf16.msra.mxu0 %v1658
          %2434 = vmatpush.bf16.msra.mxu0 %v1642
          %2435 = vmatpush.bf16.msra.mxu0 %v1626
          %2436 = vmatpush.bf16.msra.mxu0 %v1610
          %2437 = vmatpush.bf16.msra.mxu0 %v1594
          %2438 = vmatmul.bf16.gmra.mxu0 %v520
          %v2439 = vpop.f32.mrf.mxu0
          %v2440 = vadd.f32 %v794, %v2439
          %v2441 = vpop.f32.mrf.mxu0
          %v2442 = vadd.f32 %v794, %v2441
          %2443 = vdwg.mxu0
          %2444 = vmatpush.bf16.msra.mxu0 %v1834
          %2445 = vmatpush.bf16.msra.mxu0 %v1818
          %2446 = vmatpush.bf16.msra.mxu0 %v1802
          %2447 = vmatpush.bf16.msra.mxu0 %v1786
          %2448 = vmatpush.bf16.msra.mxu0 %v1770
          %2449 = vmatpush.bf16.msra.mxu0 %v1754
          %2450 = vmatpush.bf16.msra.mxu0 %v1738
          %2451 = vmatpush.bf16.msra.mxu0 %v1722
          %2452 = vmatmul.bf16.gmra.mxu0 %v521
          %v2453 = vpop.f32.mrf.mxu0
          %v2454 = vadd.f32 %v2440, %v2453
          %v2455 = vpop.f32.mrf.mxu0
          %v2456 = vadd.f32 %v2442, %v2455
          %2457 = vdwg.mxu0
          %2458 = vmatpush.bf16.msra.mxu0 %v1707
          %2459 = vmatpush.bf16.msra.mxu0 %v1691
          %2460 = vmatpush.bf16.msra.mxu0 %v1675
          %2461 = vmatpush.bf16.msra.mxu0 %v1659
          %2462 = vmatpush.bf16.msra.mxu0 %v1643
          %2463 = vmatpush.bf16.msra.mxu0 %v1627
          %2464 = vmatpush.bf16.msra.mxu0 %v1611
          %2465 = vmatpush.bf16.msra.mxu0 %v1595
          %2466 = vmatmul.bf16.gmra.mxu0 %v520
          %v2467 = vpop.f32.mrf.mxu0
          %v2468 = vadd.f32 %v795, %v2467
          %v2469 = vpop.f32.mrf.mxu0
          %v2470 = vadd.f32 %v795, %v2469
          %2471 = vdwg.mxu0
          %2472 = vmatpush.bf16.msra.mxu0 %v1835
          %2473 = vmatpush.bf16.msra.mxu0 %v1819
          %2474 = vmatpush.bf16.msra.mxu0 %v1803
          %2475 = vmatpush.bf16.msra.mxu0 %v1787
          %2476 = vmatpush.bf16.msra.mxu0 %v1771
          %2477 = vmatpush.bf16.msra.mxu0 %v1755
          %2478 = vmatpush.bf16.msra.mxu0 %v1739
          %2479 = vmatpush.bf16.msra.mxu0 %v1723
          %2480 = vmatmul.bf16.gmra.mxu0 %v521
          %v2481 = vpop.f32.mrf.mxu0
          %v2482 = vadd.f32 %v2468, %v2481
          %v2483 = vpop.f32.mrf.mxu0
          %v2484 = vadd.f32 %v2470, %v2483
          %2485 = vdwg.mxu0
          %2486 = vmatpush.bf16.msra.mxu0 %v1708
          %2487 = vmatpush.bf16.msra.mxu0 %v1692
          %2488 = vmatpush.bf16.msra.mxu0 %v1676
          %2489 = vmatpush.bf16.msra.mxu0 %v1660
          %2490 = vmatpush.bf16.msra.mxu0 %v1644
          %2491 = vmatpush.bf16.msra.mxu0 %v1628
          %2492 = vmatpush.bf16.msra.mxu0 %v1612
          %2493 = vmatpush.bf16.msra.mxu0 %v1596
          %2494 = vmatmul.bf16.gmra.mxu0 %v520
          %v2495 = vpop.f32.mrf.mxu0
          %v2496 = vadd.f32 %v796, %v2495
          %v2497 = vpop.f32.mrf.mxu0
          %v2498 = vadd.f32 %v796, %v2497
          %2499 = vdwg.mxu0
          %2500 = vmatpush.bf16.msra.mxu0 %v1836
          %2501 = vmatpush.bf16.msra.mxu0 %v1820
          %2502 = vmatpush.bf16.msra.mxu0 %v1804
          %2503 = vmatpush.bf16.msra.mxu0 %v1788
          %2504 = vmatpush.bf16.msra.mxu0 %v1772
          %2505 = vmatpush.bf16.msra.mxu0 %v1756
          %2506 = vmatpush.bf16.msra.mxu0 %v1740
          %2507 = vmatpush.bf16.msra.mxu0 %v1724
          %2508 = vmatmul.bf16.gmra.mxu0 %v521
          %v2509 = vpop.f32.mrf.mxu0
          %v2510 = vadd.f32 %v2496, %v2509
          %v2511 = vpop.f32.mrf.mxu0
          %v2512 = vadd.f32 %v2498, %v2511
          %2513 = vdwg.mxu0
          %2514 = vmatpush.bf16.msra.mxu0 %v1709
          %2515 = vmatpush.bf16.msra.mxu0 %v1693
          %2516 = vmatpush.bf16.msra.mxu0 %v1677
          %2517 = vmatpush.bf16.msra.mxu0 %v1661
          %2518 = vmatpush.bf16.msra.mxu0 %v1645
          %2519 = vmatpush.bf16.msra.mxu0 %v1629
          %2520 = vmatpush.bf16.msra.mxu0 %v1613
          %2521 = vmatpush.bf16.msra.mxu0 %v1597
          %2522 = vmatmul.bf16.gmra.mxu0 %v520
          %v2523 = vpop.f32.mrf.mxu0
          %v2524 = vadd.f32 %v797, %v2523
          %v2525 = vpop.f32.mrf.mxu0
          %v2526 = vadd.f32 %v797, %v2525
          %2527 = vdwg.mxu0
          %2528 = vmatpush.bf16.msra.mxu0 %v1837
          %2529 = vmatpush.bf16.msra.mxu0 %v1821
          %2530 = vmatpush.bf16.msra.mxu0 %v1805
          %2531 = vmatpush.bf16.msra.mxu0 %v1789
          %2532 = vmatpush.bf16.msra.mxu0 %v1773
          %2533 = vmatpush.bf16.msra.mxu0 %v1757
          %2534 = vmatpush.bf16.msra.mxu0 %v1741
          %2535 = vmatpush.bf16.msra.mxu0 %v1725
          %2536 = vmatmul.bf16.gmra.mxu0 %v521
          %v2537 = vpop.f32.mrf.mxu0
          %v2538 = vadd.f32 %v2524, %v2537
          %v2539 = vpop.f32.mrf.mxu0
          %v2540 = vadd.f32 %v2526, %v2539
          %2541 = vdwg.mxu0
          %v2542 = vmax.f32 %v2118, 0.0
          %v2543 = vmax.f32 %v2146, 0.0
          %v2544 = vmax.f32 %v2174, 0.0
          %v2545 = vmax.f32 %v2202, 0.0
          %v2546 = vmax.f32 %v2230, 0.0
          %v2547 = vmax.f32 %v2258, 0.0
          %v2548 = vmax.f32 %v2286, 0.0
          %v2549 = vmax.f32 %v2314, 0.0
          %v2550 = vmax.f32 %v2342, 0.0
          %v2551 = vmax.f32 %v2370, 0.0
          %v2552 = vmax.f32 %v2398, 0.0
          %v2553 = vmax.f32 %v2426, 0.0
          %v2554 = vmax.f32 %v2454, 0.0
          %v2555 = vmax.f32 %v2482, 0.0
          %v2556 = vmax.f32 %v2510, 0.0
          %v2557 = vmax.f32 %v2538, 0.0
          %v2558 = vmax.f32 %v2120, 0.0
          %v2559 = vmax.f32 %v2148, 0.0
          %v2560 = vmax.f32 %v2176, 0.0
          %v2561 = vmax.f32 %v2204, 0.0
          %v2562 = vmax.f32 %v2232, 0.0
          %v2563 = vmax.f32 %v2260, 0.0
          %v2564 = vmax.f32 %v2288, 0.0
          %v2565 = vmax.f32 %v2316, 0.0
          %v2566 = vmax.f32 %v2344, 0.0
          %v2567 = vmax.f32 %v2372, 0.0
          %v2568 = vmax.f32 %v2400, 0.0
          %v2569 = vmax.f32 %v2428, 0.0
          %v2570 = vmax.f32 %v2456, 0.0
          %v2571 = vmax.f32 %v2484, 0.0
          %v2572 = vmax.f32 %v2512, 0.0
          %v2573 = vmax.f32 %v2540, 0.0
          %v2574 = vpack.c.bf16 %v2543, %v2542
          %v2575 = vpack.c.bf16 %v2545, %v2544
          %v2576 = vpack.c.bf16 %v2547, %v2546
          %v2577 = vpack.c.bf16 %v2549, %v2548
          %v2578 = vpack.c.bf16 %v2551, %v2550
          %v2579 = vpack.c.bf16 %v2553, %v2552
          %v2580 = vpack.c.bf16 %v2555, %v2554
          %v2581 = vpack.c.bf16 %v2557, %v2556
          %v2582 = vpack.c.bf16 %v2559, %v2558
          %v2583 = vpack.c.bf16 %v2561, %v2560
          %v2584 = vpack.c.bf16 %v2563, %v2562
          %v2585 = vpack.c.bf16 %v2565, %v2564
          %v2586 = vpack.c.bf16 %v2567, %v2566
          %v2587 = vpack.c.bf16 %v2569, %v2568
          %v2588 = vpack.c.bf16 %v2571, %v2570
          %v2589 = vpack.c.bf16 %v2573, %v2572
          %2590 = vst [vmem:[#allocation2] sm:$0xff] %v2574
          %2591 = vst [vmem:[#allocation2 + $0x8] sm:$0xff] %v2575
          %2592 = vst [vmem:[#allocation2 + $0x10] sm:$0xff] %v2576
          %2593 = vst [vmem:[#allocation2 + $0x18] sm:$0xff] %v2577
          %2594 = vst [vmem:[#allocation2 + $0x20] sm:$0xff] %v2578
          %2595 = vst [vmem:[#allocation2 + $0x28] sm:$0xff] %v2579
          %2596 = vst [vmem:[#allocation2 + $0x30] sm:$0xff] %v2580
          %2597 = vst [vmem:[#allocation2 + $0x38] sm:$0xff] %v2581
          %2598 = vst [vmem:[#allocation2 + $0x40] sm:$0xff] %v2582
          %2599 = vst [vmem:[#allocation2 + $0x48] sm:$0xff] %v2583
          %2600 = vst [vmem:[#allocation2 + $0x50] sm:$0xff] %v2584
          %2601 = vst [vmem:[#allocation2 + $0x58] sm:$0xff] %v2585
          %2602 = vst [vmem:[#allocation2 + $0x60] sm:$0xff] %v2586
          %2603 = vst [vmem:[#allocation2 + $0x68] sm:$0xff] %v2587
          %2604 = vst [vmem:[#allocation2 + $0x70] sm:$0xff] %v2588
          %2605 = vst [vmem:[#allocation2 + $0x78] sm:$0xff] %v2589
        $region80: #{tpu_custom_call.1} parent=47 // pred_fallthru
          _
        %v2606 = vld [vmem:[#allocation2] sm:$0xff]
        %v2607 = vld [vmem:[#allocation2 + $0x8] sm:$0xff]
        %v2608 = vld [vmem:[#allocation2 + $0x10] sm:$0xff]
        %v2609 = vld [vmem:[#allocation2 + $0x18] sm:$0xff]
        %v2610 = vld [vmem:[#allocation2 + $0x20] sm:$0xff]
        %v2611 = vld [vmem:[#allocation2 + $0x28] sm:$0xff]
        %v2612 = vld [vmem:[#allocation2 + $0x30] sm:$0xff]
        %v2613 = vld [vmem:[#allocation2 + $0x38] sm:$0xff]
        %v2614 = vld [vmem:[#allocation2 + $0x40] sm:$0xff]
        %v2615 = vld [vmem:[#allocation2 + $0x48] sm:$0xff]
        %v2616 = vld [vmem:[#allocation2 + $0x50] sm:$0xff]
        %v2617 = vld [vmem:[#allocation2 + $0x58] sm:$0xff]
        %v2618 = vld [vmem:[#allocation2 + $0x60] sm:$0xff]
        %v2619 = vld [vmem:[#allocation2 + $0x68] sm:$0xff]
        %v2620 = vld [vmem:[#allocation2 + $0x70] sm:$0xff]
        %v2621 = vld [vmem:[#allocation2 + $0x78] sm:$0xff]
        %v2622 = vld [vmem:[%s389] sm:$0xff]
        %v2623 = vld [vmem:[%s389 + $0x8] sm:$0xff]
        %v2624 = vld [vmem:[%s389 + $0x10] sm:$0xff]
        %v2625 = vld [vmem:[%s389 + $0x18] sm:$0xff]
        %v2626 = vld [vmem:[%s389 + $0x20] sm:$0xff]
        %v2627 = vld [vmem:[%s389 + $0x28] sm:$0xff]
        %v2628 = vld [vmem:[%s389 + $0x30] sm:$0xff]
        %v2629 = vld [vmem:[%s389 + $0x38] sm:$0xff]
        %v2630 = vld [vmem:[%s389 + $0x40] sm:$0xff]
        %v2631 = vld [vmem:[%s389 + $0x48] sm:$0xff]
        %v2632 = vld [vmem:[%s389 + $0x50] sm:$0xff]
        %v2633 = vld [vmem:[%s389 + $0x58] sm:$0xff]
        %v2634 = vld [vmem:[%s389 + $0x60] sm:$0xff]
        %v2635 = vld [vmem:[%s389 + $0x68] sm:$0xff]
        %v2636 = vld [vmem:[%s389 + $0x70] sm:$0xff]
        %v2637 = vld [vmem:[%s389 + $0x78] sm:$0xff]
        %v2638 = vld [vmem:[%s389 + $0x80] sm:$0xff]
        %v2639 = vld [vmem:[%s389 + $0x88] sm:$0xff]
        %v2640 = vld [vmem:[%s389 + $0x90] sm:$0xff]
        %v2641 = vld [vmem:[%s389 + $0x98] sm:$0xff]
        %v2642 = vld [vmem:[%s389 + $0xa0] sm:$0xff]
        %v2643 = vld [vmem:[%s389 + $0xa8] sm:$0xff]
        %v2644 = vld [vmem:[%s389 + $0xb0] sm:$0xff]
        %v2645 = vld [vmem:[%s389 + $0xb8] sm:$0xff]
        %v2646 = vld [vmem:[%s389 + $0xc0] sm:$0xff]
        %v2647 = vld [vmem:[%s389 + $0xc8] sm:$0xff]
        %v2648 = vld [vmem:[%s389 + $0xd0] sm:$0xff]
        %v2649 = vld [vmem:[%s389 + $0xd8] sm:$0xff]
        %v2650 = vld [vmem:[%s389 + $0xe0] sm:$0xff]
        %v2651 = vld [vmem:[%s389 + $0xe8] sm:$0xff]
        %v2652 = vld [vmem:[%s389 + $0xf0] sm:$0xff]
        %v2653 = vld [vmem:[%s389 + $0xf8] sm:$0xff]
        %v2654 = vld [vmem:[%s389 + $0x100] sm:$0xff]
        %v2655 = vld [vmem:[%s389 + $0x108] sm:$0xff]
        %v2656 = vld [vmem:[%s389 + $0x110] sm:$0xff]
        %v2657 = vld [vmem:[%s389 + $0x118] sm:$0xff]
        %v2658 = vld [vmem:[%s389 + $0x120] sm:$0xff]
        %v2659 = vld [vmem:[%s389 + $0x128] sm:$0xff]
        %v2660 = vld [vmem:[%s389 + $0x130] sm:$0xff]
        %v2661 = vld [vmem:[%s389 + $0x138] sm:$0xff]
        %v2662 = vld [vmem:[%s389 + $0x140] sm:$0xff]
        %v2663 = vld [vmem:[%s389 + $0x148] sm:$0xff]
        %v2664 = vld [vmem:[%s389 + $0x150] sm:$0xff]
        %v2665 = vld [vmem:[%s389 + $0x158] sm:$0xff]
        %v2666 = vld [vmem:[%s389 + $0x160] sm:$0xff]
        %v2667 = vld [vmem:[%s389 + $0x168] sm:$0xff]
        %v2668 = vld [vmem:[%s389 + $0x170] sm:$0xff]
        %v2669 = vld [vmem:[%s389 + $0x178] sm:$0xff]
        %v2670 = vld [vmem:[%s389 + $0x180] sm:$0xff]
        %v2671 = vld [vmem:[%s389 + $0x188] sm:$0xff]
        %v2672 = vld [vmem:[%s389 + $0x190] sm:$0xff]
        %v2673 = vld [vmem:[%s389 + $0x198] sm:$0xff]
        %v2674 = vld [vmem:[%s389 + $0x1a0] sm:$0xff]
        %v2675 = vld [vmem:[%s389 + $0x1a8] sm:$0xff]
        %v2676 = vld [vmem:[%s389 + $0x1b0] sm:$0xff]
        %v2677 = vld [vmem:[%s389 + $0x1b8] sm:$0xff]
        %v2678 = vld [vmem:[%s389 + $0x1c0] sm:$0xff]
        %v2679 = vld [vmem:[%s389 + $0x1c8] sm:$0xff]
        %v2680 = vld [vmem:[%s389 + $0x1d0] sm:$0xff]
        %v2681 = vld [vmem:[%s389 + $0x1d8] sm:$0xff]
        %v2682 = vld [vmem:[%s389 + $0x1e0] sm:$0xff]
        %v2683 = vld [vmem:[%s389 + $0x1e8] sm:$0xff]
        %v2684 = vld [vmem:[%s389 + $0x1f0] sm:$0xff]
        %v2685 = vld [vmem:[%s389 + $0x1f8] sm:$0xff]
        %v2686 = vld [vmem:[%s389 + $0x200] sm:$0xff]
        %v2687 = vld [vmem:[%s389 + $0x208] sm:$0xff]
        %v2688 = vld [vmem:[%s389 + $0x210] sm:$0xff]
        %v2689 = vld [vmem:[%s389 + $0x218] sm:$0xff]
        %v2690 = vld [vmem:[%s389 + $0x220] sm:$0xff]
        %v2691 = vld [vmem:[%s389 + $0x228] sm:$0xff]
        %v2692 = vld [vmem:[%s389 + $0x230] sm:$0xff]
        %v2693 = vld [vmem:[%s389 + $0x238] sm:$0xff]
        %v2694 = vld [vmem:[%s389 + $0x240] sm:$0xff]
        %v2695 = vld [vmem:[%s389 + $0x248] sm:$0xff]
        %v2696 = vld [vmem:[%s389 + $0x250] sm:$0xff]
        %v2697 = vld [vmem:[%s389 + $0x258] sm:$0xff]
        %v2698 = vld [vmem:[%s389 + $0x260] sm:$0xff]
        %v2699 = vld [vmem:[%s389 + $0x268] sm:$0xff]
        %v2700 = vld [vmem:[%s389 + $0x270] sm:$0xff]
        %v2701 = vld [vmem:[%s389 + $0x278] sm:$0xff]
        %v2702 = vld [vmem:[%s389 + $0x280] sm:$0xff]
        %v2703 = vld [vmem:[%s389 + $0x288] sm:$0xff]
        %v2704 = vld [vmem:[%s389 + $0x290] sm:$0xff]
        %v2705 = vld [vmem:[%s389 + $0x298] sm:$0xff]
        %v2706 = vld [vmem:[%s389 + $0x2a0] sm:$0xff]
        %v2707 = vld [vmem:[%s389 + $0x2a8] sm:$0xff]
        %v2708 = vld [vmem:[%s389 + $0x2b0] sm:$0xff]
        %v2709 = vld [vmem:[%s389 + $0x2b8] sm:$0xff]
        %v2710 = vld [vmem:[%s389 + $0x2c0] sm:$0xff]
        %v2711 = vld [vmem:[%s389 + $0x2c8] sm:$0xff]
        %v2712 = vld [vmem:[%s389 + $0x2d0] sm:$0xff]
        %v2713 = vld [vmem:[%s389 + $0x2d8] sm:$0xff]
        %v2714 = vld [vmem:[%s389 + $0x2e0] sm:$0xff]
        %v2715 = vld [vmem:[%s389 + $0x2e8] sm:$0xff]
        %v2716 = vld [vmem:[%s389 + $0x2f0] sm:$0xff]
        %v2717 = vld [vmem:[%s389 + $0x2f8] sm:$0xff]
        %v2718 = vld [vmem:[%s389 + $0x300] sm:$0xff]
        %v2719 = vld [vmem:[%s389 + $0x308] sm:$0xff]
        %v2720 = vld [vmem:[%s389 + $0x310] sm:$0xff]
        %v2721 = vld [vmem:[%s389 + $0x318] sm:$0xff]
        %v2722 = vld [vmem:[%s389 + $0x320] sm:$0xff]
        %v2723 = vld [vmem:[%s389 + $0x328] sm:$0xff]
        %v2724 = vld [vmem:[%s389 + $0x330] sm:$0xff]
        %v2725 = vld [vmem:[%s389 + $0x338] sm:$0xff]
        %v2726 = vld [vmem:[%s389 + $0x340] sm:$0xff]
        %v2727 = vld [vmem:[%s389 + $0x348] sm:$0xff]
        %v2728 = vld [vmem:[%s389 + $0x350] sm:$0xff]
        %v2729 = vld [vmem:[%s389 + $0x358] sm:$0xff]
        %v2730 = vld [vmem:[%s389 + $0x360] sm:$0xff]
        %v2731 = vld [vmem:[%s389 + $0x368] sm:$0xff]
        %v2732 = vld [vmem:[%s389 + $0x370] sm:$0xff]
        %v2733 = vld [vmem:[%s389 + $0x378] sm:$0xff]
        %v2734 = vld [vmem:[%s389 + $0x380] sm:$0xff]
        %v2735 = vld [vmem:[%s389 + $0x388] sm:$0xff]
        %v2736 = vld [vmem:[%s389 + $0x390] sm:$0xff]
        %v2737 = vld [vmem:[%s389 + $0x398] sm:$0xff]
        %v2738 = vld [vmem:[%s389 + $0x3a0] sm:$0xff]
        %v2739 = vld [vmem:[%s389 + $0x3a8] sm:$0xff]
        %v2740 = vld [vmem:[%s389 + $0x3b0] sm:$0xff]
        %v2741 = vld [vmem:[%s389 + $0x3b8] sm:$0xff]
        %v2742 = vld [vmem:[%s389 + $0x3c0] sm:$0xff]
        %v2743 = vld [vmem:[%s389 + $0x3c8] sm:$0xff]
        %v2744 = vld [vmem:[%s389 + $0x3d0] sm:$0xff]
        %v2745 = vld [vmem:[%s389 + $0x3d8] sm:$0xff]
        %v2746 = vld [vmem:[%s389 + $0x3e0] sm:$0xff]
        %v2747 = vld [vmem:[%s389 + $0x3e8] sm:$0xff]
        %v2748 = vld [vmem:[%s389 + $0x3f0] sm:$0xff]
        %v2749 = vld [vmem:[%s389 + $0x3f8] sm:$0xff]
        %v2750 = vld [vmem:[%s389 + $0x400] sm:$0xff]
        %v2751 = vld [vmem:[%s389 + $0x408] sm:$0xff]
        %v2752 = vld [vmem:[%s389 + $0x410] sm:$0xff]
        %v2753 = vld [vmem:[%s389 + $0x418] sm:$0xff]
        %v2754 = vld [vmem:[%s389 + $0x420] sm:$0xff]
        %v2755 = vld [vmem:[%s389 + $0x428] sm:$0xff]
        %v2756 = vld [vmem:[%s389 + $0x430] sm:$0xff]
        %v2757 = vld [vmem:[%s389 + $0x438] sm:$0xff]
        %v2758 = vld [vmem:[%s389 + $0x440] sm:$0xff]
        %v2759 = vld [vmem:[%s389 + $0x448] sm:$0xff]
        %v2760 = vld [vmem:[%s389 + $0x450] sm:$0xff]
        %v2761 = vld [vmem:[%s389 + $0x458] sm:$0xff]
        %v2762 = vld [vmem:[%s389 + $0x460] sm:$0xff]
        %v2763 = vld [vmem:[%s389 + $0x468] sm:$0xff]
        %v2764 = vld [vmem:[%s389 + $0x470] sm:$0xff]
        %v2765 = vld [vmem:[%s389 + $0x478] sm:$0xff]
        %v2766 = vld [vmem:[%s389 + $0x480] sm:$0xff]
        %v2767 = vld [vmem:[%s389 + $0x488] sm:$0xff]
        %v2768 = vld [vmem:[%s389 + $0x490] sm:$0xff]
        %v2769 = vld [vmem:[%s389 + $0x498] sm:$0xff]
        %v2770 = vld [vmem:[%s389 + $0x4a0] sm:$0xff]
        %v2771 = vld [vmem:[%s389 + $0x4a8] sm:$0xff]
        %v2772 = vld [vmem:[%s389 + $0x4b0] sm:$0xff]
        %v2773 = vld [vmem:[%s389 + $0x4b8] sm:$0xff]
        %v2774 = vld [vmem:[%s389 + $0x4c0] sm:$0xff]
        %v2775 = vld [vmem:[%s389 + $0x4c8] sm:$0xff]
        %v2776 = vld [vmem:[%s389 + $0x4d0] sm:$0xff]
        %v2777 = vld [vmem:[%s389 + $0x4d8] sm:$0xff]
        %v2778 = vld [vmem:[%s389 + $0x4e0] sm:$0xff]
        %v2779 = vld [vmem:[%s389 + $0x4e8] sm:$0xff]
        %v2780 = vld [vmem:[%s389 + $0x4f0] sm:$0xff]
        %v2781 = vld [vmem:[%s389 + $0x4f8] sm:$0xff]
        %v2782 = vld [vmem:[%s389 + $0x500] sm:$0xff]
        %v2783 = vld [vmem:[%s389 + $0x508] sm:$0xff]
        %v2784 = vld [vmem:[%s389 + $0x510] sm:$0xff]
        %v2785 = vld [vmem:[%s389 + $0x518] sm:$0xff]
        %v2786 = vld [vmem:[%s389 + $0x520] sm:$0xff]
        %v2787 = vld [vmem:[%s389 + $0x528] sm:$0xff]
        %v2788 = vld [vmem:[%s389 + $0x530] sm:$0xff]
        %v2789 = vld [vmem:[%s389 + $0x538] sm:$0xff]
        %v2790 = vld [vmem:[%s389 + $0x540] sm:$0xff]
        %v2791 = vld [vmem:[%s389 + $0x548] sm:$0xff]
        %v2792 = vld [vmem:[%s389 + $0x550] sm:$0xff]
        %v2793 = vld [vmem:[%s389 + $0x558] sm:$0xff]
        %v2794 = vld [vmem:[%s389 + $0x560] sm:$0xff]
        %v2795 = vld [vmem:[%s389 + $0x568] sm:$0xff]
        %v2796 = vld [vmem:[%s389 + $0x570] sm:$0xff]
        %v2797 = vld [vmem:[%s389 + $0x578] sm:$0xff]
        %v2798 = vld [vmem:[%s389 + $0x580] sm:$0xff]
        %v2799 = vld [vmem:[%s389 + $0x588] sm:$0xff]
        %v2800 = vld [vmem:[%s389 + $0x590] sm:$0xff]
        %v2801 = vld [vmem:[%s389 + $0x598] sm:$0xff]
        %v2802 = vld [vmem:[%s389 + $0x5a0] sm:$0xff]
        %v2803 = vld [vmem:[%s389 + $0x5a8] sm:$0xff]
        %v2804 = vld [vmem:[%s389 + $0x5b0] sm:$0xff]
        %v2805 = vld [vmem:[%s389 + $0x5b8] sm:$0xff]
        %v2806 = vld [vmem:[%s389 + $0x5c0] sm:$0xff]
        %v2807 = vld [vmem:[%s389 + $0x5c8] sm:$0xff]
        %v2808 = vld [vmem:[%s389 + $0x5d0] sm:$0xff]
        %v2809 = vld [vmem:[%s389 + $0x5d8] sm:$0xff]
        %v2810 = vld [vmem:[%s389 + $0x5e0] sm:$0xff]
        %v2811 = vld [vmem:[%s389 + $0x5e8] sm:$0xff]
        %v2812 = vld [vmem:[%s389 + $0x5f0] sm:$0xff]
        %v2813 = vld [vmem:[%s389 + $0x5f8] sm:$0xff]
        %v2814 = vld [vmem:[%s389 + $0x600] sm:$0xff]
        %v2815 = vld [vmem:[%s389 + $0x608] sm:$0xff]
        %v2816 = vld [vmem:[%s389 + $0x610] sm:$0xff]
        %v2817 = vld [vmem:[%s389 + $0x618] sm:$0xff]
        %v2818 = vld [vmem:[%s389 + $0x620] sm:$0xff]
        %v2819 = vld [vmem:[%s389 + $0x628] sm:$0xff]
        %v2820 = vld [vmem:[%s389 + $0x630] sm:$0xff]
        %v2821 = vld [vmem:[%s389 + $0x638] sm:$0xff]
        %v2822 = vld [vmem:[%s389 + $0x640] sm:$0xff]
        %v2823 = vld [vmem:[%s389 + $0x648] sm:$0xff]
        %v2824 = vld [vmem:[%s389 + $0x650] sm:$0xff]
        %v2825 = vld [vmem:[%s389 + $0x658] sm:$0xff]
        %v2826 = vld [vmem:[%s389 + $0x660] sm:$0xff]
        %v2827 = vld [vmem:[%s389 + $0x668] sm:$0xff]
        %v2828 = vld [vmem:[%s389 + $0x670] sm:$0xff]
        %v2829 = vld [vmem:[%s389 + $0x678] sm:$0xff]
        %v2830 = vld [vmem:[%s389 + $0x680] sm:$0xff]
        %v2831 = vld [vmem:[%s389 + $0x688] sm:$0xff]
        %v2832 = vld [vmem:[%s389 + $0x690] sm:$0xff]
        %v2833 = vld [vmem:[%s389 + $0x698] sm:$0xff]
        %v2834 = vld [vmem:[%s389 + $0x6a0] sm:$0xff]
        %v2835 = vld [vmem:[%s389 + $0x6a8] sm:$0xff]
        %v2836 = vld [vmem:[%s389 + $0x6b0] sm:$0xff]
        %v2837 = vld [vmem:[%s389 + $0x6b8] sm:$0xff]
        %v2838 = vld [vmem:[%s389 + $0x6c0] sm:$0xff]
        %v2839 = vld [vmem:[%s389 + $0x6c8] sm:$0xff]
        %v2840 = vld [vmem:[%s389 + $0x6d0] sm:$0xff]
        %v2841 = vld [vmem:[%s389 + $0x6d8] sm:$0xff]
        %v2842 = vld [vmem:[%s389 + $0x6e0] sm:$0xff]
        %v2843 = vld [vmem:[%s389 + $0x6e8] sm:$0xff]
        %v2844 = vld [vmem:[%s389 + $0x6f0] sm:$0xff]
        %v2845 = vld [vmem:[%s389 + $0x6f8] sm:$0xff]
        %v2846 = vld [vmem:[%s389 + $0x700] sm:$0xff]
        %v2847 = vld [vmem:[%s389 + $0x708] sm:$0xff]
        %v2848 = vld [vmem:[%s389 + $0x710] sm:$0xff]
        %v2849 = vld [vmem:[%s389 + $0x718] sm:$0xff]
        %v2850 = vld [vmem:[%s389 + $0x720] sm:$0xff]
        %v2851 = vld [vmem:[%s389 + $0x728] sm:$0xff]
        %v2852 = vld [vmem:[%s389 + $0x730] sm:$0xff]
        %v2853 = vld [vmem:[%s389 + $0x738] sm:$0xff]
        %v2854 = vld [vmem:[%s389 + $0x740] sm:$0xff]
        %v2855 = vld [vmem:[%s389 + $0x748] sm:$0xff]
        %v2856 = vld [vmem:[%s389 + $0x750] sm:$0xff]
        %v2857 = vld [vmem:[%s389 + $0x758] sm:$0xff]
        %v2858 = vld [vmem:[%s389 + $0x760] sm:$0xff]
        %v2859 = vld [vmem:[%s389 + $0x768] sm:$0xff]
        %v2860 = vld [vmem:[%s389 + $0x770] sm:$0xff]
        %v2861 = vld [vmem:[%s389 + $0x778] sm:$0xff]
        %v2862 = vld [vmem:[%s389 + $0x780] sm:$0xff]
        %v2863 = vld [vmem:[%s389 + $0x788] sm:$0xff]
        %v2864 = vld [vmem:[%s389 + $0x790] sm:$0xff]
        %v2865 = vld [vmem:[%s389 + $0x798] sm:$0xff]
        %v2866 = vld [vmem:[%s389 + $0x7a0] sm:$0xff]
        %v2867 = vld [vmem:[%s389 + $0x7a8] sm:$0xff]
        %v2868 = vld [vmem:[%s389 + $0x7b0] sm:$0xff]
        %v2869 = vld [vmem:[%s389 + $0x7b8] sm:$0xff]
        %v2870 = vld [vmem:[%s389 + $0x7c0] sm:$0xff]
        %v2871 = vld [vmem:[%s389 + $0x7c8] sm:$0xff]
        %v2872 = vld [vmem:[%s389 + $0x7d0] sm:$0xff]
        %v2873 = vld [vmem:[%s389 + $0x7d8] sm:$0xff]
        %v2874 = vld [vmem:[%s389 + $0x7e0] sm:$0xff]
        %v2875 = vld [vmem:[%s389 + $0x7e8] sm:$0xff]
        %v2876 = vld [vmem:[%s389 + $0x7f0] sm:$0xff]
        %v2877 = vld [vmem:[%s389 + $0x7f8] sm:$0xff]
        %v2878 = vld [vmem:[%s389 + $0x800] sm:$0xff]
        %v2879 = vld [vmem:[%s389 + $0x808] sm:$0xff]
        %v2880 = vld [vmem:[%s389 + $0x810] sm:$0xff]
        %v2881 = vld [vmem:[%s389 + $0x818] sm:$0xff]
        %v2882 = vld [vmem:[%s389 + $0x820] sm:$0xff]
        %v2883 = vld [vmem:[%s389 + $0x828] sm:$0xff]
        %v2884 = vld [vmem:[%s389 + $0x830] sm:$0xff]
        %v2885 = vld [vmem:[%s389 + $0x838] sm:$0xff]
        %v2886 = vld [vmem:[%s389 + $0x840] sm:$0xff]
        %v2887 = vld [vmem:[%s389 + $0x848] sm:$0xff]
        %v2888 = vld [vmem:[%s389 + $0x850] sm:$0xff]
        %v2889 = vld [vmem:[%s389 + $0x858] sm:$0xff]
        %v2890 = vld [vmem:[%s389 + $0x860] sm:$0xff]
        %v2891 = vld [vmem:[%s389 + $0x868] sm:$0xff]
        %v2892 = vld [vmem:[%s389 + $0x870] sm:$0xff]
        %v2893 = vld [vmem:[%s389 + $0x878] sm:$0xff]
        %v2894 = vld [vmem:[%s389 + $0x880] sm:$0xff]
        %v2895 = vld [vmem:[%s389 + $0x888] sm:$0xff]
        %v2896 = vld [vmem:[%s389 + $0x890] sm:$0xff]
        %v2897 = vld [vmem:[%s389 + $0x898] sm:$0xff]
        %v2898 = vld [vmem:[%s389 + $0x8a0] sm:$0xff]
        %v2899 = vld [vmem:[%s389 + $0x8a8] sm:$0xff]
        %v2900 = vld [vmem:[%s389 + $0x8b0] sm:$0xff]
        %v2901 = vld [vmem:[%s389 + $0x8b8] sm:$0xff]
        %v2902 = vld [vmem:[%s389 + $0x8c0] sm:$0xff]
        %v2903 = vld [vmem:[%s389 + $0x8c8] sm:$0xff]
        %v2904 = vld [vmem:[%s389 + $0x8d0] sm:$0xff]
        %v2905 = vld [vmem:[%s389 + $0x8d8] sm:$0xff]
        %v2906 = vld [vmem:[%s389 + $0x8e0] sm:$0xff]
        %v2907 = vld [vmem:[%s389 + $0x8e8] sm:$0xff]
        %v2908 = vld [vmem:[%s389 + $0x8f0] sm:$0xff]
        %v2909 = vld [vmem:[%s389 + $0x8f8] sm:$0xff]
        %v2910 = vld [vmem:[%s389 + $0x900] sm:$0xff]
        %v2911 = vld [vmem:[%s389 + $0x908] sm:$0xff]
        %v2912 = vld [vmem:[%s389 + $0x910] sm:$0xff]
        %v2913 = vld [vmem:[%s389 + $0x918] sm:$0xff]
        %v2914 = vld [vmem:[%s389 + $0x920] sm:$0xff]
        %v2915 = vld [vmem:[%s389 + $0x928] sm:$0xff]
        %v2916 = vld [vmem:[%s389 + $0x930] sm:$0xff]
        %v2917 = vld [vmem:[%s389 + $0x938] sm:$0xff]
        %v2918 = vld [vmem:[%s389 + $0x940] sm:$0xff]
        %v2919 = vld [vmem:[%s389 + $0x948] sm:$0xff]
        %v2920 = vld [vmem:[%s389 + $0x950] sm:$0xff]
        %v2921 = vld [vmem:[%s389 + $0x958] sm:$0xff]
        %v2922 = vld [vmem:[%s389 + $0x960] sm:$0xff]
        %v2923 = vld [vmem:[%s389 + $0x968] sm:$0xff]
        %v2924 = vld [vmem:[%s389 + $0x970] sm:$0xff]
        %v2925 = vld [vmem:[%s389 + $0x978] sm:$0xff]
        %v2926 = vld [vmem:[%s389 + $0x980] sm:$0xff]
        %v2927 = vld [vmem:[%s389 + $0x988] sm:$0xff]
        %v2928 = vld [vmem:[%s389 + $0x990] sm:$0xff]
        %v2929 = vld [vmem:[%s389 + $0x998] sm:$0xff]
        %v2930 = vld [vmem:[%s389 + $0x9a0] sm:$0xff]
        %v2931 = vld [vmem:[%s389 + $0x9a8] sm:$0xff]
        %v2932 = vld [vmem:[%s389 + $0x9b0] sm:$0xff]
        %v2933 = vld [vmem:[%s389 + $0x9b8] sm:$0xff]
        %v2934 = vld [vmem:[%s389 + $0x9c0] sm:$0xff]
        %v2935 = vld [vmem:[%s389 + $0x9c8] sm:$0xff]
        %v2936 = vld [vmem:[%s389 + $0x9d0] sm:$0xff]
        %v2937 = vld [vmem:[%s389 + $0x9d8] sm:$0xff]
        %v2938 = vld [vmem:[%s389 + $0x9e0] sm:$0xff]
        %v2939 = vld [vmem:[%s389 + $0x9e8] sm:$0xff]
        %v2940 = vld [vmem:[%s389 + $0x9f0] sm:$0xff]
        %v2941 = vld [vmem:[%s389 + $0x9f8] sm:$0xff]
        %v2942 = vld [vmem:[%s389 + $0xa00] sm:$0xff]
        %v2943 = vld [vmem:[%s389 + $0xa08] sm:$0xff]
        %v2944 = vld [vmem:[%s389 + $0xa10] sm:$0xff]
        %v2945 = vld [vmem:[%s389 + $0xa18] sm:$0xff]
        %v2946 = vld [vmem:[%s389 + $0xa20] sm:$0xff]
        %v2947 = vld [vmem:[%s389 + $0xa28] sm:$0xff]
        %v2948 = vld [vmem:[%s389 + $0xa30] sm:$0xff]
        %v2949 = vld [vmem:[%s389 + $0xa38] sm:$0xff]
        %v2950 = vld [vmem:[%s389 + $0xa40] sm:$0xff]
        %v2951 = vld [vmem:[%s389 + $0xa48] sm:$0xff]
        %v2952 = vld [vmem:[%s389 + $0xa50] sm:$0xff]
        %v2953 = vld [vmem:[%s389 + $0xa58] sm:$0xff]
        %v2954 = vld [vmem:[%s389 + $0xa60] sm:$0xff]
        %v2955 = vld [vmem:[%s389 + $0xa68] sm:$0xff]
        %v2956 = vld [vmem:[%s389 + $0xa70] sm:$0xff]
        %v2957 = vld [vmem:[%s389 + $0xa78] sm:$0xff]
        %v2958 = vld [vmem:[%s389 + $0xa80] sm:$0xff]
        %v2959 = vld [vmem:[%s389 + $0xa88] sm:$0xff]
        %v2960 = vld [vmem:[%s389 + $0xa90] sm:$0xff]
        %v2961 = vld [vmem:[%s389 + $0xa98] sm:$0xff]
        %v2962 = vld [vmem:[%s389 + $0xaa0] sm:$0xff]
        %v2963 = vld [vmem:[%s389 + $0xaa8] sm:$0xff]
        %v2964 = vld [vmem:[%s389 + $0xab0] sm:$0xff]
        %v2965 = vld [vmem:[%s389 + $0xab8] sm:$0xff]
        %v2966 = vld [vmem:[%s389 + $0xac0] sm:$0xff]
        %v2967 = vld [vmem:[%s389 + $0xac8] sm:$0xff]
        %v2968 = vld [vmem:[%s389 + $0xad0] sm:$0xff]
        %v2969 = vld [vmem:[%s389 + $0xad8] sm:$0xff]
        %v2970 = vld [vmem:[%s389 + $0xae0] sm:$0xff]
        %v2971 = vld [vmem:[%s389 + $0xae8] sm:$0xff]
        %v2972 = vld [vmem:[%s389 + $0xaf0] sm:$0xff]
        %v2973 = vld [vmem:[%s389 + $0xaf8] sm:$0xff]
        %v2974 = vld [vmem:[%s389 + $0xb00] sm:$0xff]
        %v2975 = vld [vmem:[%s389 + $0xb08] sm:$0xff]
        %v2976 = vld [vmem:[%s389 + $0xb10] sm:$0xff]
        %v2977 = vld [vmem:[%s389 + $0xb18] sm:$0xff]
        %v2978 = vld [vmem:[%s389 + $0xb20] sm:$0xff]
        %v2979 = vld [vmem:[%s389 + $0xb28] sm:$0xff]
        %v2980 = vld [vmem:[%s389 + $0xb30] sm:$0xff]
        %v2981 = vld [vmem:[%s389 + $0xb38] sm:$0xff]
        %v2982 = vld [vmem:[%s389 + $0xb40] sm:$0xff]
        %v2983 = vld [vmem:[%s389 + $0xb48] sm:$0xff]
        %v2984 = vld [vmem:[%s389 + $0xb50] sm:$0xff]
        %v2985 = vld [vmem:[%s389 + $0xb58] sm:$0xff]
        %v2986 = vld [vmem:[%s389 + $0xb60] sm:$0xff]
        %v2987 = vld [vmem:[%s389 + $0xb68] sm:$0xff]
        %v2988 = vld [vmem:[%s389 + $0xb70] sm:$0xff]
        %v2989 = vld [vmem:[%s389 + $0xb78] sm:$0xff]
        %v2990 = vld [vmem:[%s389 + $0xb80] sm:$0xff]
        %v2991 = vld [vmem:[%s389 + $0xb88] sm:$0xff]
        %v2992 = vld [vmem:[%s389 + $0xb90] sm:$0xff]
        %v2993 = vld [vmem:[%s389 + $0xb98] sm:$0xff]
        %v2994 = vld [vmem:[%s389 + $0xba0] sm:$0xff]
        %v2995 = vld [vmem:[%s389 + $0xba8] sm:$0xff]
        %v2996 = vld [vmem:[%s389 + $0xbb0] sm:$0xff]
        %v2997 = vld [vmem:[%s389 + $0xbb8] sm:$0xff]
        %v2998 = vld [vmem:[%s389 + $0xbc0] sm:$0xff]
        %v2999 = vld [vmem:[%s389 + $0xbc8] sm:$0xff]
        %v3000 = vld [vmem:[%s389 + $0xbd0] sm:$0xff]
        %v3001 = vld [vmem:[%s389 + $0xbd8] sm:$0xff]
        %v3002 = vld [vmem:[%s389 + $0xbe0] sm:$0xff]
        %v3003 = vld [vmem:[%s389 + $0xbe8] sm:$0xff]
        %v3004 = vld [vmem:[%s389 + $0xbf0] sm:$0xff]
        %v3005 = vld [vmem:[%s389 + $0xbf8] sm:$0xff]
        %v3006 = vld [vmem:[%s389 + $0xc00] sm:$0xff]
        %v3007 = vld [vmem:[%s389 + $0xc08] sm:$0xff]
        %v3008 = vld [vmem:[%s389 + $0xc10] sm:$0xff]
        %v3009 = vld [vmem:[%s389 + $0xc18] sm:$0xff]
        %v3010 = vld [vmem:[%s389 + $0xc20] sm:$0xff]
        %v3011 = vld [vmem:[%s389 + $0xc28] sm:$0xff]
        %v3012 = vld [vmem:[%s389 + $0xc30] sm:$0xff]
        %v3013 = vld [vmem:[%s389 + $0xc38] sm:$0xff]
        %v3014 = vld [vmem:[%s389 + $0xc40] sm:$0xff]
        %v3015 = vld [vmem:[%s389 + $0xc48] sm:$0xff]
        %v3016 = vld [vmem:[%s389 + $0xc50] sm:$0xff]
        %v3017 = vld [vmem:[%s389 + $0xc58] sm:$0xff]
        %v3018 = vld [vmem:[%s389 + $0xc60] sm:$0xff]
        %v3019 = vld [vmem:[%s389 + $0xc68] sm:$0xff]
        %v3020 = vld [vmem:[%s389 + $0xc70] sm:$0xff]
        %v3021 = vld [vmem:[%s389 + $0xc78] sm:$0xff]
        %v3022 = vld [vmem:[%s389 + $0xc80] sm:$0xff]
        %v3023 = vld [vmem:[%s389 + $0xc88] sm:$0xff]
        %v3024 = vld [vmem:[%s389 + $0xc90] sm:$0xff]
        %v3025 = vld [vmem:[%s389 + $0xc98] sm:$0xff]
        %v3026 = vld [vmem:[%s389 + $0xca0] sm:$0xff]
        %v3027 = vld [vmem:[%s389 + $0xca8] sm:$0xff]
        %v3028 = vld [vmem:[%s389 + $0xcb0] sm:$0xff]
        %v3029 = vld [vmem:[%s389 + $0xcb8] sm:$0xff]
        %v3030 = vld [vmem:[%s389 + $0xcc0] sm:$0xff]
        %v3031 = vld [vmem:[%s389 + $0xcc8] sm:$0xff]
        %v3032 = vld [vmem:[%s389 + $0xcd0] sm:$0xff]
        %v3033 = vld [vmem:[%s389 + $0xcd8] sm:$0xff]
        %v3034 = vld [vmem:[%s389 + $0xce0] sm:$0xff]
        %v3035 = vld [vmem:[%s389 + $0xce8] sm:$0xff]
        %v3036 = vld [vmem:[%s389 + $0xcf0] sm:$0xff]
        %v3037 = vld [vmem:[%s389 + $0xcf8] sm:$0xff]
        %v3038 = vld [vmem:[%s389 + $0xd00] sm:$0xff]
        %v3039 = vld [vmem:[%s389 + $0xd08] sm:$0xff]
        %v3040 = vld [vmem:[%s389 + $0xd10] sm:$0xff]
        %v3041 = vld [vmem:[%s389 + $0xd18] sm:$0xff]
        %v3042 = vld [vmem:[%s389 + $0xd20] sm:$0xff]
        %v3043 = vld [vmem:[%s389 + $0xd28] sm:$0xff]
        %v3044 = vld [vmem:[%s389 + $0xd30] sm:$0xff]
        %v3045 = vld [vmem:[%s389 + $0xd38] sm:$0xff]
        %v3046 = vld [vmem:[%s389 + $0xd40] sm:$0xff]
        %v3047 = vld [vmem:[%s389 + $0xd48] sm:$0xff]
        %v3048 = vld [vmem:[%s389 + $0xd50] sm:$0xff]
        %v3049 = vld [vmem:[%s389 + $0xd58] sm:$0xff]
        %v3050 = vld [vmem:[%s389 + $0xd60] sm:$0xff]
        %v3051 = vld [vmem:[%s389 + $0xd68] sm:$0xff]
        %v3052 = vld [vmem:[%s389 + $0xd70] sm:$0xff]
        %v3053 = vld [vmem:[%s389 + $0xd78] sm:$0xff]
        %v3054 = vld [vmem:[%s389 + $0xd80] sm:$0xff]
        %v3055 = vld [vmem:[%s389 + $0xd88] sm:$0xff]
        %v3056 = vld [vmem:[%s389 + $0xd90] sm:$0xff]
        %v3057 = vld [vmem:[%s389 + $0xd98] sm:$0xff]
        %v3058 = vld [vmem:[%s389 + $0xda0] sm:$0xff]
        %v3059 = vld [vmem:[%s389 + $0xda8] sm:$0xff]
        %v3060 = vld [vmem:[%s389 + $0xdb0] sm:$0xff]
        %v3061 = vld [vmem:[%s389 + $0xdb8] sm:$0xff]
        %v3062 = vld [vmem:[%s389 + $0xdc0] sm:$0xff]
        %v3063 = vld [vmem:[%s389 + $0xdc8] sm:$0xff]
        %v3064 = vld [vmem:[%s389 + $0xdd0] sm:$0xff]
        %v3065 = vld [vmem:[%s389 + $0xdd8] sm:$0xff]
        %v3066 = vld [vmem:[%s389 + $0xde0] sm:$0xff]
        %v3067 = vld [vmem:[%s389 + $0xde8] sm:$0xff]
        %v3068 = vld [vmem:[%s389 + $0xdf0] sm:$0xff]
        %v3069 = vld [vmem:[%s389 + $0xdf8] sm:$0xff]
        %v3070 = vld [vmem:[%s389 + $0xe00] sm:$0xff]
        %v3071 = vld [vmem:[%s389 + $0xe08] sm:$0xff]
        %v3072 = vld [vmem:[%s389 + $0xe10] sm:$0xff]
        %v3073 = vld [vmem:[%s389 + $0xe18] sm:$0xff]
        %v3074 = vld [vmem:[%s389 + $0xe20] sm:$0xff]
        %v3075 = vld [vmem:[%s389 + $0xe28] sm:$0xff]
        %v3076 = vld [vmem:[%s389 + $0xe30] sm:$0xff]
        %v3077 = vld [vmem:[%s389 + $0xe38] sm:$0xff]
        %v3078 = vld [vmem:[%s389 + $0xe40] sm:$0xff]
        %v3079 = vld [vmem:[%s389 + $0xe48] sm:$0xff]
        %v3080 = vld [vmem:[%s389 + $0xe50] sm:$0xff]
        %v3081 = vld [vmem:[%s389 + $0xe58] sm:$0xff]
        %v3082 = vld [vmem:[%s389 + $0xe60] sm:$0xff]
        %v3083 = vld [vmem:[%s389 + $0xe68] sm:$0xff]
        %v3084 = vld [vmem:[%s389 + $0xe70] sm:$0xff]
        %v3085 = vld [vmem:[%s389 + $0xe78] sm:$0xff]
        %v3086 = vld [vmem:[%s389 + $0xe80] sm:$0xff]
        %v3087 = vld [vmem:[%s389 + $0xe88] sm:$0xff]
        %v3088 = vld [vmem:[%s389 + $0xe90] sm:$0xff]
        %v3089 = vld [vmem:[%s389 + $0xe98] sm:$0xff]
        %v3090 = vld [vmem:[%s389 + $0xea0] sm:$0xff]
        %v3091 = vld [vmem:[%s389 + $0xea8] sm:$0xff]
        %v3092 = vld [vmem:[%s389 + $0xeb0] sm:$0xff]
        %v3093 = vld [vmem:[%s389 + $0xeb8] sm:$0xff]
        %v3094 = vld [vmem:[%s389 + $0xec0] sm:$0xff]
        %v3095 = vld [vmem:[%s389 + $0xec8] sm:$0xff]
        %v3096 = vld [vmem:[%s389 + $0xed0] sm:$0xff]
        %v3097 = vld [vmem:[%s389 + $0xed8] sm:$0xff]
        %v3098 = vld [vmem:[%s389 + $0xee0] sm:$0xff]
        %v3099 = vld [vmem:[%s389 + $0xee8] sm:$0xff]
        %v3100 = vld [vmem:[%s389 + $0xef0] sm:$0xff]
        %v3101 = vld [vmem:[%s389 + $0xef8] sm:$0xff]
        %v3102 = vld [vmem:[%s389 + $0xf00] sm:$0xff]
        %v3103 = vld [vmem:[%s389 + $0xf08] sm:$0xff]
        %v3104 = vld [vmem:[%s389 + $0xf10] sm:$0xff]
        %v3105 = vld [vmem:[%s389 + $0xf18] sm:$0xff]
        %v3106 = vld [vmem:[%s389 + $0xf20] sm:$0xff]
        %v3107 = vld [vmem:[%s389 + $0xf28] sm:$0xff]
        %v3108 = vld [vmem:[%s389 + $0xf30] sm:$0xff]
        %v3109 = vld [vmem:[%s389 + $0xf38] sm:$0xff]
        %v3110 = vld [vmem:[%s389 + $0xf40] sm:$0xff]
        %v3111 = vld [vmem:[%s389 + $0xf48] sm:$0xff]
        %v3112 = vld [vmem:[%s389 + $0xf50] sm:$0xff]
        %v3113 = vld [vmem:[%s389 + $0xf58] sm:$0xff]
        %v3114 = vld [vmem:[%s389 + $0xf60] sm:$0xff]
        %v3115 = vld [vmem:[%s389 + $0xf68] sm:$0xff]
        %v3116 = vld [vmem:[%s389 + $0xf70] sm:$0xff]
        %v3117 = vld [vmem:[%s389 + $0xf78] sm:$0xff]
        %v3118 = vld [vmem:[%s389 + $0xf80] sm:$0xff]
        %v3119 = vld [vmem:[%s389 + $0xf88] sm:$0xff]
        %v3120 = vld [vmem:[%s389 + $0xf90] sm:$0xff]
        %v3121 = vld [vmem:[%s389 + $0xf98] sm:$0xff]
        %v3122 = vld [vmem:[%s389 + $0xfa0] sm:$0xff]
        %v3123 = vld [vmem:[%s389 + $0xfa8] sm:$0xff]
        %v3124 = vld [vmem:[%s389 + $0xfb0] sm:$0xff]
        %v3125 = vld [vmem:[%s389 + $0xfb8] sm:$0xff]
        %v3126 = vld [vmem:[%s389 + $0xfc0] sm:$0xff]
        %v3127 = vld [vmem:[%s389 + $0xfc8] sm:$0xff]
        %v3128 = vld [vmem:[%s389 + $0xfd0] sm:$0xff]
        %v3129 = vld [vmem:[%s389 + $0xfd8] sm:$0xff]
        %v3130 = vld [vmem:[%s389 + $0xfe0] sm:$0xff]
        %v3131 = vld [vmem:[%s389 + $0xfe8] sm:$0xff]
        %v3132 = vld [vmem:[%s389 + $0xff0] sm:$0xff]
        %v3133 = vld [vmem:[%s389 + $0xff8] sm:$0xff]
        %v3134 = vld [vmem:[%s399] sm:$0xf]
        %v3136 = vperm.slane %v3134, 0
        %v3137 = vperm.slane %v3134, 1
        %v3138 = vperm.slane %v3134, 2
        %v3139 = vperm.slane %v3134, 3
        %v3160 = vunpack.c.l.b16 %v2606
        %v3161 = vunpack.c.h.b16 %v2606
        %v3162 = vunpack.c.l.b16 %v2607
        %v3163 = vunpack.c.h.b16 %v2607
        %v3164 = vunpack.c.l.b16 %v2608
        %v3165 = vunpack.c.h.b16 %v2608
        %v3166 = vunpack.c.l.b16 %v2609
        %v3167 = vunpack.c.h.b16 %v2609
        %v3168 = vunpack.c.l.b16 %v2610
        %v3169 = vunpack.c.h.b16 %v2610
        %v3170 = vunpack.c.l.b16 %v2611
        %v3171 = vunpack.c.h.b16 %v2611
        %v3172 = vunpack.c.l.b16 %v2612
        %v3173 = vunpack.c.h.b16 %v2612
        %v3174 = vunpack.c.l.b16 %v2613
        %v3175 = vunpack.c.h.b16 %v2613
        %v3176 = vunpack.c.l.b16 %v2614
        %v3177 = vunpack.c.h.b16 %v2614
        %v3178 = vunpack.c.l.b16 %v2615
        %v3179 = vunpack.c.h.b16 %v2615
        %v3180 = vunpack.c.l.b16 %v2616
        %v3181 = vunpack.c.h.b16 %v2616
        %v3182 = vunpack.c.l.b16 %v2617
        %v3183 = vunpack.c.h.b16 %v2617
        %v3184 = vunpack.c.l.b16 %v2618
        %v3185 = vunpack.c.h.b16 %v2618
        %v3186 = vunpack.c.l.b16 %v2619
        %v3187 = vunpack.c.h.b16 %v2619
        %v3188 = vunpack.c.l.b16 %v2620
        %v3189 = vunpack.c.h.b16 %v2620
        %v3190 = vunpack.c.l.b16 %v2621
        %v3191 = vunpack.c.h.b16 %v2621
        %v3192 = vpack.c.b16 %v3176, %v3160
        %v3193 = vpack.c.b16 %v3177, %v3161
        %v3194 = vpack.c.b16 %v3178, %v3162
        %v3195 = vpack.c.b16 %v3179, %v3163
        %v3196 = vpack.c.b16 %v3180, %v3164
        %v3197 = vpack.c.b16 %v3181, %v3165
        %v3198 = vpack.c.b16 %v3182, %v3166
        %v3199 = vpack.c.b16 %v3183, %v3167
        %v3200 = vpack.c.b16 %v3184, %v3168
        %v3201 = vpack.c.b16 %v3185, %v3169
        %v3202 = vpack.c.b16 %v3186, %v3170
        %v3203 = vpack.c.b16 %v3187, %v3171
        %v3204 = vpack.c.b16 %v3188, %v3172
        %v3205 = vpack.c.b16 %v3189, %v3173
        %v3206 = vpack.c.b16 %v3190, %v3174
        %v3207 = vpack.c.b16 %v3191, %v3175
        %v3736 = vunpack.c.l.b16 %v2622
        %v3737 = vunpack.c.h.b16 %v2622
        %v3738 = vunpack.c.l.b16 %v2623
        %v3739 = vunpack.c.h.b16 %v2623
        %v3740 = vunpack.c.l.b16 %v2624
        %v3741 = vunpack.c.h.b16 %v2624
        %v3742 = vunpack.c.l.b16 %v2625
        %v3743 = vunpack.c.h.b16 %v2625
        %v3744 = vunpack.c.l.b16 %v2626
        %v3745 = vunpack.c.h.b16 %v2626
        %v3746 = vunpack.c.l.b16 %v2627
        %v3747 = vunpack.c.h.b16 %v2627
        %v3748 = vunpack.c.l.b16 %v2628
        %v3749 = vunpack.c.h.b16 %v2628
        %v3750 = vunpack.c.l.b16 %v2629
        %v3751 = vunpack.c.h.b16 %v2629
        %v3752 = vunpack.c.l.b16 %v2630
        %v3753 = vunpack.c.h.b16 %v2630
        %v3754 = vunpack.c.l.b16 %v2631
        %v3755 = vunpack.c.h.b16 %v2631
        %v3756 = vunpack.c.l.b16 %v2632
        %v3757 = vunpack.c.h.b16 %v2632
        %v3758 = vunpack.c.l.b16 %v2633
        %v3759 = vunpack.c.h.b16 %v2633
        %v3760 = vunpack.c.l.b16 %v2634
        %v3761 = vunpack.c.h.b16 %v2634
        %v3762 = vunpack.c.l.b16 %v2635
        %v3763 = vunpack.c.h.b16 %v2635
        %v3764 = vunpack.c.l.b16 %v2636
        %v3765 = vunpack.c.h.b16 %v2636
        %v3766 = vunpack.c.l.b16 %v2637
        %v3767 = vunpack.c.h.b16 %v2637
        %v3768 = vunpack.c.l.b16 %v2638
        %v3769 = vunpack.c.h.b16 %v2638
        %v3770 = vunpack.c.l.b16 %v2639
        %v3771 = vunpack.c.h.b16 %v2639
        %v3772 = vunpack.c.l.b16 %v2640
        %v3773 = vunpack.c.h.b16 %v2640
        %v3774 = vunpack.c.l.b16 %v2641
        %v3775 = vunpack.c.h.b16 %v2641
        %v3776 = vunpack.c.l.b16 %v2642
        %v3777 = vunpack.c.h.b16 %v2642
        %v3778 = vunpack.c.l.b16 %v2643
        %v3779 = vunpack.c.h.b16 %v2643
        %v3780 = vunpack.c.l.b16 %v2644
        %v3781 = vunpack.c.h.b16 %v2644
        %v3782 = vunpack.c.l.b16 %v2645
        %v3783 = vunpack.c.h.b16 %v2645
        %v3784 = vunpack.c.l.b16 %v2646
        %v3785 = vunpack.c.h.b16 %v2646
        %v3786 = vunpack.c.l.b16 %v2647
        %v3787 = vunpack.c.h.b16 %v2647
        %v3788 = vunpack.c.l.b16 %v2648
        %v3789 = vunpack.c.h.b16 %v2648
        %v3790 = vunpack.c.l.b16 %v2649
        %v3791 = vunpack.c.h.b16 %v2649
        %v3792 = vunpack.c.l.b16 %v2650
        %v3793 = vunpack.c.h.b16 %v2650
        %v3794 = vunpack.c.l.b16 %v2651
        %v3795 = vunpack.c.h.b16 %v2651
        %v3796 = vunpack.c.l.b16 %v2652
        %v3797 = vunpack.c.h.b16 %v2652
        %v3798 = vunpack.c.l.b16 %v2653
        %v3799 = vunpack.c.h.b16 %v2653
        %v3800 = vunpack.c.l.b16 %v2654
        %v3801 = vunpack.c.h.b16 %v2654
        %v3802 = vunpack.c.l.b16 %v2655
        %v3803 = vunpack.c.h.b16 %v2655
        %v3804 = vunpack.c.l.b16 %v2656
        %v3805 = vunpack.c.h.b16 %v2656
        %v3806 = vunpack.c.l.b16 %v2657
        %v3807 = vunpack.c.h.b16 %v2657
        %v3808 = vunpack.c.l.b16 %v2658
        %v3809 = vunpack.c.h.b16 %v2658
        %v3810 = vunpack.c.l.b16 %v2659
        %v3811 = vunpack.c.h.b16 %v2659
        %v3812 = vunpack.c.l.b16 %v2660
        %v3813 = vunpack.c.h.b16 %v2660
        %v3814 = vunpack.c.l.b16 %v2661
        %v3815 = vunpack.c.h.b16 %v2661
        %v3816 = vunpack.c.l.b16 %v2662
        %v3817 = vunpack.c.h.b16 %v2662
        %v3818 = vunpack.c.l.b16 %v2663
        %v3819 = vunpack.c.h.b16 %v2663
        %v3820 = vunpack.c.l.b16 %v2664
        %v3821 = vunpack.c.h.b16 %v2664
        %v3822 = vunpack.c.l.b16 %v2665
        %v3823 = vunpack.c.h.b16 %v2665
        %v3824 = vunpack.c.l.b16 %v2666
        %v3825 = vunpack.c.h.b16 %v2666
        %v3826 = vunpack.c.l.b16 %v2667
        %v3827 = vunpack.c.h.b16 %v2667
        %v3828 = vunpack.c.l.b16 %v2668
        %v3829 = vunpack.c.h.b16 %v2668
        %v3830 = vunpack.c.l.b16 %v2669
        %v3831 = vunpack.c.h.b16 %v2669
        %v3832 = vunpack.c.l.b16 %v2670
        %v3833 = vunpack.c.h.b16 %v2670
        %v3834 = vunpack.c.l.b16 %v2671
        %v3835 = vunpack.c.h.b16 %v2671
        %v3836 = vunpack.c.l.b16 %v2672
        %v3837 = vunpack.c.h.b16 %v2672
        %v3838 = vunpack.c.l.b16 %v2673
        %v3839 = vunpack.c.h.b16 %v2673
        %v3840 = vunpack.c.l.b16 %v2674
        %v3841 = vunpack.c.h.b16 %v2674
        %v3842 = vunpack.c.l.b16 %v2675
        %v3843 = vunpack.c.h.b16 %v2675
        %v3844 = vunpack.c.l.b16 %v2676
        %v3845 = vunpack.c.h.b16 %v2676
        %v3846 = vunpack.c.l.b16 %v2677
        %v3847 = vunpack.c.h.b16 %v2677
        %v3848 = vunpack.c.l.b16 %v2678
        %v3849 = vunpack.c.h.b16 %v2678
        %v3850 = vunpack.c.l.b16 %v2679
        %v3851 = vunpack.c.h.b16 %v2679
        %v3852 = vunpack.c.l.b16 %v2680
        %v3853 = vunpack.c.h.b16 %v2680
        %v3854 = vunpack.c.l.b16 %v2681
        %v3855 = vunpack.c.h.b16 %v2681
        %v3856 = vunpack.c.l.b16 %v2682
        %v3857 = vunpack.c.h.b16 %v2682
        %v3858 = vunpack.c.l.b16 %v2683
        %v3859 = vunpack.c.h.b16 %v2683
        %v3860 = vunpack.c.l.b16 %v2684
        %v3861 = vunpack.c.h.b16 %v2684
        %v3862 = vunpack.c.l.b16 %v2685
        %v3863 = vunpack.c.h.b16 %v2685
        %v3864 = vunpack.c.l.b16 %v2686
        %v3865 = vunpack.c.h.b16 %v2686
        %v3866 = vunpack.c.l.b16 %v2687
        %v3867 = vunpack.c.h.b16 %v2687
        %v3868 = vunpack.c.l.b16 %v2688
        %v3869 = vunpack.c.h.b16 %v2688
        %v3870 = vunpack.c.l.b16 %v2689
        %v3871 = vunpack.c.h.b16 %v2689
        %v3872 = vunpack.c.l.b16 %v2690
        %v3873 = vunpack.c.h.b16 %v2690
        %v3874 = vunpack.c.l.b16 %v2691
        %v3875 = vunpack.c.h.b16 %v2691
        %v3876 = vunpack.c.l.b16 %v2692
        %v3877 = vunpack.c.h.b16 %v2692
        %v3878 = vunpack.c.l.b16 %v2693
        %v3879 = vunpack.c.h.b16 %v2693
        %v3880 = vunpack.c.l.b16 %v2694
        %v3881 = vunpack.c.h.b16 %v2694
        %v3882 = vunpack.c.l.b16 %v2695
        %v3883 = vunpack.c.h.b16 %v2695
        %v3884 = vunpack.c.l.b16 %v2696
        %v3885 = vunpack.c.h.b16 %v2696
        %v3886 = vunpack.c.l.b16 %v2697
        %v3887 = vunpack.c.h.b16 %v2697
        %v3888 = vunpack.c.l.b16 %v2698
        %v3889 = vunpack.c.h.b16 %v2698
        %v3890 = vunpack.c.l.b16 %v2699
        %v3891 = vunpack.c.h.b16 %v2699
        %v3892 = vunpack.c.l.b16 %v2700
        %v3893 = vunpack.c.h.b16 %v2700
        %v3894 = vunpack.c.l.b16 %v2701
        %v3895 = vunpack.c.h.b16 %v2701
        %v3896 = vunpack.c.l.b16 %v2702
        %v3897 = vunpack.c.h.b16 %v2702
        %v3898 = vunpack.c.l.b16 %v2703
        %v3899 = vunpack.c.h.b16 %v2703
        %v3900 = vunpack.c.l.b16 %v2704
        %v3901 = vunpack.c.h.b16 %v2704
        %v3902 = vunpack.c.l.b16 %v2705
        %v3903 = vunpack.c.h.b16 %v2705
        %v3904 = vunpack.c.l.b16 %v2706
        %v3905 = vunpack.c.h.b16 %v2706
        %v3906 = vunpack.c.l.b16 %v2707
        %v3907 = vunpack.c.h.b16 %v2707
        %v3908 = vunpack.c.l.b16 %v2708
        %v3909 = vunpack.c.h.b16 %v2708
        %v3910 = vunpack.c.l.b16 %v2709
        %v3911 = vunpack.c.h.b16 %v2709
        %v3912 = vunpack.c.l.b16 %v2710
        %v3913 = vunpack.c.h.b16 %v2710
        %v3914 = vunpack.c.l.b16 %v2711
        %v3915 = vunpack.c.h.b16 %v2711
        %v3916 = vunpack.c.l.b16 %v2712
        %v3917 = vunpack.c.h.b16 %v2712
        %v3918 = vunpack.c.l.b16 %v2713
        %v3919 = vunpack.c.h.b16 %v2713
        %v3920 = vunpack.c.l.b16 %v2714
        %v3921 = vunpack.c.h.b16 %v2714
        %v3922 = vunpack.c.l.b16 %v2715
        %v3923 = vunpack.c.h.b16 %v2715
        %v3924 = vunpack.c.l.b16 %v2716
        %v3925 = vunpack.c.h.b16 %v2716
        %v3926 = vunpack.c.l.b16 %v2717
        %v3927 = vunpack.c.h.b16 %v2717
        %v3928 = vunpack.c.l.b16 %v2718
        %v3929 = vunpack.c.h.b16 %v2718
        %v3930 = vunpack.c.l.b16 %v2719
        %v3931 = vunpack.c.h.b16 %v2719
        %v3932 = vunpack.c.l.b16 %v2720
        %v3933 = vunpack.c.h.b16 %v2720
        %v3934 = vunpack.c.l.b16 %v2721
        %v3935 = vunpack.c.h.b16 %v2721
        %v3936 = vunpack.c.l.b16 %v2722
        %v3937 = vunpack.c.h.b16 %v2722
        %v3938 = vunpack.c.l.b16 %v2723
        %v3939 = vunpack.c.h.b16 %v2723
        %v3940 = vunpack.c.l.b16 %v2724
        %v3941 = vunpack.c.h.b16 %v2724
        %v3942 = vunpack.c.l.b16 %v2725
        %v3943 = vunpack.c.h.b16 %v2725
        %v3944 = vunpack.c.l.b16 %v2726
        %v3945 = vunpack.c.h.b16 %v2726
        %v3946 = vunpack.c.l.b16 %v2727
        %v3947 = vunpack.c.h.b16 %v2727
        %v3948 = vunpack.c.l.b16 %v2728
        %v3949 = vunpack.c.h.b16 %v2728
        %v3950 = vunpack.c.l.b16 %v2729
        %v3951 = vunpack.c.h.b16 %v2729
        %v3952 = vunpack.c.l.b16 %v2730
        %v3953 = vunpack.c.h.b16 %v2730
        %v3954 = vunpack.c.l.b16 %v2731
        %v3955 = vunpack.c.h.b16 %v2731
        %v3956 = vunpack.c.l.b16 %v2732
        %v3957 = vunpack.c.h.b16 %v2732
        %v3958 = vunpack.c.l.b16 %v2733
        %v3959 = vunpack.c.h.b16 %v2733
        %v3960 = vunpack.c.l.b16 %v2734
        %v3961 = vunpack.c.h.b16 %v2734
        %v3962 = vunpack.c.l.b16 %v2735
        %v3963 = vunpack.c.h.b16 %v2735
        %v3964 = vunpack.c.l.b16 %v2736
        %v3965 = vunpack.c.h.b16 %v2736
        %v3966 = vunpack.c.l.b16 %v2737
        %v3967 = vunpack.c.h.b16 %v2737
        %v3968 = vunpack.c.l.b16 %v2738
        %v3969 = vunpack.c.h.b16 %v2738
        %v3970 = vunpack.c.l.b16 %v2739
        %v3971 = vunpack.c.h.b16 %v2739
        %v3972 = vunpack.c.l.b16 %v2740
        %v3973 = vunpack.c.h.b16 %v2740
        %v3974 = vunpack.c.l.b16 %v2741
        %v3975 = vunpack.c.h.b16 %v2741
        %v3976 = vunpack.c.l.b16 %v2742
        %v3977 = vunpack.c.h.b16 %v2742
        %v3978 = vunpack.c.l.b16 %v2743
        %v3979 = vunpack.c.h.b16 %v2743
        %v3980 = vunpack.c.l.b16 %v2744
        %v3981 = vunpack.c.h.b16 %v2744
        %v3982 = vunpack.c.l.b16 %v2745
        %v3983 = vunpack.c.h.b16 %v2745
        %v3984 = vunpack.c.l.b16 %v2746
        %v3985 = vunpack.c.h.b16 %v2746
        %v3986 = vunpack.c.l.b16 %v2747
        %v3987 = vunpack.c.h.b16 %v2747
        %v3988 = vunpack.c.l.b16 %v2748
        %v3989 = vunpack.c.h.b16 %v2748
        %v3990 = vunpack.c.l.b16 %v2749
        %v3991 = vunpack.c.h.b16 %v2749
        %v3992 = vunpack.c.l.b16 %v2750
        %v3993 = vunpack.c.h.b16 %v2750
        %v3994 = vunpack.c.l.b16 %v2751
        %v3995 = vunpack.c.h.b16 %v2751
        %v3996 = vunpack.c.l.b16 %v2752
        %v3997 = vunpack.c.h.b16 %v2752
        %v3998 = vunpack.c.l.b16 %v2753
        %v3999 = vunpack.c.h.b16 %v2753
        %v4000 = vunpack.c.l.b16 %v2754
        %v4001 = vunpack.c.h.b16 %v2754
        %v4002 = vunpack.c.l.b16 %v2755
        %v4003 = vunpack.c.h.b16 %v2755
        %v4004 = vunpack.c.l.b16 %v2756
        %v4005 = vunpack.c.h.b16 %v2756
        %v4006 = vunpack.c.l.b16 %v2757
        %v4007 = vunpack.c.h.b16 %v2757
        %v4008 = vunpack.c.l.b16 %v2758
        %v4009 = vunpack.c.h.b16 %v2758
        %v4010 = vunpack.c.l.b16 %v2759
        %v4011 = vunpack.c.h.b16 %v2759
        %v4012 = vunpack.c.l.b16 %v2760
        %v4013 = vunpack.c.h.b16 %v2760
        %v4014 = vunpack.c.l.b16 %v2761
        %v4015 = vunpack.c.h.b16 %v2761
        %v4016 = vunpack.c.l.b16 %v2762
        %v4017 = vunpack.c.h.b16 %v2762
        %v4018 = vunpack.c.l.b16 %v2763
        %v4019 = vunpack.c.h.b16 %v2763
        %v4020 = vunpack.c.l.b16 %v2764
        %v4021 = vunpack.c.h.b16 %v2764
        %v4022 = vunpack.c.l.b16 %v2765
        %v4023 = vunpack.c.h.b16 %v2765
        %v4024 = vunpack.c.l.b16 %v2766
        %v4025 = vunpack.c.h.b16 %v2766
        %v4026 = vunpack.c.l.b16 %v2767
        %v4027 = vunpack.c.h.b16 %v2767
        %v4028 = vunpack.c.l.b16 %v2768
        %v4029 = vunpack.c.h.b16 %v2768
        %v4030 = vunpack.c.l.b16 %v2769
        %v4031 = vunpack.c.h.b16 %v2769
        %v4032 = vunpack.c.l.b16 %v2770
        %v4033 = vunpack.c.h.b16 %v2770
        %v4034 = vunpack.c.l.b16 %v2771
        %v4035 = vunpack.c.h.b16 %v2771
        %v4036 = vunpack.c.l.b16 %v2772
        %v4037 = vunpack.c.h.b16 %v2772
        %v4038 = vunpack.c.l.b16 %v2773
        %v4039 = vunpack.c.h.b16 %v2773
        %v4040 = vunpack.c.l.b16 %v2774
        %v4041 = vunpack.c.h.b16 %v2774
        %v4042 = vunpack.c.l.b16 %v2775
        %v4043 = vunpack.c.h.b16 %v2775
        %v4044 = vunpack.c.l.b16 %v2776
        %v4045 = vunpack.c.h.b16 %v2776
        %v4046 = vunpack.c.l.b16 %v2777
        %v4047 = vunpack.c.h.b16 %v2777
        %v4048 = vunpack.c.l.b16 %v2778
        %v4049 = vunpack.c.h.b16 %v2778
        %v4050 = vunpack.c.l.b16 %v2779
        %v4051 = vunpack.c.h.b16 %v2779
        %v4052 = vunpack.c.l.b16 %v2780
        %v4053 = vunpack.c.h.b16 %v2780
        %v4054 = vunpack.c.l.b16 %v2781
        %v4055 = vunpack.c.h.b16 %v2781
        %v4056 = vunpack.c.l.b16 %v2782
        %v4057 = vunpack.c.h.b16 %v2782
        %v4058 = vunpack.c.l.b16 %v2783
        %v4059 = vunpack.c.h.b16 %v2783
        %v4060 = vunpack.c.l.b16 %v2784
        %v4061 = vunpack.c.h.b16 %v2784
        %v4062 = vunpack.c.l.b16 %v2785
        %v4063 = vunpack.c.h.b16 %v2785
        %v4064 = vunpack.c.l.b16 %v2786
        %v4065 = vunpack.c.h.b16 %v2786
        %v4066 = vunpack.c.l.b16 %v2787
        %v4067 = vunpack.c.h.b16 %v2787
        %v4068 = vunpack.c.l.b16 %v2788
        %v4069 = vunpack.c.h.b16 %v2788
        %v4070 = vunpack.c.l.b16 %v2789
        %v4071 = vunpack.c.h.b16 %v2789
        %v4072 = vunpack.c.l.b16 %v2790
        %v4073 = vunpack.c.h.b16 %v2790
        %v4074 = vunpack.c.l.b16 %v2791
        %v4075 = vunpack.c.h.b16 %v2791
        %v4076 = vunpack.c.l.b16 %v2792
        %v4077 = vunpack.c.h.b16 %v2792
        %v4078 = vunpack.c.l.b16 %v2793
        %v4079 = vunpack.c.h.b16 %v2793
        %v4080 = vunpack.c.l.b16 %v2794
        %v4081 = vunpack.c.h.b16 %v2794
        %v4082 = vunpack.c.l.b16 %v2795
        %v4083 = vunpack.c.h.b16 %v2795
        %v4084 = vunpack.c.l.b16 %v2796
        %v4085 = vunpack.c.h.b16 %v2796
        %v4086 = vunpack.c.l.b16 %v2797
        %v4087 = vunpack.c.h.b16 %v2797
        %v4088 = vunpack.c.l.b16 %v2798
        %v4089 = vunpack.c.h.b16 %v2798
        %v4090 = vunpack.c.l.b16 %v2799
        %v4091 = vunpack.c.h.b16 %v2799
        %v4092 = vunpack.c.l.b16 %v2800
        %v4093 = vunpack.c.h.b16 %v2800
        %v4094 = vunpack.c.l.b16 %v2801
        %v4095 = vunpack.c.h.b16 %v2801
        %v4096 = vunpack.c.l.b16 %v2802
        %v4097 = vunpack.c.h.b16 %v2802
        %v4098 = vunpack.c.l.b16 %v2803
        %v4099 = vunpack.c.h.b16 %v2803
        %v4100 = vunpack.c.l.b16 %v2804
        %v4101 = vunpack.c.h.b16 %v2804
        %v4102 = vunpack.c.l.b16 %v2805
        %v4103 = vunpack.c.h.b16 %v2805
        %v4104 = vunpack.c.l.b16 %v2806
        %v4105 = vunpack.c.h.b16 %v2806
        %v4106 = vunpack.c.l.b16 %v2807
        %v4107 = vunpack.c.h.b16 %v2807
        %v4108 = vunpack.c.l.b16 %v2808
        %v4109 = vunpack.c.h.b16 %v2808
        %v4110 = vunpack.c.l.b16 %v2809
        %v4111 = vunpack.c.h.b16 %v2809
        %v4112 = vunpack.c.l.b16 %v2810
        %v4113 = vunpack.c.h.b16 %v2810
        %v4114 = vunpack.c.l.b16 %v2811
        %v4115 = vunpack.c.h.b16 %v2811
        %v4116 = vunpack.c.l.b16 %v2812
        %v4117 = vunpack.c.h.b16 %v2812
        %v4118 = vunpack.c.l.b16 %v2813
        %v4119 = vunpack.c.h.b16 %v2813
        %v4120 = vunpack.c.l.b16 %v2814
        %v4121 = vunpack.c.h.b16 %v2814
        %v4122 = vunpack.c.l.b16 %v2815
        %v4123 = vunpack.c.h.b16 %v2815
        %v4124 = vunpack.c.l.b16 %v2816
        %v4125 = vunpack.c.h.b16 %v2816
        %v4126 = vunpack.c.l.b16 %v2817
        %v4127 = vunpack.c.h.b16 %v2817
        %v4128 = vunpack.c.l.b16 %v2818
        %v4129 = vunpack.c.h.b16 %v2818
        %v4130 = vunpack.c.l.b16 %v2819
        %v4131 = vunpack.c.h.b16 %v2819
        %v4132 = vunpack.c.l.b16 %v2820
        %v4133 = vunpack.c.h.b16 %v2820
        %v4134 = vunpack.c.l.b16 %v2821
        %v4135 = vunpack.c.h.b16 %v2821
        %v4136 = vunpack.c.l.b16 %v2822
        %v4137 = vunpack.c.h.b16 %v2822
        %v4138 = vunpack.c.l.b16 %v2823
        %v4139 = vunpack.c.h.b16 %v2823
        %v4140 = vunpack.c.l.b16 %v2824
        %v4141 = vunpack.c.h.b16 %v2824
        %v4142 = vunpack.c.l.b16 %v2825
        %v4143 = vunpack.c.h.b16 %v2825
        %v4144 = vunpack.c.l.b16 %v2826
        %v4145 = vunpack.c.h.b16 %v2826
        %v4146 = vunpack.c.l.b16 %v2827
        %v4147 = vunpack.c.h.b16 %v2827
        %v4148 = vunpack.c.l.b16 %v2828
        %v4149 = vunpack.c.h.b16 %v2828
        %v4150 = vunpack.c.l.b16 %v2829
        %v4151 = vunpack.c.h.b16 %v2829
        %v4152 = vunpack.c.l.b16 %v2830
        %v4153 = vunpack.c.h.b16 %v2830
        %v4154 = vunpack.c.l.b16 %v2831
        %v4155 = vunpack.c.h.b16 %v2831
        %v4156 = vunpack.c.l.b16 %v2832
        %v4157 = vunpack.c.h.b16 %v2832
        %v4158 = vunpack.c.l.b16 %v2833
        %v4159 = vunpack.c.h.b16 %v2833
        %v4160 = vunpack.c.l.b16 %v2834
        %v4161 = vunpack.c.h.b16 %v2834
        %v4162 = vunpack.c.l.b16 %v2835
        %v4163 = vunpack.c.h.b16 %v2835
        %v4164 = vunpack.c.l.b16 %v2836
        %v4165 = vunpack.c.h.b16 %v2836
        %v4166 = vunpack.c.l.b16 %v2837
        %v4167 = vunpack.c.h.b16 %v2837
        %v4168 = vunpack.c.l.b16 %v2838
        %v4169 = vunpack.c.h.b16 %v2838
        %v4170 = vunpack.c.l.b16 %v2839
        %v4171 = vunpack.c.h.b16 %v2839
        %v4172 = vunpack.c.l.b16 %v2840
        %v4173 = vunpack.c.h.b16 %v2840
        %v4174 = vunpack.c.l.b16 %v2841
        %v4175 = vunpack.c.h.b16 %v2841
        %v4176 = vunpack.c.l.b16 %v2842
        %v4177 = vunpack.c.h.b16 %v2842
        %v4178 = vunpack.c.l.b16 %v2843
        %v4179 = vunpack.c.h.b16 %v2843
        %v4180 = vunpack.c.l.b16 %v2844
        %v4181 = vunpack.c.h.b16 %v2844
        %v4182 = vunpack.c.l.b16 %v2845
        %v4183 = vunpack.c.h.b16 %v2845
        %v4184 = vunpack.c.l.b16 %v2846
        %v4185 = vunpack.c.h.b16 %v2846
        %v4186 = vunpack.c.l.b16 %v2847
        %v4187 = vunpack.c.h.b16 %v2847
        %v4188 = vunpack.c.l.b16 %v2848
        %v4189 = vunpack.c.h.b16 %v2848
        %v4190 = vunpack.c.l.b16 %v2849
        %v4191 = vunpack.c.h.b16 %v2849
        %v4192 = vunpack.c.l.b16 %v2850
        %v4193 = vunpack.c.h.b16 %v2850
        %v4194 = vunpack.c.l.b16 %v2851
        %v4195 = vunpack.c.h.b16 %v2851
        %v4196 = vunpack.c.l.b16 %v2852
        %v4197 = vunpack.c.h.b16 %v2852
        %v4198 = vunpack.c.l.b16 %v2853
        %v4199 = vunpack.c.h.b16 %v2853
        %v4200 = vunpack.c.l.b16 %v2854
        %v4201 = vunpack.c.h.b16 %v2854
        %v4202 = vunpack.c.l.b16 %v2855
        %v4203 = vunpack.c.h.b16 %v2855
        %v4204 = vunpack.c.l.b16 %v2856
        %v4205 = vunpack.c.h.b16 %v2856
        %v4206 = vunpack.c.l.b16 %v2857
        %v4207 = vunpack.c.h.b16 %v2857
        %v4208 = vunpack.c.l.b16 %v2858
        %v4209 = vunpack.c.h.b16 %v2858
        %v4210 = vunpack.c.l.b16 %v2859
        %v4211 = vunpack.c.h.b16 %v2859
        %v4212 = vunpack.c.l.b16 %v2860
        %v4213 = vunpack.c.h.b16 %v2860
        %v4214 = vunpack.c.l.b16 %v2861
        %v4215 = vunpack.c.h.b16 %v2861
        %v4216 = vunpack.c.l.b16 %v2862
        %v4217 = vunpack.c.h.b16 %v2862
        %v4218 = vunpack.c.l.b16 %v2863
        %v4219 = vunpack.c.h.b16 %v2863
        %v4220 = vunpack.c.l.b16 %v2864
        %v4221 = vunpack.c.h.b16 %v2864
        %v4222 = vunpack.c.l.b16 %v2865
        %v4223 = vunpack.c.h.b16 %v2865
        %v4224 = vunpack.c.l.b16 %v2866
        %v4225 = vunpack.c.h.b16 %v2866
        %v4226 = vunpack.c.l.b16 %v2867
        %v4227 = vunpack.c.h.b16 %v2867
        %v4228 = vunpack.c.l.b16 %v2868
        %v4229 = vunpack.c.h.b16 %v2868
        %v4230 = vunpack.c.l.b16 %v2869
        %v4231 = vunpack.c.h.b16 %v2869
        %v4232 = vunpack.c.l.b16 %v2870
        %v4233 = vunpack.c.h.b16 %v2870
        %v4234 = vunpack.c.l.b16 %v2871
        %v4235 = vunpack.c.h.b16 %v2871
        %v4236 = vunpack.c.l.b16 %v2872
        %v4237 = vunpack.c.h.b16 %v2872
        %v4238 = vunpack.c.l.b16 %v2873
        %v4239 = vunpack.c.h.b16 %v2873
        %v4240 = vunpack.c.l.b16 %v2874
        %v4241 = vunpack.c.h.b16 %v2874
        %v4242 = vunpack.c.l.b16 %v2875
        %v4243 = vunpack.c.h.b16 %v2875
        %v4244 = vunpack.c.l.b16 %v2876
        %v4245 = vunpack.c.h.b16 %v2876
        %v4246 = vunpack.c.l.b16 %v2877
        %v4247 = vunpack.c.h.b16 %v2877
        %v4248 = vunpack.c.l.b16 %v2878
        %v4249 = vunpack.c.h.b16 %v2878
        %v4250 = vunpack.c.l.b16 %v2879
        %v4251 = vunpack.c.h.b16 %v2879
        %v4252 = vunpack.c.l.b16 %v2880
        %v4253 = vunpack.c.h.b16 %v2880
        %v4254 = vunpack.c.l.b16 %v2881
        %v4255 = vunpack.c.h.b16 %v2881
        %v4256 = vunpack.c.l.b16 %v2882
        %v4257 = vunpack.c.h.b16 %v2882
        %v4258 = vunpack.c.l.b16 %v2883
        %v4259 = vunpack.c.h.b16 %v2883
        %v4260 = vunpack.c.l.b16 %v2884
        %v4261 = vunpack.c.h.b16 %v2884
        %v4262 = vunpack.c.l.b16 %v2885
        %v4263 = vunpack.c.h.b16 %v2885
        %v4264 = vunpack.c.l.b16 %v2886
        %v4265 = vunpack.c.h.b16 %v2886
        %v4266 = vunpack.c.l.b16 %v2887
        %v4267 = vunpack.c.h.b16 %v2887
        %v4268 = vunpack.c.l.b16 %v2888
        %v4269 = vunpack.c.h.b16 %v2888
        %v4270 = vunpack.c.l.b16 %v2889
        %v4271 = vunpack.c.h.b16 %v2889
        %v4272 = vunpack.c.l.b16 %v2890
        %v4273 = vunpack.c.h.b16 %v2890
        %v4274 = vunpack.c.l.b16 %v2891
        %v4275 = vunpack.c.h.b16 %v2891
        %v4276 = vunpack.c.l.b16 %v2892
        %v4277 = vunpack.c.h.b16 %v2892
        %v4278 = vunpack.c.l.b16 %v2893
        %v4279 = vunpack.c.h.b16 %v2893
        %v4280 = vunpack.c.l.b16 %v2894
        %v4281 = vunpack.c.h.b16 %v2894
        %v4282 = vunpack.c.l.b16 %v2895
        %v4283 = vunpack.c.h.b16 %v2895
        %v4284 = vunpack.c.l.b16 %v2896
        %v4285 = vunpack.c.h.b16 %v2896
        %v4286 = vunpack.c.l.b16 %v2897
        %v4287 = vunpack.c.h.b16 %v2897
        %v4288 = vunpack.c.l.b16 %v2898
        %v4289 = vunpack.c.h.b16 %v2898
        %v4290 = vunpack.c.l.b16 %v2899
        %v4291 = vunpack.c.h.b16 %v2899
        %v4292 = vunpack.c.l.b16 %v2900
        %v4293 = vunpack.c.h.b16 %v2900
        %v4294 = vunpack.c.l.b16 %v2901
        %v4295 = vunpack.c.h.b16 %v2901
        %v4296 = vunpack.c.l.b16 %v2902
        %v4297 = vunpack.c.h.b16 %v2902
        %v4298 = vunpack.c.l.b16 %v2903
        %v4299 = vunpack.c.h.b16 %v2903
        %v4300 = vunpack.c.l.b16 %v2904
        %v4301 = vunpack.c.h.b16 %v2904
        %v4302 = vunpack.c.l.b16 %v2905
        %v4303 = vunpack.c.h.b16 %v2905
        %v4304 = vunpack.c.l.b16 %v2906
        %v4305 = vunpack.c.h.b16 %v2906
        %v4306 = vunpack.c.l.b16 %v2907
        %v4307 = vunpack.c.h.b16 %v2907
        %v4308 = vunpack.c.l.b16 %v2908
        %v4309 = vunpack.c.h.b16 %v2908
        %v4310 = vunpack.c.l.b16 %v2909
        %v4311 = vunpack.c.h.b16 %v2909
        %v4312 = vunpack.c.l.b16 %v2910
        %v4313 = vunpack.c.h.b16 %v2910
        %v4314 = vunpack.c.l.b16 %v2911
        %v4315 = vunpack.c.h.b16 %v2911
        %v4316 = vunpack.c.l.b16 %v2912
        %v4317 = vunpack.c.h.b16 %v2912
        %v4318 = vunpack.c.l.b16 %v2913
        %v4319 = vunpack.c.h.b16 %v2913
        %v4320 = vunpack.c.l.b16 %v2914
        %v4321 = vunpack.c.h.b16 %v2914
        %v4322 = vunpack.c.l.b16 %v2915
        %v4323 = vunpack.c.h.b16 %v2915
        %v4324 = vunpack.c.l.b16 %v2916
        %v4325 = vunpack.c.h.b16 %v2916
        %v4326 = vunpack.c.l.b16 %v2917
        %v4327 = vunpack.c.h.b16 %v2917
        %v4328 = vunpack.c.l.b16 %v2918
        %v4329 = vunpack.c.h.b16 %v2918
        %v4330 = vunpack.c.l.b16 %v2919
        %v4331 = vunpack.c.h.b16 %v2919
        %v4332 = vunpack.c.l.b16 %v2920
        %v4333 = vunpack.c.h.b16 %v2920
        %v4334 = vunpack.c.l.b16 %v2921
        %v4335 = vunpack.c.h.b16 %v2921
        %v4336 = vunpack.c.l.b16 %v2922
        %v4337 = vunpack.c.h.b16 %v2922
        %v4338 = vunpack.c.l.b16 %v2923
        %v4339 = vunpack.c.h.b16 %v2923
        %v4340 = vunpack.c.l.b16 %v2924
        %v4341 = vunpack.c.h.b16 %v2924
        %v4342 = vunpack.c.l.b16 %v2925
        %v4343 = vunpack.c.h.b16 %v2925
        %v4344 = vunpack.c.l.b16 %v2926
        %v4345 = vunpack.c.h.b16 %v2926
        %v4346 = vunpack.c.l.b16 %v2927
        %v4347 = vunpack.c.h.b16 %v2927
        %v4348 = vunpack.c.l.b16 %v2928
        %v4349 = vunpack.c.h.b16 %v2928
        %v4350 = vunpack.c.l.b16 %v2929
        %v4351 = vunpack.c.h.b16 %v2929
        %v4352 = vunpack.c.l.b16 %v2930
        %v4353 = vunpack.c.h.b16 %v2930
        %v4354 = vunpack.c.l.b16 %v2931
        %v4355 = vunpack.c.h.b16 %v2931
        %v4356 = vunpack.c.l.b16 %v2932
        %v4357 = vunpack.c.h.b16 %v2932
        %v4358 = vunpack.c.l.b16 %v2933
        %v4359 = vunpack.c.h.b16 %v2933
        %v4360 = vunpack.c.l.b16 %v2934
        %v4361 = vunpack.c.h.b16 %v2934
        %v4362 = vunpack.c.l.b16 %v2935
        %v4363 = vunpack.c.h.b16 %v2935
        %v4364 = vunpack.c.l.b16 %v2936
        %v4365 = vunpack.c.h.b16 %v2936
        %v4366 = vunpack.c.l.b16 %v2937
        %v4367 = vunpack.c.h.b16 %v2937
        %v4368 = vunpack.c.l.b16 %v2938
        %v4369 = vunpack.c.h.b16 %v2938
        %v4370 = vunpack.c.l.b16 %v2939
        %v4371 = vunpack.c.h.b16 %v2939
        %v4372 = vunpack.c.l.b16 %v2940
        %v4373 = vunpack.c.h.b16 %v2940
        %v4374 = vunpack.c.l.b16 %v2941
        %v4375 = vunpack.c.h.b16 %v2941
        %v4376 = vunpack.c.l.b16 %v2942
        %v4377 = vunpack.c.h.b16 %v2942
        %v4378 = vunpack.c.l.b16 %v2943
        %v4379 = vunpack.c.h.b16 %v2943
        %v4380 = vunpack.c.l.b16 %v2944
        %v4381 = vunpack.c.h.b16 %v2944
        %v4382 = vunpack.c.l.b16 %v2945
        %v4383 = vunpack.c.h.b16 %v2945
        %v4384 = vunpack.c.l.b16 %v2946
        %v4385 = vunpack.c.h.b16 %v2946
        %v4386 = vunpack.c.l.b16 %v2947
        %v4387 = vunpack.c.h.b16 %v2947
        %v4388 = vunpack.c.l.b16 %v2948
        %v4389 = vunpack.c.h.b16 %v2948
        %v4390 = vunpack.c.l.b16 %v2949
        %v4391 = vunpack.c.h.b16 %v2949
        %v4392 = vunpack.c.l.b16 %v2950
        %v4393 = vunpack.c.h.b16 %v2950
        %v4394 = vunpack.c.l.b16 %v2951
        %v4395 = vunpack.c.h.b16 %v2951
        %v4396 = vunpack.c.l.b16 %v2952
        %v4397 = vunpack.c.h.b16 %v2952
        %v4398 = vunpack.c.l.b16 %v2953
        %v4399 = vunpack.c.h.b16 %v2953
        %v4400 = vunpack.c.l.b16 %v2954
        %v4401 = vunpack.c.h.b16 %v2954
        %v4402 = vunpack.c.l.b16 %v2955
        %v4403 = vunpack.c.h.b16 %v2955
        %v4404 = vunpack.c.l.b16 %v2956
        %v4405 = vunpack.c.h.b16 %v2956
        %v4406 = vunpack.c.l.b16 %v2957
        %v4407 = vunpack.c.h.b16 %v2957
        %v4408 = vunpack.c.l.b16 %v2958
        %v4409 = vunpack.c.h.b16 %v2958
        %v4410 = vunpack.c.l.b16 %v2959
        %v4411 = vunpack.c.h.b16 %v2959
        %v4412 = vunpack.c.l.b16 %v2960
        %v4413 = vunpack.c.h.b16 %v2960
        %v4414 = vunpack.c.l.b16 %v2961
        %v4415 = vunpack.c.h.b16 %v2961
        %v4416 = vunpack.c.l.b16 %v2962
        %v4417 = vunpack.c.h.b16 %v2962
        %v4418 = vunpack.c.l.b16 %v2963
        %v4419 = vunpack.c.h.b16 %v2963
        %v4420 = vunpack.c.l.b16 %v2964
        %v4421 = vunpack.c.h.b16 %v2964
        %v4422 = vunpack.c.l.b16 %v2965
        %v4423 = vunpack.c.h.b16 %v2965
        %v4424 = vunpack.c.l.b16 %v2966
        %v4425 = vunpack.c.h.b16 %v2966
        %v4426 = vunpack.c.l.b16 %v2967
        %v4427 = vunpack.c.h.b16 %v2967
        %v4428 = vunpack.c.l.b16 %v2968
        %v4429 = vunpack.c.h.b16 %v2968
        %v4430 = vunpack.c.l.b16 %v2969
        %v4431 = vunpack.c.h.b16 %v2969
        %v4432 = vunpack.c.l.b16 %v2970
        %v4433 = vunpack.c.h.b16 %v2970
        %v4434 = vunpack.c.l.b16 %v2971
        %v4435 = vunpack.c.h.b16 %v2971
        %v4436 = vunpack.c.l.b16 %v2972
        %v4437 = vunpack.c.h.b16 %v2972
        %v4438 = vunpack.c.l.b16 %v2973
        %v4439 = vunpack.c.h.b16 %v2973
        %v4440 = vunpack.c.l.b16 %v2974
        %v4441 = vunpack.c.h.b16 %v2974
        %v4442 = vunpack.c.l.b16 %v2975
        %v4443 = vunpack.c.h.b16 %v2975
        %v4444 = vunpack.c.l.b16 %v2976
        %v4445 = vunpack.c.h.b16 %v2976
        %v4446 = vunpack.c.l.b16 %v2977
        %v4447 = vunpack.c.h.b16 %v2977
        %v4448 = vunpack.c.l.b16 %v2978
        %v4449 = vunpack.c.h.b16 %v2978
        %v4450 = vunpack.c.l.b16 %v2979
        %v4451 = vunpack.c.h.b16 %v2979
        %v4452 = vunpack.c.l.b16 %v2980
        %v4453 = vunpack.c.h.b16 %v2980
        %v4454 = vunpack.c.l.b16 %v2981
        %v4455 = vunpack.c.h.b16 %v2981
        %v4456 = vunpack.c.l.b16 %v2982
        %v4457 = vunpack.c.h.b16 %v2982
        %v4458 = vunpack.c.l.b16 %v2983
        %v4459 = vunpack.c.h.b16 %v2983
        %v4460 = vunpack.c.l.b16 %v2984
        %v4461 = vunpack.c.h.b16 %v2984
        %v4462 = vunpack.c.l.b16 %v2985
        %v4463 = vunpack.c.h.b16 %v2985
        %v4464 = vunpack.c.l.b16 %v2986
        %v4465 = vunpack.c.h.b16 %v2986
        %v4466 = vunpack.c.l.b16 %v2987
        %v4467 = vunpack.c.h.b16 %v2987
        %v4468 = vunpack.c.l.b16 %v2988
        %v4469 = vunpack.c.h.b16 %v2988
        %v4470 = vunpack.c.l.b16 %v2989
        %v4471 = vunpack.c.h.b16 %v2989
        %v4472 = vunpack.c.l.b16 %v2990
        %v4473 = vunpack.c.h.b16 %v2990
        %v4474 = vunpack.c.l.b16 %v2991
        %v4475 = vunpack.c.h.b16 %v2991
        %v4476 = vunpack.c.l.b16 %v2992
        %v4477 = vunpack.c.h.b16 %v2992
        %v4478 = vunpack.c.l.b16 %v2993
        %v4479 = vunpack.c.h.b16 %v2993
        %v4480 = vunpack.c.l.b16 %v2994
        %v4481 = vunpack.c.h.b16 %v2994
        %v4482 = vunpack.c.l.b16 %v2995
        %v4483 = vunpack.c.h.b16 %v2995
        %v4484 = vunpack.c.l.b16 %v2996
        %v4485 = vunpack.c.h.b16 %v2996
        %v4486 = vunpack.c.l.b16 %v2997
        %v4487 = vunpack.c.h.b16 %v2997
        %v4488 = vunpack.c.l.b16 %v2998
        %v4489 = vunpack.c.h.b16 %v2998
        %v4490 = vunpack.c.l.b16 %v2999
        %v4491 = vunpack.c.h.b16 %v2999
        %v4492 = vunpack.c.l.b16 %v3000
        %v4493 = vunpack.c.h.b16 %v3000
        %v4494 = vunpack.c.l.b16 %v3001
        %v4495 = vunpack.c.h.b16 %v3001
        %v4496 = vunpack.c.l.b16 %v3002
        %v4497 = vunpack.c.h.b16 %v3002
        %v4498 = vunpack.c.l.b16 %v3003
        %v4499 = vunpack.c.h.b16 %v3003
        %v4500 = vunpack.c.l.b16 %v3004
        %v4501 = vunpack.c.h.b16 %v3004
        %v4502 = vunpack.c.l.b16 %v3005
        %v4503 = vunpack.c.h.b16 %v3005
        %v4504 = vunpack.c.l.b16 %v3006
        %v4505 = vunpack.c.h.b16 %v3006
        %v4506 = vunpack.c.l.b16 %v3007
        %v4507 = vunpack.c.h.b16 %v3007
        %v4508 = vunpack.c.l.b16 %v3008
        %v4509 = vunpack.c.h.b16 %v3008
        %v4510 = vunpack.c.l.b16 %v3009
        %v4511 = vunpack.c.h.b16 %v3009
        %v4512 = vunpack.c.l.b16 %v3010
        %v4513 = vunpack.c.h.b16 %v3010
        %v4514 = vunpack.c.l.b16 %v3011
        %v4515 = vunpack.c.h.b16 %v3011
        %v4516 = vunpack.c.l.b16 %v3012
        %v4517 = vunpack.c.h.b16 %v3012
        %v4518 = vunpack.c.l.b16 %v3013
        %v4519 = vunpack.c.h.b16 %v3013
        %v4520 = vunpack.c.l.b16 %v3014
        %v4521 = vunpack.c.h.b16 %v3014
        %v4522 = vunpack.c.l.b16 %v3015
        %v4523 = vunpack.c.h.b16 %v3015
        %v4524 = vunpack.c.l.b16 %v3016
        %v4525 = vunpack.c.h.b16 %v3016
        %v4526 = vunpack.c.l.b16 %v3017
        %v4527 = vunpack.c.h.b16 %v3017
        %v4528 = vunpack.c.l.b16 %v3018
        %v4529 = vunpack.c.h.b16 %v3018
        %v4530 = vunpack.c.l.b16 %v3019
        %v4531 = vunpack.c.h.b16 %v3019
        %v4532 = vunpack.c.l.b16 %v3020
        %v4533 = vunpack.c.h.b16 %v3020
        %v4534 = vunpack.c.l.b16 %v3021
        %v4535 = vunpack.c.h.b16 %v3021
        %v4536 = vunpack.c.l.b16 %v3022
        %v4537 = vunpack.c.h.b16 %v3022
        %v4538 = vunpack.c.l.b16 %v3023
        %v4539 = vunpack.c.h.b16 %v3023
        %v4540 = vunpack.c.l.b16 %v3024
        %v4541 = vunpack.c.h.b16 %v3024
        %v4542 = vunpack.c.l.b16 %v3025
        %v4543 = vunpack.c.h.b16 %v3025
        %v4544 = vunpack.c.l.b16 %v3026
        %v4545 = vunpack.c.h.b16 %v3026
        %v4546 = vunpack.c.l.b16 %v3027
        %v4547 = vunpack.c.h.b16 %v3027
        %v4548 = vunpack.c.l.b16 %v3028
        %v4549 = vunpack.c.h.b16 %v3028
        %v4550 = vunpack.c.l.b16 %v3029
        %v4551 = vunpack.c.h.b16 %v3029
        %v4552 = vunpack.c.l.b16 %v3030
        %v4553 = vunpack.c.h.b16 %v3030
        %v4554 = vunpack.c.l.b16 %v3031
        %v4555 = vunpack.c.h.b16 %v3031
        %v4556 = vunpack.c.l.b16 %v3032
        %v4557 = vunpack.c.h.b16 %v3032
        %v4558 = vunpack.c.l.b16 %v3033
        %v4559 = vunpack.c.h.b16 %v3033
        %v4560 = vunpack.c.l.b16 %v3034
        %v4561 = vunpack.c.h.b16 %v3034
        %v4562 = vunpack.c.l.b16 %v3035
        %v4563 = vunpack.c.h.b16 %v3035
        %v4564 = vunpack.c.l.b16 %v3036
        %v4565 = vunpack.c.h.b16 %v3036
        %v4566 = vunpack.c.l.b16 %v3037
        %v4567 = vunpack.c.h.b16 %v3037
        %v4568 = vunpack.c.l.b16 %v3038
        %v4569 = vunpack.c.h.b16 %v3038
        %v4570 = vunpack.c.l.b16 %v3039
        %v4571 = vunpack.c.h.b16 %v3039
        %v4572 = vunpack.c.l.b16 %v3040
        %v4573 = vunpack.c.h.b16 %v3040
        %v4574 = vunpack.c.l.b16 %v3041
        %v4575 = vunpack.c.h.b16 %v3041
        %v4576 = vunpack.c.l.b16 %v3042
        %v4577 = vunpack.c.h.b16 %v3042
        %v4578 = vunpack.c.l.b16 %v3043
        %v4579 = vunpack.c.h.b16 %v3043
        %v4580 = vunpack.c.l.b16 %v3044
        %v4581 = vunpack.c.h.b16 %v3044
        %v4582 = vunpack.c.l.b16 %v3045
        %v4583 = vunpack.c.h.b16 %v3045
        %v4584 = vunpack.c.l.b16 %v3046
        %v4585 = vunpack.c.h.b16 %v3046
        %v4586 = vunpack.c.l.b16 %v3047
        %v4587 = vunpack.c.h.b16 %v3047
        %v4588 = vunpack.c.l.b16 %v3048
        %v4589 = vunpack.c.h.b16 %v3048
        %v4590 = vunpack.c.l.b16 %v3049
        %v4591 = vunpack.c.h.b16 %v3049
        %v4592 = vunpack.c.l.b16 %v3050
        %v4593 = vunpack.c.h.b16 %v3050
        %v4594 = vunpack.c.l.b16 %v3051
        %v4595 = vunpack.c.h.b16 %v3051
        %v4596 = vunpack.c.l.b16 %v3052
        %v4597 = vunpack.c.h.b16 %v3052
        %v4598 = vunpack.c.l.b16 %v3053
        %v4599 = vunpack.c.h.b16 %v3053
        %v4600 = vunpack.c.l.b16 %v3054
        %v4601 = vunpack.c.h.b16 %v3054
        %v4602 = vunpack.c.l.b16 %v3055
        %v4603 = vunpack.c.h.b16 %v3055
        %v4604 = vunpack.c.l.b16 %v3056
        %v4605 = vunpack.c.h.b16 %v3056
        %v4606 = vunpack.c.l.b16 %v3057
        %v4607 = vunpack.c.h.b16 %v3057
        %v4608 = vunpack.c.l.b16 %v3058
        %v4609 = vunpack.c.h.b16 %v3058
        %v4610 = vunpack.c.l.b16 %v3059
        %v4611 = vunpack.c.h.b16 %v3059
        %v4612 = vunpack.c.l.b16 %v3060
        %v4613 = vunpack.c.h.b16 %v3060
        %v4614 = vunpack.c.l.b16 %v3061
        %v4615 = vunpack.c.h.b16 %v3061
        %v4616 = vunpack.c.l.b16 %v3062
        %v4617 = vunpack.c.h.b16 %v3062
        %v4618 = vunpack.c.l.b16 %v3063
        %v4619 = vunpack.c.h.b16 %v3063
        %v4620 = vunpack.c.l.b16 %v3064
        %v4621 = vunpack.c.h.b16 %v3064
        %v4622 = vunpack.c.l.b16 %v3065
        %v4623 = vunpack.c.h.b16 %v3065
        %v4624 = vunpack.c.l.b16 %v3066
        %v4625 = vunpack.c.h.b16 %v3066
        %v4626 = vunpack.c.l.b16 %v3067
        %v4627 = vunpack.c.h.b16 %v3067
        %v4628 = vunpack.c.l.b16 %v3068
        %v4629 = vunpack.c.h.b16 %v3068
        %v4630 = vunpack.c.l.b16 %v3069
        %v4631 = vunpack.c.h.b16 %v3069
        %v4632 = vunpack.c.l.b16 %v3070
        %v4633 = vunpack.c.h.b16 %v3070
        %v4634 = vunpack.c.l.b16 %v3071
        %v4635 = vunpack.c.h.b16 %v3071
        %v4636 = vunpack.c.l.b16 %v3072
        %v4637 = vunpack.c.h.b16 %v3072
        %v4638 = vunpack.c.l.b16 %v3073
        %v4639 = vunpack.c.h.b16 %v3073
        %v4640 = vunpack.c.l.b16 %v3074
        %v4641 = vunpack.c.h.b16 %v3074
        %v4642 = vunpack.c.l.b16 %v3075
        %v4643 = vunpack.c.h.b16 %v3075
        %v4644 = vunpack.c.l.b16 %v3076
        %v4645 = vunpack.c.h.b16 %v3076
        %v4646 = vunpack.c.l.b16 %v3077
        %v4647 = vunpack.c.h.b16 %v3077
        %v4648 = vunpack.c.l.b16 %v3078
        %v4649 = vunpack.c.h.b16 %v3078
        %v4650 = vunpack.c.l.b16 %v3079
        %v4651 = vunpack.c.h.b16 %v3079
        %v4652 = vunpack.c.l.b16 %v3080
        %v4653 = vunpack.c.h.b16 %v3080
        %v4654 = vunpack.c.l.b16 %v3081
        %v4655 = vunpack.c.h.b16 %v3081
        %v4656 = vunpack.c.l.b16 %v3082
        %v4657 = vunpack.c.h.b16 %v3082
        %v4658 = vunpack.c.l.b16 %v3083
        %v4659 = vunpack.c.h.b16 %v3083
        %v4660 = vunpack.c.l.b16 %v3084
        %v4661 = vunpack.c.h.b16 %v3084
        %v4662 = vunpack.c.l.b16 %v3085
        %v4663 = vunpack.c.h.b16 %v3085
        %v4664 = vunpack.c.l.b16 %v3086
        %v4665 = vunpack.c.h.b16 %v3086
        %v4666 = vunpack.c.l.b16 %v3087
        %v4667 = vunpack.c.h.b16 %v3087
        %v4668 = vunpack.c.l.b16 %v3088
        %v4669 = vunpack.c.h.b16 %v3088
        %v4670 = vunpack.c.l.b16 %v3089
        %v4671 = vunpack.c.h.b16 %v3089
        %v4672 = vunpack.c.l.b16 %v3090
        %v4673 = vunpack.c.h.b16 %v3090
        %v4674 = vunpack.c.l.b16 %v3091
        %v4675 = vunpack.c.h.b16 %v3091
        %v4676 = vunpack.c.l.b16 %v3092
        %v4677 = vunpack.c.h.b16 %v3092
        %v4678 = vunpack.c.l.b16 %v3093
        %v4679 = vunpack.c.h.b16 %v3093
        %v4680 = vunpack.c.l.b16 %v3094
        %v4681 = vunpack.c.h.b16 %v3094
        %v4682 = vunpack.c.l.b16 %v3095
        %v4683 = vunpack.c.h.b16 %v3095
        %v4684 = vunpack.c.l.b16 %v3096
        %v4685 = vunpack.c.h.b16 %v3096
        %v4686 = vunpack.c.l.b16 %v3097
        %v4687 = vunpack.c.h.b16 %v3097
        %v4688 = vunpack.c.l.b16 %v3098
        %v4689 = vunpack.c.h.b16 %v3098
        %v4690 = vunpack.c.l.b16 %v3099
        %v4691 = vunpack.c.h.b16 %v3099
        %v4692 = vunpack.c.l.b16 %v3100
        %v4693 = vunpack.c.h.b16 %v3100
        %v4694 = vunpack.c.l.b16 %v3101
        %v4695 = vunpack.c.h.b16 %v3101
        %v4696 = vunpack.c.l.b16 %v3102
        %v4697 = vunpack.c.h.b16 %v3102
        %v4698 = vunpack.c.l.b16 %v3103
        %v4699 = vunpack.c.h.b16 %v3103
        %v4700 = vunpack.c.l.b16 %v3104
        %v4701 = vunpack.c.h.b16 %v3104
        %v4702 = vunpack.c.l.b16 %v3105
        %v4703 = vunpack.c.h.b16 %v3105
        %v4704 = vunpack.c.l.b16 %v3106
        %v4705 = vunpack.c.h.b16 %v3106
        %v4706 = vunpack.c.l.b16 %v3107
        %v4707 = vunpack.c.h.b16 %v3107
        %v4708 = vunpack.c.l.b16 %v3108
        %v4709 = vunpack.c.h.b16 %v3108
        %v4710 = vunpack.c.l.b16 %v3109
        %v4711 = vunpack.c.h.b16 %v3109
        %v4712 = vunpack.c.l.b16 %v3110
        %v4713 = vunpack.c.h.b16 %v3110
        %v4714 = vunpack.c.l.b16 %v3111
        %v4715 = vunpack.c.h.b16 %v3111
        %v4716 = vunpack.c.l.b16 %v3112
        %v4717 = vunpack.c.h.b16 %v3112
        %v4718 = vunpack.c.l.b16 %v3113
        %v4719 = vunpack.c.h.b16 %v3113
        %v4720 = vunpack.c.l.b16 %v3114
        %v4721 = vunpack.c.h.b16 %v3114
        %v4722 = vunpack.c.l.b16 %v3115
        %v4723 = vunpack.c.h.b16 %v3115
        %v4724 = vunpack.c.l.b16 %v3116
        %v4725 = vunpack.c.h.b16 %v3116
        %v4726 = vunpack.c.l.b16 %v3117
        %v4727 = vunpack.c.h.b16 %v3117
        %v4728 = vunpack.c.l.b16 %v3118
        %v4729 = vunpack.c.h.b16 %v3118
        %v4730 = vunpack.c.l.b16 %v3119
        %v4731 = vunpack.c.h.b16 %v3119
        %v4732 = vunpack.c.l.b16 %v3120
        %v4733 = vunpack.c.h.b16 %v3120
        %v4734 = vunpack.c.l.b16 %v3121
        %v4735 = vunpack.c.h.b16 %v3121
        %v4736 = vunpack.c.l.b16 %v3122
        %v4737 = vunpack.c.h.b16 %v3122
        %v4738 = vunpack.c.l.b16 %v3123
        %v4739 = vunpack.c.h.b16 %v3123
        %v4740 = vunpack.c.l.b16 %v3124
        %v4741 = vunpack.c.h.b16 %v3124
        %v4742 = vunpack.c.l.b16 %v3125
        %v4743 = vunpack.c.h.b16 %v3125
        %v4744 = vunpack.c.l.b16 %v3126
        %v4745 = vunpack.c.h.b16 %v3126
        %v4746 = vunpack.c.l.b16 %v3127
        %v4747 = vunpack.c.h.b16 %v3127
        %v4748 = vunpack.c.l.b16 %v3128
        %v4749 = vunpack.c.h.b16 %v3128
        %v4750 = vunpack.c.l.b16 %v3129
        %v4751 = vunpack.c.h.b16 %v3129
        %v4752 = vunpack.c.l.b16 %v3130
        %v4753 = vunpack.c.h.b16 %v3130
        %v4754 = vunpack.c.l.b16 %v3131
        %v4755 = vunpack.c.h.b16 %v3131
        %v4756 = vunpack.c.l.b16 %v3132
        %v4757 = vunpack.c.h.b16 %v3132
        %v4758 = vunpack.c.l.b16 %v3133
        %v4759 = vunpack.c.h.b16 %v3133
        %v4760 = vpack.c.b16 %v3740, %v3736
        %v4761 = vpack.c.b16 %v3741, %v3737
        %v4762 = vpack.c.b16 %v3742, %v3738
        %v4763 = vpack.c.b16 %v3743, %v3739
        %v4764 = vpack.c.b16 %v3748, %v3744
        %v4765 = vpack.c.b16 %v3749, %v3745
        %v4766 = vpack.c.b16 %v3750, %v3746
        %v4767 = vpack.c.b16 %v3751, %v3747
        %v4768 = vpack.c.b16 %v3756, %v3752
        %v4769 = vpack.c.b16 %v3757, %v3753
        %v4770 = vpack.c.b16 %v3758, %v3754
        %v4771 = vpack.c.b16 %v3759, %v3755
        %v4772 = vpack.c.b16 %v3764, %v3760
        %v4773 = vpack.c.b16 %v3765, %v3761
        %v4774 = vpack.c.b16 %v3766, %v3762
        %v4775 = vpack.c.b16 %v3767, %v3763
        %v4776 = vpack.c.b16 %v3772, %v3768
        %v4777 = vpack.c.b16 %v3773, %v3769
        %v4778 = vpack.c.b16 %v3774, %v3770
        %v4779 = vpack.c.b16 %v3775, %v3771
        %v4780 = vpack.c.b16 %v3780, %v3776
        %v4781 = vpack.c.b16 %v3781, %v3777
        %v4782 = vpack.c.b16 %v3782, %v3778
        %v4783 = vpack.c.b16 %v3783, %v3779
        %v4784 = vpack.c.b16 %v3788, %v3784
        %v4785 = vpack.c.b16 %v3789, %v3785
        %v4786 = vpack.c.b16 %v3790, %v3786
        %v4787 = vpack.c.b16 %v3791, %v3787
        %v4788 = vpack.c.b16 %v3796, %v3792
        %v4789 = vpack.c.b16 %v3797, %v3793
        %v4790 = vpack.c.b16 %v3798, %v3794
        %v4791 = vpack.c.b16 %v3799, %v3795
        %v4792 = vpack.c.b16 %v3804, %v3800
        %v4793 = vpack.c.b16 %v3805, %v3801
        %v4794 = vpack.c.b16 %v3806, %v3802
        %v4795 = vpack.c.b16 %v3807, %v3803
        %v4796 = vpack.c.b16 %v3812, %v3808
        %v4797 = vpack.c.b16 %v3813, %v3809
        %v4798 = vpack.c.b16 %v3814, %v3810
        %v4799 = vpack.c.b16 %v3815, %v3811
        %v4800 = vpack.c.b16 %v3820, %v3816
        %v4801 = vpack.c.b16 %v3821, %v3817
        %v4802 = vpack.c.b16 %v3822, %v3818
        %v4803 = vpack.c.b16 %v3823, %v3819
        %v4804 = vpack.c.b16 %v3828, %v3824
        %v4805 = vpack.c.b16 %v3829, %v3825
        %v4806 = vpack.c.b16 %v3830, %v3826
        %v4807 = vpack.c.b16 %v3831, %v3827
        %v4808 = vpack.c.b16 %v3836, %v3832
        %v4809 = vpack.c.b16 %v3837, %v3833
        %v4810 = vpack.c.b16 %v3838, %v3834
        %v4811 = vpack.c.b16 %v3839, %v3835
        %v4812 = vpack.c.b16 %v3844, %v3840
        %v4813 = vpack.c.b16 %v3845, %v3841
        %v4814 = vpack.c.b16 %v3846, %v3842
        %v4815 = vpack.c.b16 %v3847, %v3843
        %v4816 = vpack.c.b16 %v3852, %v3848
        %v4817 = vpack.c.b16 %v3853, %v3849
        %v4818 = vpack.c.b16 %v3854, %v3850
        %v4819 = vpack.c.b16 %v3855, %v3851
        %v4820 = vpack.c.b16 %v3860, %v3856
        %v4821 = vpack.c.b16 %v3861, %v3857
        %v4822 = vpack.c.b16 %v3862, %v3858
        %v4823 = vpack.c.b16 %v3863, %v3859
        %v4824 = vpack.c.b16 %v3868, %v3864
        %v4825 = vpack.c.b16 %v3869, %v3865
        %v4826 = vpack.c.b16 %v3870, %v3866
        %v4827 = vpack.c.b16 %v3871, %v3867
        %v4828 = vpack.c.b16 %v3876, %v3872
        %v4829 = vpack.c.b16 %v3877, %v3873
        %v4830 = vpack.c.b16 %v3878, %v3874
        %v4831 = vpack.c.b16 %v3879, %v3875
        %v4832 = vpack.c.b16 %v3884, %v3880
        %v4833 = vpack.c.b16 %v3885, %v3881
        %v4834 = vpack.c.b16 %v3886, %v3882
        %v4835 = vpack.c.b16 %v3887, %v3883
        %v4836 = vpack.c.b16 %v3892, %v3888
        %v4837 = vpack.c.b16 %v3893, %v3889
        %v4838 = vpack.c.b16 %v3894, %v3890
        %v4839 = vpack.c.b16 %v3895, %v3891
        %v4840 = vpack.c.b16 %v3900, %v3896
        %v4841 = vpack.c.b16 %v3901, %v3897
        %v4842 = vpack.c.b16 %v3902, %v3898
        %v4843 = vpack.c.b16 %v3903, %v3899
        %v4844 = vpack.c.b16 %v3908, %v3904
        %v4845 = vpack.c.b16 %v3909, %v3905
        %v4846 = vpack.c.b16 %v3910, %v3906
        %v4847 = vpack.c.b16 %v3911, %v3907
        %v4848 = vpack.c.b16 %v3916, %v3912
        %v4849 = vpack.c.b16 %v3917, %v3913
        %v4850 = vpack.c.b16 %v3918, %v3914
        %v4851 = vpack.c.b16 %v3919, %v3915
        %v4852 = vpack.c.b16 %v3924, %v3920
        %v4853 = vpack.c.b16 %v3925, %v3921
        %v4854 = vpack.c.b16 %v3926, %v3922
        %v4855 = vpack.c.b16 %v3927, %v3923
        %v4856 = vpack.c.b16 %v3932, %v3928
        %v4857 = vpack.c.b16 %v3933, %v3929
        %v4858 = vpack.c.b16 %v3934, %v3930
        %v4859 = vpack.c.b16 %v3935, %v3931
        %v4860 = vpack.c.b16 %v3940, %v3936
        %v4861 = vpack.c.b16 %v3941, %v3937
        %v4862 = vpack.c.b16 %v3942, %v3938
        %v4863 = vpack.c.b16 %v3943, %v3939
        %v4864 = vpack.c.b16 %v3948, %v3944
        %v4865 = vpack.c.b16 %v3949, %v3945
        %v4866 = vpack.c.b16 %v3950, %v3946
        %v4867 = vpack.c.b16 %v3951, %v3947
        %v4868 = vpack.c.b16 %v3956, %v3952
        %v4869 = vpack.c.b16 %v3957, %v3953
        %v4870 = vpack.c.b16 %v3958, %v3954
        %v4871 = vpack.c.b16 %v3959, %v3955
        %v4872 = vpack.c.b16 %v3964, %v3960
        %v4873 = vpack.c.b16 %v3965, %v3961
        %v4874 = vpack.c.b16 %v3966, %v3962
        %v4875 = vpack.c.b16 %v3967, %v3963
        %v4876 = vpack.c.b16 %v3972, %v3968
        %v4877 = vpack.c.b16 %v3973, %v3969
        %v4878 = vpack.c.b16 %v3974, %v3970
        %v4879 = vpack.c.b16 %v3975, %v3971
        %v4880 = vpack.c.b16 %v3980, %v3976
        %v4881 = vpack.c.b16 %v3981, %v3977
        %v4882 = vpack.c.b16 %v3982, %v3978
        %v4883 = vpack.c.b16 %v3983, %v3979
        %v4884 = vpack.c.b16 %v3988, %v3984
        %v4885 = vpack.c.b16 %v3989, %v3985
        %v4886 = vpack.c.b16 %v3990, %v3986
        %v4887 = vpack.c.b16 %v3991, %v3987
        %v4888 = vpack.c.b16 %v3996, %v3992
        %v4889 = vpack.c.b16 %v3997, %v3993
        %v4890 = vpack.c.b16 %v3998, %v3994
        %v4891 = vpack.c.b16 %v3999, %v3995
        %v4892 = vpack.c.b16 %v4004, %v4000
        %v4893 = vpack.c.b16 %v4005, %v4001
        %v4894 = vpack.c.b16 %v4006, %v4002
        %v4895 = vpack.c.b16 %v4007, %v4003
        %v4896 = vpack.c.b16 %v4012, %v4008
        %v4897 = vpack.c.b16 %v4013, %v4009
        %v4898 = vpack.c.b16 %v4014, %v4010
        %v4899 = vpack.c.b16 %v4015, %v4011
        %v4900 = vpack.c.b16 %v4020, %v4016
        %v4901 = vpack.c.b16 %v4021, %v4017
        %v4902 = vpack.c.b16 %v4022, %v4018
        %v4903 = vpack.c.b16 %v4023, %v4019
        %v4904 = vpack.c.b16 %v4028, %v4024
        %v4905 = vpack.c.b16 %v4029, %v4025
        %v4906 = vpack.c.b16 %v4030, %v4026
        %v4907 = vpack.c.b16 %v4031, %v4027
        %v4908 = vpack.c.b16 %v4036, %v4032
        %v4909 = vpack.c.b16 %v4037, %v4033
        %v4910 = vpack.c.b16 %v4038, %v4034
        %v4911 = vpack.c.b16 %v4039, %v4035
        %v4912 = vpack.c.b16 %v4044, %v4040
        %v4913 = vpack.c.b16 %v4045, %v4041
        %v4914 = vpack.c.b16 %v4046, %v4042
        %v4915 = vpack.c.b16 %v4047, %v4043
        %v4916 = vpack.c.b16 %v4052, %v4048
        %v4917 = vpack.c.b16 %v4053, %v4049
        %v4918 = vpack.c.b16 %v4054, %v4050
        %v4919 = vpack.c.b16 %v4055, %v4051
        %v4920 = vpack.c.b16 %v4060, %v4056
        %v4921 = vpack.c.b16 %v4061, %v4057
        %v4922 = vpack.c.b16 %v4062, %v4058
        %v4923 = vpack.c.b16 %v4063, %v4059
        %v4924 = vpack.c.b16 %v4068, %v4064
        %v4925 = vpack.c.b16 %v4069, %v4065
        %v4926 = vpack.c.b16 %v4070, %v4066
        %v4927 = vpack.c.b16 %v4071, %v4067
        %v4928 = vpack.c.b16 %v4076, %v4072
        %v4929 = vpack.c.b16 %v4077, %v4073
        %v4930 = vpack.c.b16 %v4078, %v4074
        %v4931 = vpack.c.b16 %v4079, %v4075
        %v4932 = vpack.c.b16 %v4084, %v4080
        %v4933 = vpack.c.b16 %v4085, %v4081
        %v4934 = vpack.c.b16 %v4086, %v4082
        %v4935 = vpack.c.b16 %v4087, %v4083
        %v4936 = vpack.c.b16 %v4092, %v4088
        %v4937 = vpack.c.b16 %v4093, %v4089
        %v4938 = vpack.c.b16 %v4094, %v4090
        %v4939 = vpack.c.b16 %v4095, %v4091
        %v4940 = vpack.c.b16 %v4100, %v4096
        %v4941 = vpack.c.b16 %v4101, %v4097
        %v4942 = vpack.c.b16 %v4102, %v4098
        %v4943 = vpack.c.b16 %v4103, %v4099
        %v4944 = vpack.c.b16 %v4108, %v4104
        %v4945 = vpack.c.b16 %v4109, %v4105
        %v4946 = vpack.c.b16 %v4110, %v4106
        %v4947 = vpack.c.b16 %v4111, %v4107
        %v4948 = vpack.c.b16 %v4116, %v4112
        %v4949 = vpack.c.b16 %v4117, %v4113
        %v4950 = vpack.c.b16 %v4118, %v4114
        %v4951 = vpack.c.b16 %v4119, %v4115
        %v4952 = vpack.c.b16 %v4124, %v4120
        %v4953 = vpack.c.b16 %v4125, %v4121
        %v4954 = vpack.c.b16 %v4126, %v4122
        %v4955 = vpack.c.b16 %v4127, %v4123
        %v4956 = vpack.c.b16 %v4132, %v4128
        %v4957 = vpack.c.b16 %v4133, %v4129
        %v4958 = vpack.c.b16 %v4134, %v4130
        %v4959 = vpack.c.b16 %v4135, %v4131
        %v4960 = vpack.c.b16 %v4140, %v4136
        %v4961 = vpack.c.b16 %v4141, %v4137
        %v4962 = vpack.c.b16 %v4142, %v4138
        %v4963 = vpack.c.b16 %v4143, %v4139
        %v4964 = vpack.c.b16 %v4148, %v4144
        %v4965 = vpack.c.b16 %v4149, %v4145
        %v4966 = vpack.c.b16 %v4150, %v4146
        %v4967 = vpack.c.b16 %v4151, %v4147
        %v4968 = vpack.c.b16 %v4156, %v4152
        %v4969 = vpack.c.b16 %v4157, %v4153
        %v4970 = vpack.c.b16 %v4158, %v4154
        %v4971 = vpack.c.b16 %v4159, %v4155
        %v4972 = vpack.c.b16 %v4164, %v4160
        %v4973 = vpack.c.b16 %v4165, %v4161
        %v4974 = vpack.c.b16 %v4166, %v4162
        %v4975 = vpack.c.b16 %v4167, %v4163
        %v4976 = vpack.c.b16 %v4172, %v4168
        %v4977 = vpack.c.b16 %v4173, %v4169
        %v4978 = vpack.c.b16 %v4174, %v4170
        %v4979 = vpack.c.b16 %v4175, %v4171
        %v4980 = vpack.c.b16 %v4180, %v4176
        %v4981 = vpack.c.b16 %v4181, %v4177
        %v4982 = vpack.c.b16 %v4182, %v4178
        %v4983 = vpack.c.b16 %v4183, %v4179
        %v4984 = vpack.c.b16 %v4188, %v4184
        %v4985 = vpack.c.b16 %v4189, %v4185
        %v4986 = vpack.c.b16 %v4190, %v4186
        %v4987 = vpack.c.b16 %v4191, %v4187
        %v4988 = vpack.c.b16 %v4196, %v4192
        %v4989 = vpack.c.b16 %v4197, %v4193
        %v4990 = vpack.c.b16 %v4198, %v4194
        %v4991 = vpack.c.b16 %v4199, %v4195
        %v4992 = vpack.c.b16 %v4204, %v4200
        %v4993 = vpack.c.b16 %v4205, %v4201
        %v4994 = vpack.c.b16 %v4206, %v4202
        %v4995 = vpack.c.b16 %v4207, %v4203
        %v4996 = vpack.c.b16 %v4212, %v4208
        %v4997 = vpack.c.b16 %v4213, %v4209
        %v4998 = vpack.c.b16 %v4214, %v4210
        %v4999 = vpack.c.b16 %v4215, %v4211
        %v5000 = vpack.c.b16 %v4220, %v4216
        %v5001 = vpack.c.b16 %v4221, %v4217
        %v5002 = vpack.c.b16 %v4222, %v4218
        %v5003 = vpack.c.b16 %v4223, %v4219
        %v5004 = vpack.c.b16 %v4228, %v4224
        %v5005 = vpack.c.b16 %v4229, %v4225
        %v5006 = vpack.c.b16 %v4230, %v4226
        %v5007 = vpack.c.b16 %v4231, %v4227
        %v5008 = vpack.c.b16 %v4236, %v4232
        %v5009 = vpack.c.b16 %v4237, %v4233
        %v5010 = vpack.c.b16 %v4238, %v4234
        %v5011 = vpack.c.b16 %v4239, %v4235
        %v5012 = vpack.c.b16 %v4244, %v4240
        %v5013 = vpack.c.b16 %v4245, %v4241
        %v5014 = vpack.c.b16 %v4246, %v4242
        %v5015 = vpack.c.b16 %v4247, %v4243
        %v5016 = vpack.c.b16 %v4252, %v4248
        %v5017 = vpack.c.b16 %v4253, %v4249
        %v5018 = vpack.c.b16 %v4254, %v4250
        %v5019 = vpack.c.b16 %v4255, %v4251
        %v5020 = vpack.c.b16 %v4260, %v4256
        %v5021 = vpack.c.b16 %v4261, %v4257
        %v5022 = vpack.c.b16 %v4262, %v4258
        %v5023 = vpack.c.b16 %v4263, %v4259
        %v5024 = vpack.c.b16 %v4268, %v4264
        %v5025 = vpack.c.b16 %v4269, %v4265
        %v5026 = vpack.c.b16 %v4270, %v4266
        %v5027 = vpack.c.b16 %v4271, %v4267
        %v5028 = vpack.c.b16 %v4276, %v4272
        %v5029 = vpack.c.b16 %v4277, %v4273
        %v5030 = vpack.c.b16 %v4278, %v4274
        %v5031 = vpack.c.b16 %v4279, %v4275
        %v5032 = vpack.c.b16 %v4284, %v4280
        %v5033 = vpack.c.b16 %v4285, %v4281
        %v5034 = vpack.c.b16 %v4286, %v4282
        %v5035 = vpack.c.b16 %v4287, %v4283
        %v5036 = vpack.c.b16 %v4292, %v4288
        %v5037 = vpack.c.b16 %v4293, %v4289
        %v5038 = vpack.c.b16 %v4294, %v4290
        %v5039 = vpack.c.b16 %v4295, %v4291
        %v5040 = vpack.c.b16 %v4300, %v4296
        %v5041 = vpack.c.b16 %v4301, %v4297
        %v5042 = vpack.c.b16 %v4302, %v4298
        %v5043 = vpack.c.b16 %v4303, %v4299
        %v5044 = vpack.c.b16 %v4308, %v4304
        %v5045 = vpack.c.b16 %v4309, %v4305
        %v5046 = vpack.c.b16 %v4310, %v4306
        %v5047 = vpack.c.b16 %v4311, %v4307
        %v5048 = vpack.c.b16 %v4316, %v4312
        %v5049 = vpack.c.b16 %v4317, %v4313
        %v5050 = vpack.c.b16 %v4318, %v4314
        %v5051 = vpack.c.b16 %v4319, %v4315
        %v5052 = vpack.c.b16 %v4324, %v4320
        %v5053 = vpack.c.b16 %v4325, %v4321
        %v5054 = vpack.c.b16 %v4326, %v4322
        %v5055 = vpack.c.b16 %v4327, %v4323
        %v5056 = vpack.c.b16 %v4332, %v4328
        %v5057 = vpack.c.b16 %v4333, %v4329
        %v5058 = vpack.c.b16 %v4334, %v4330
        %v5059 = vpack.c.b16 %v4335, %v4331
        %v5060 = vpack.c.b16 %v4340, %v4336
        %v5061 = vpack.c.b16 %v4341, %v4337
        %v5062 = vpack.c.b16 %v4342, %v4338
        %v5063 = vpack.c.b16 %v4343, %v4339
        %v5064 = vpack.c.b16 %v4348, %v4344
        %v5065 = vpack.c.b16 %v4349, %v4345
        %v5066 = vpack.c.b16 %v4350, %v4346
        %v5067 = vpack.c.b16 %v4351, %v4347
        %v5068 = vpack.c.b16 %v4356, %v4352
        %v5069 = vpack.c.b16 %v4357, %v4353
        %v5070 = vpack.c.b16 %v4358, %v4354
        %v5071 = vpack.c.b16 %v4359, %v4355
        %v5072 = vpack.c.b16 %v4364, %v4360
        %v5073 = vpack.c.b16 %v4365, %v4361
        %v5074 = vpack.c.b16 %v4366, %v4362
        %v5075 = vpack.c.b16 %v4367, %v4363
        %v5076 = vpack.c.b16 %v4372, %v4368
        %v5077 = vpack.c.b16 %v4373, %v4369
        %v5078 = vpack.c.b16 %v4374, %v4370
        %v5079 = vpack.c.b16 %v4375, %v4371
        %v5080 = vpack.c.b16 %v4380, %v4376
        %v5081 = vpack.c.b16 %v4381, %v4377
        %v5082 = vpack.c.b16 %v4382, %v4378
        %v5083 = vpack.c.b16 %v4383, %v4379
        %v5084 = vpack.c.b16 %v4388, %v4384
        %v5085 = vpack.c.b16 %v4389, %v4385
        %v5086 = vpack.c.b16 %v4390, %v4386
        %v5087 = vpack.c.b16 %v4391, %v4387
        %v5088 = vpack.c.b16 %v4396, %v4392
        %v5089 = vpack.c.b16 %v4397, %v4393
        %v5090 = vpack.c.b16 %v4398, %v4394
        %v5091 = vpack.c.b16 %v4399, %v4395
        %v5092 = vpack.c.b16 %v4404, %v4400
        %v5093 = vpack.c.b16 %v4405, %v4401
        %v5094 = vpack.c.b16 %v4406, %v4402
        %v5095 = vpack.c.b16 %v4407, %v4403
        %v5096 = vpack.c.b16 %v4412, %v4408
        %v5097 = vpack.c.b16 %v4413, %v4409
        %v5098 = vpack.c.b16 %v4414, %v4410
        %v5099 = vpack.c.b16 %v4415, %v4411
        %v5100 = vpack.c.b16 %v4420, %v4416
        %v5101 = vpack.c.b16 %v4421, %v4417
        %v5102 = vpack.c.b16 %v4422, %v4418
        %v5103 = vpack.c.b16 %v4423, %v4419
        %v5104 = vpack.c.b16 %v4428, %v4424
        %v5105 = vpack.c.b16 %v4429, %v4425
        %v5106 = vpack.c.b16 %v4430, %v4426
        %v5107 = vpack.c.b16 %v4431, %v4427
        %v5108 = vpack.c.b16 %v4436, %v4432
        %v5109 = vpack.c.b16 %v4437, %v4433
        %v5110 = vpack.c.b16 %v4438, %v4434
        %v5111 = vpack.c.b16 %v4439, %v4435
        %v5112 = vpack.c.b16 %v4444, %v4440
        %v5113 = vpack.c.b16 %v4445, %v4441
        %v5114 = vpack.c.b16 %v4446, %v4442
        %v5115 = vpack.c.b16 %v4447, %v4443
        %v5116 = vpack.c.b16 %v4452, %v4448
        %v5117 = vpack.c.b16 %v4453, %v4449
        %v5118 = vpack.c.b16 %v4454, %v4450
        %v5119 = vpack.c.b16 %v4455, %v4451
        %v5120 = vpack.c.b16 %v4460, %v4456
        %v5121 = vpack.c.b16 %v4461, %v4457
        %v5122 = vpack.c.b16 %v4462, %v4458
        %v5123 = vpack.c.b16 %v4463, %v4459
        %v5124 = vpack.c.b16 %v4468, %v4464
        %v5125 = vpack.c.b16 %v4469, %v4465
        %v5126 = vpack.c.b16 %v4470, %v4466
        %v5127 = vpack.c.b16 %v4471, %v4467
        %v5128 = vpack.c.b16 %v4476, %v4472
        %v5129 = vpack.c.b16 %v4477, %v4473
        %v5130 = vpack.c.b16 %v4478, %v4474
        %v5131 = vpack.c.b16 %v4479, %v4475
        %v5132 = vpack.c.b16 %v4484, %v4480
        %v5133 = vpack.c.b16 %v4485, %v4481
        %v5134 = vpack.c.b16 %v4486, %v4482
        %v5135 = vpack.c.b16 %v4487, %v4483
        %v5136 = vpack.c.b16 %v4492, %v4488
        %v5137 = vpack.c.b16 %v4493, %v4489
        %v5138 = vpack.c.b16 %v4494, %v4490
        %v5139 = vpack.c.b16 %v4495, %v4491
        %v5140 = vpack.c.b16 %v4500, %v4496
        %v5141 = vpack.c.b16 %v4501, %v4497
        %v5142 = vpack.c.b16 %v4502, %v4498
        %v5143 = vpack.c.b16 %v4503, %v4499
        %v5144 = vpack.c.b16 %v4508, %v4504
        %v5145 = vpack.c.b16 %v4509, %v4505
        %v5146 = vpack.c.b16 %v4510, %v4506
        %v5147 = vpack.c.b16 %v4511, %v4507
        %v5148 = vpack.c.b16 %v4516, %v4512
        %v5149 = vpack.c.b16 %v4517, %v4513
        %v5150 = vpack.c.b16 %v4518, %v4514
        %v5151 = vpack.c.b16 %v4519, %v4515
        %v5152 = vpack.c.b16 %v4524, %v4520
        %v5153 = vpack.c.b16 %v4525, %v4521
        %v5154 = vpack.c.b16 %v4526, %v4522
        %v5155 = vpack.c.b16 %v4527, %v4523
        %v5156 = vpack.c.b16 %v4532, %v4528
        %v5157 = vpack.c.b16 %v4533, %v4529
        %v5158 = vpack.c.b16 %v4534, %v4530
        %v5159 = vpack.c.b16 %v4535, %v4531
        %v5160 = vpack.c.b16 %v4540, %v4536
        %v5161 = vpack.c.b16 %v4541, %v4537
        %v5162 = vpack.c.b16 %v4542, %v4538
        %v5163 = vpack.c.b16 %v4543, %v4539
        %v5164 = vpack.c.b16 %v4548, %v4544
        %v5165 = vpack.c.b16 %v4549, %v4545
        %v5166 = vpack.c.b16 %v4550, %v4546
        %v5167 = vpack.c.b16 %v4551, %v4547
        %v5168 = vpack.c.b16 %v4556, %v4552
        %v5169 = vpack.c.b16 %v4557, %v4553
        %v5170 = vpack.c.b16 %v4558, %v4554
        %v5171 = vpack.c.b16 %v4559, %v4555
        %v5172 = vpack.c.b16 %v4564, %v4560
        %v5173 = vpack.c.b16 %v4565, %v4561
        %v5174 = vpack.c.b16 %v4566, %v4562
        %v5175 = vpack.c.b16 %v4567, %v4563
        %v5176 = vpack.c.b16 %v4572, %v4568
        %v5177 = vpack.c.b16 %v4573, %v4569
        %v5178 = vpack.c.b16 %v4574, %v4570
        %v5179 = vpack.c.b16 %v4575, %v4571
        %v5180 = vpack.c.b16 %v4580, %v4576
        %v5181 = vpack.c.b16 %v4581, %v4577
        %v5182 = vpack.c.b16 %v4582, %v4578
        %v5183 = vpack.c.b16 %v4583, %v4579
        %v5184 = vpack.c.b16 %v4588, %v4584
        %v5185 = vpack.c.b16 %v4589, %v4585
        %v5186 = vpack.c.b16 %v4590, %v4586
        %v5187 = vpack.c.b16 %v4591, %v4587
        %v5188 = vpack.c.b16 %v4596, %v4592
        %v5189 = vpack.c.b16 %v4597, %v4593
        %v5190 = vpack.c.b16 %v4598, %v4594
        %v5191 = vpack.c.b16 %v4599, %v4595
        %v5192 = vpack.c.b16 %v4604, %v4600
        %v5193 = vpack.c.b16 %v4605, %v4601
        %v5194 = vpack.c.b16 %v4606, %v4602
        %v5195 = vpack.c.b16 %v4607, %v4603
        %v5196 = vpack.c.b16 %v4612, %v4608
        %v5197 = vpack.c.b16 %v4613, %v4609
        %v5198 = vpack.c.b16 %v4614, %v4610
        %v5199 = vpack.c.b16 %v4615, %v4611
        %v5200 = vpack.c.b16 %v4620, %v4616
        %v5201 = vpack.c.b16 %v4621, %v4617
        %v5202 = vpack.c.b16 %v4622, %v4618
        %v5203 = vpack.c.b16 %v4623, %v4619
        %v5204 = vpack.c.b16 %v4628, %v4624
        %v5205 = vpack.c.b16 %v4629, %v4625
        %v5206 = vpack.c.b16 %v4630, %v4626
        %v5207 = vpack.c.b16 %v4631, %v4627
        %v5208 = vpack.c.b16 %v4636, %v4632
        %v5209 = vpack.c.b16 %v4637, %v4633
        %v5210 = vpack.c.b16 %v4638, %v4634
        %v5211 = vpack.c.b16 %v4639, %v4635
        %v5212 = vpack.c.b16 %v4644, %v4640
        %v5213 = vpack.c.b16 %v4645, %v4641
        %v5214 = vpack.c.b16 %v4646, %v4642
        %v5215 = vpack.c.b16 %v4647, %v4643
        %v5216 = vpack.c.b16 %v4652, %v4648
        %v5217 = vpack.c.b16 %v4653, %v4649
        %v5218 = vpack.c.b16 %v4654, %v4650
        %v5219 = vpack.c.b16 %v4655, %v4651
        %v5220 = vpack.c.b16 %v4660, %v4656
        %v5221 = vpack.c.b16 %v4661, %v4657
        %v5222 = vpack.c.b16 %v4662, %v4658
        %v5223 = vpack.c.b16 %v4663, %v4659
        %v5224 = vpack.c.b16 %v4668, %v4664
        %v5225 = vpack.c.b16 %v4669, %v4665
        %v5226 = vpack.c.b16 %v4670, %v4666
        %v5227 = vpack.c.b16 %v4671, %v4667
        %v5228 = vpack.c.b16 %v4676, %v4672
        %v5229 = vpack.c.b16 %v4677, %v4673
        %v5230 = vpack.c.b16 %v4678, %v4674
        %v5231 = vpack.c.b16 %v4679, %v4675
        %v5232 = vpack.c.b16 %v4684, %v4680
        %v5233 = vpack.c.b16 %v4685, %v4681
        %v5234 = vpack.c.b16 %v4686, %v4682
        %v5235 = vpack.c.b16 %v4687, %v4683
        %v5236 = vpack.c.b16 %v4692, %v4688
        %v5237 = vpack.c.b16 %v4693, %v4689
        %v5238 = vpack.c.b16 %v4694, %v4690
        %v5239 = vpack.c.b16 %v4695, %v4691
        %v5240 = vpack.c.b16 %v4700, %v4696
        %v5241 = vpack.c.b16 %v4701, %v4697
        %v5242 = vpack.c.b16 %v4702, %v4698
        %v5243 = vpack.c.b16 %v4703, %v4699
        %v5244 = vpack.c.b16 %v4708, %v4704
        %v5245 = vpack.c.b16 %v4709, %v4705
        %v5246 = vpack.c.b16 %v4710, %v4706
        %v5247 = vpack.c.b16 %v4711, %v4707
        %v5248 = vpack.c.b16 %v4716, %v4712
        %v5249 = vpack.c.b16 %v4717, %v4713
        %v5250 = vpack.c.b16 %v4718, %v4714
        %v5251 = vpack.c.b16 %v4719, %v4715
        %v5252 = vpack.c.b16 %v4724, %v4720
        %v5253 = vpack.c.b16 %v4725, %v4721
        %v5254 = vpack.c.b16 %v4726, %v4722
        %v5255 = vpack.c.b16 %v4727, %v4723
        %v5256 = vpack.c.b16 %v4732, %v4728
        %v5257 = vpack.c.b16 %v4733, %v4729
        %v5258 = vpack.c.b16 %v4734, %v4730
        %v5259 = vpack.c.b16 %v4735, %v4731
        %v5260 = vpack.c.b16 %v4740, %v4736
        %v5261 = vpack.c.b16 %v4741, %v4737
        %v5262 = vpack.c.b16 %v4742, %v4738
        %v5263 = vpack.c.b16 %v4743, %v4739
        %v5264 = vpack.c.b16 %v4748, %v4744
        %v5265 = vpack.c.b16 %v4749, %v4745
        %v5266 = vpack.c.b16 %v4750, %v4746
        %v5267 = vpack.c.b16 %v4751, %v4747
        %v5268 = vpack.c.b16 %v4756, %v4752
        %v5269 = vpack.c.b16 %v4757, %v4753
        %v5270 = vpack.c.b16 %v4758, %v4754
        %v5271 = vpack.c.b16 %v4759, %v4755
        %5784 = vmatpush.bf16.msra.mxu0 %v4788
        %5785 = vmatpush.bf16.msra.mxu0 %v4784
        %5786 = vmatpush.bf16.msra.mxu0 %v4780
        %5787 = vmatpush.bf16.msra.mxu0 %v4776
        %5788 = vmatpush.bf16.msra.mxu0 %v4772
        %5789 = vmatpush.bf16.msra.mxu0 %v4768
        %5790 = vmatpush.bf16.msra.mxu0 %v4764
        %5791 = vmatpush.bf16.msra.mxu0 %v4760
        %5792 = vmatmul.bf16.gmra.mxu0 %v3192
        %v5793 = vpop.f32.mrf.mxu0
        %v5794 = vadd.f32 %v3136, %v5793
        %v5795 = vpop.f32.mrf.mxu0
        %v5796 = vadd.f32 %v3136, %v5795
        %5797 = vdwg.mxu0
        %5798 = vmatpush.bf16.msra.mxu0 %v4820
        %5799 = vmatpush.bf16.msra.mxu0 %v4816
        %5800 = vmatpush.bf16.msra.mxu0 %v4812
        %5801 = vmatpush.bf16.msra.mxu0 %v4808
        %5802 = vmatpush.bf16.msra.mxu0 %v4804
        %5803 = vmatpush.bf16.msra.mxu0 %v4800
        %5804 = vmatpush.bf16.msra.mxu0 %v4796
        %5805 = vmatpush.bf16.msra.mxu0 %v4792
        %5806 = vmatmul.bf16.gmra.mxu0 %v3193
        %v5807 = vpop.f32.mrf.mxu0
        %v5808 = vadd.f32 %v5794, %v5807
        %v5809 = vpop.f32.mrf.mxu0
        %v5810 = vadd.f32 %v5796, %v5809
        %5811 = vdwg.mxu0
        %5812 = vmatpush.bf16.msra.mxu0 %v4852
        %5813 = vmatpush.bf16.msra.mxu0 %v4848
        %5814 = vmatpush.bf16.msra.mxu0 %v4844
        %5815 = vmatpush.bf16.msra.mxu0 %v4840
        %5816 = vmatpush.bf16.msra.mxu0 %v4836
        %5817 = vmatpush.bf16.msra.mxu0 %v4832
        %5818 = vmatpush.bf16.msra.mxu0 %v4828
        %5819 = vmatpush.bf16.msra.mxu0 %v4824
        %5820 = vmatmul.bf16.gmra.mxu0 %v3194
        %v5821 = vpop.f32.mrf.mxu0
        %v5822 = vadd.f32 %v5808, %v5821
        %v5823 = vpop.f32.mrf.mxu0
        %v5824 = vadd.f32 %v5810, %v5823
        %5825 = vdwg.mxu0
        %5826 = vmatpush.bf16.msra.mxu0 %v4884
        %5827 = vmatpush.bf16.msra.mxu0 %v4880
        %5828 = vmatpush.bf16.msra.mxu0 %v4876
        %5829 = vmatpush.bf16.msra.mxu0 %v4872
        %5830 = vmatpush.bf16.msra.mxu0 %v4868
        %5831 = vmatpush.bf16.msra.mxu0 %v4864
        %5832 = vmatpush.bf16.msra.mxu0 %v4860
        %5833 = vmatpush.bf16.msra.mxu0 %v4856
        %5834 = vmatmul.bf16.gmra.mxu0 %v3195
        %v5835 = vpop.f32.mrf.mxu0
        %v5836 = vadd.f32 %v5822, %v5835
        %v5837 = vpop.f32.mrf.mxu0
        %v5838 = vadd.f32 %v5824, %v5837
        %5839 = vdwg.mxu0
        %5840 = vmatpush.bf16.msra.mxu0 %v4916
        %5841 = vmatpush.bf16.msra.mxu0 %v4912
        %5842 = vmatpush.bf16.msra.mxu0 %v4908
        %5843 = vmatpush.bf16.msra.mxu0 %v4904
        %5844 = vmatpush.bf16.msra.mxu0 %v4900
        %5845 = vmatpush.bf16.msra.mxu0 %v4896
        %5846 = vmatpush.bf16.msra.mxu0 %v4892
        %5847 = vmatpush.bf16.msra.mxu0 %v4888
        %5848 = vmatmul.bf16.gmra.mxu0 %v3196
        %v5849 = vpop.f32.mrf.mxu0
        %v5850 = vadd.f32 %v5836, %v5849
        %v5851 = vpop.f32.mrf.mxu0
        %v5852 = vadd.f32 %v5838, %v5851
        %5853 = vdwg.mxu0
        %5854 = vmatpush.bf16.msra.mxu0 %v4948
        %5855 = vmatpush.bf16.msra.mxu0 %v4944
        %5856 = vmatpush.bf16.msra.mxu0 %v4940
        %5857 = vmatpush.bf16.msra.mxu0 %v4936
        %5858 = vmatpush.bf16.msra.mxu0 %v4932
        %5859 = vmatpush.bf16.msra.mxu0 %v4928
        %5860 = vmatpush.bf16.msra.mxu0 %v4924
        %5861 = vmatpush.bf16.msra.mxu0 %v4920
        %5862 = vmatmul.bf16.gmra.mxu0 %v3197
        %v5863 = vpop.f32.mrf.mxu0
        %v5864 = vadd.f32 %v5850, %v5863
        %v5865 = vpop.f32.mrf.mxu0
        %v5866 = vadd.f32 %v5852, %v5865
        %5867 = vdwg.mxu0
        %5868 = vmatpush.bf16.msra.mxu0 %v4980
        %5869 = vmatpush.bf16.msra.mxu0 %v4976
        %5870 = vmatpush.bf16.msra.mxu0 %v4972
        %5871 = vmatpush.bf16.msra.mxu0 %v4968
        %5872 = vmatpush.bf16.msra.mxu0 %v4964
        %5873 = vmatpush.bf16.msra.mxu0 %v4960
        %5874 = vmatpush.bf16.msra.mxu0 %v4956
        %5875 = vmatpush.bf16.msra.mxu0 %v4952
        %5876 = vmatmul.bf16.gmra.mxu0 %v3198
        %v5877 = vpop.f32.mrf.mxu0
        %v5878 = vadd.f32 %v5864, %v5877
        %v5879 = vpop.f32.mrf.mxu0
        %v5880 = vadd.f32 %v5866, %v5879
        %5881 = vdwg.mxu0
        %5882 = vmatpush.bf16.msra.mxu0 %v5012
        %5883 = vmatpush.bf16.msra.mxu0 %v5008
        %5884 = vmatpush.bf16.msra.mxu0 %v5004
        %5885 = vmatpush.bf16.msra.mxu0 %v5000
        %5886 = vmatpush.bf16.msra.mxu0 %v4996
        %5887 = vmatpush.bf16.msra.mxu0 %v4992
        %5888 = vmatpush.bf16.msra.mxu0 %v4988
        %5889 = vmatpush.bf16.msra.mxu0 %v4984
        %5890 = vmatmul.bf16.gmra.mxu0 %v3199
        %v5891 = vpop.f32.mrf.mxu0
        %v5892 = vadd.f32 %v5878, %v5891
        %v5893 = vpop.f32.mrf.mxu0
        %v5894 = vadd.f32 %v5880, %v5893
        %5895 = vdwg.mxu0
        %5896 = vmatpush.bf16.msra.mxu0 %v5044
        %5897 = vmatpush.bf16.msra.mxu0 %v5040
        %5898 = vmatpush.bf16.msra.mxu0 %v5036
        %5899 = vmatpush.bf16.msra.mxu0 %v5032
        %5900 = vmatpush.bf16.msra.mxu0 %v5028
        %5901 = vmatpush.bf16.msra.mxu0 %v5024
        %5902 = vmatpush.bf16.msra.mxu0 %v5020
        %5903 = vmatpush.bf16.msra.mxu0 %v5016
        %5904 = vmatmul.bf16.gmra.mxu0 %v3200
        %v5905 = vpop.f32.mrf.mxu0
        %v5906 = vadd.f32 %v5892, %v5905
        %v5907 = vpop.f32.mrf.mxu0
        %v5908 = vadd.f32 %v5894, %v5907
        %5909 = vdwg.mxu0
        %5910 = vmatpush.bf16.msra.mxu0 %v5076
        %5911 = vmatpush.bf16.msra.mxu0 %v5072
        %5912 = vmatpush.bf16.msra.mxu0 %v5068
        %5913 = vmatpush.bf16.msra.mxu0 %v5064
        %5914 = vmatpush.bf16.msra.mxu0 %v5060
        %5915 = vmatpush.bf16.msra.mxu0 %v5056
        %5916 = vmatpush.bf16.msra.mxu0 %v5052
        %5917 = vmatpush.bf16.msra.mxu0 %v5048
        %5918 = vmatmul.bf16.gmra.mxu0 %v3201
        %v5919 = vpop.f32.mrf.mxu0
        %v5920 = vadd.f32 %v5906, %v5919
        %v5921 = vpop.f32.mrf.mxu0
        %v5922 = vadd.f32 %v5908, %v5921
        %5923 = vdwg.mxu0
        %5924 = vmatpush.bf16.msra.mxu0 %v5108
        %5925 = vmatpush.bf16.msra.mxu0 %v5104
        %5926 = vmatpush.bf16.msra.mxu0 %v5100
        %5927 = vmatpush.bf16.msra.mxu0 %v5096
        %5928 = vmatpush.bf16.msra.mxu0 %v5092
        %5929 = vmatpush.bf16.msra.mxu0 %v5088
        %5930 = vmatpush.bf16.msra.mxu0 %v5084
        %5931 = vmatpush.bf16.msra.mxu0 %v5080
        %5932 = vmatmul.bf16.gmra.mxu0 %v3202
        %v5933 = vpop.f32.mrf.mxu0
        %v5934 = vadd.f32 %v5920, %v5933
        %v5935 = vpop.f32.mrf.mxu0
        %v5936 = vadd.f32 %v5922, %v5935
        %5937 = vdwg.mxu0
        %5938 = vmatpush.bf16.msra.mxu0 %v5140
        %5939 = vmatpush.bf16.msra.mxu0 %v5136
        %5940 = vmatpush.bf16.msra.mxu0 %v5132
        %5941 = vmatpush.bf16.msra.mxu0 %v5128
        %5942 = vmatpush.bf16.msra.mxu0 %v5124
        %5943 = vmatpush.bf16.msra.mxu0 %v5120
        %5944 = vmatpush.bf16.msra.mxu0 %v5116
        %5945 = vmatpush.bf16.msra.mxu0 %v5112
        %5946 = vmatmul.bf16.gmra.mxu0 %v3203
        %v5947 = vpop.f32.mrf.mxu0
        %v5948 = vadd.f32 %v5934, %v5947
        %v5949 = vpop.f32.mrf.mxu0
        %v5950 = vadd.f32 %v5936, %v5949
        %5951 = vdwg.mxu0
        %5952 = vmatpush.bf16.msra.mxu0 %v5172
        %5953 = vmatpush.bf16.msra.mxu0 %v5168
        %5954 = vmatpush.bf16.msra.mxu0 %v5164
        %5955 = vmatpush.bf16.msra.mxu0 %v5160
        %5956 = vmatpush.bf16.msra.mxu0 %v5156
        %5957 = vmatpush.bf16.msra.mxu0 %v5152
        %5958 = vmatpush.bf16.msra.mxu0 %v5148
        %5959 = vmatpush.bf16.msra.mxu0 %v5144
        %5960 = vmatmul.bf16.gmra.mxu0 %v3204
        %v5961 = vpop.f32.mrf.mxu0
        %v5962 = vadd.f32 %v5948, %v5961
        %v5963 = vpop.f32.mrf.mxu0
        %v5964 = vadd.f32 %v5950, %v5963
        %5965 = vdwg.mxu0
        %5966 = vmatpush.bf16.msra.mxu0 %v5204
        %5967 = vmatpush.bf16.msra.mxu0 %v5200
        %5968 = vmatpush.bf16.msra.mxu0 %v5196
        %5969 = vmatpush.bf16.msra.mxu0 %v5192
        %5970 = vmatpush.bf16.msra.mxu0 %v5188
        %5971 = vmatpush.bf16.msra.mxu0 %v5184
        %5972 = vmatpush.bf16.msra.mxu0 %v5180
        %5973 = vmatpush.bf16.msra.mxu0 %v5176
        %5974 = vmatmul.bf16.gmra.mxu0 %v3205
        %v5975 = vpop.f32.mrf.mxu0
        %v5976 = vadd.f32 %v5962, %v5975
        %v5977 = vpop.f32.mrf.mxu0
        %v5978 = vadd.f32 %v5964, %v5977
        %5979 = vdwg.mxu0
        %5980 = vmatpush.bf16.msra.mxu0 %v5236
        %5981 = vmatpush.bf16.msra.mxu0 %v5232
        %5982 = vmatpush.bf16.msra.mxu0 %v5228
        %5983 = vmatpush.bf16.msra.mxu0 %v5224
        %5984 = vmatpush.bf16.msra.mxu0 %v5220
        %5985 = vmatpush.bf16.msra.mxu0 %v5216
        %5986 = vmatpush.bf16.msra.mxu0 %v5212
        %5987 = vmatpush.bf16.msra.mxu0 %v5208
        %5988 = vmatmul.bf16.gmra.mxu0 %v3206
        %v5989 = vpop.f32.mrf.mxu0
        %v5990 = vadd.f32 %v5976, %v5989
        %v5991 = vpop.f32.mrf.mxu0
        %v5992 = vadd.f32 %v5978, %v5991
        %5993 = vdwg.mxu0
        %5994 = vmatpush.bf16.msra.mxu0 %v5268
        %5995 = vmatpush.bf16.msra.mxu0 %v5264
        %5996 = vmatpush.bf16.msra.mxu0 %v5260
        %5997 = vmatpush.bf16.msra.mxu0 %v5256
        %5998 = vmatpush.bf16.msra.mxu0 %v5252
        %5999 = vmatpush.bf16.msra.mxu0 %v5248
        %6000 = vmatpush.bf16.msra.mxu0 %v5244
        %6001 = vmatpush.bf16.msra.mxu0 %v5240
        %6002 = vmatmul.bf16.gmra.mxu0 %v3207
        %v6003 = vpop.f32.mrf.mxu0
        %v6004 = vadd.f32 %v5990, %v6003
        %v6005 = vpop.f32.mrf.mxu0
        %v6006 = vadd.f32 %v5992, %v6005
        %6007 = vdwg.mxu0
        %6008 = vmatpush.bf16.msra.mxu0 %v4789
        %6009 = vmatpush.bf16.msra.mxu0 %v4785
        %6010 = vmatpush.bf16.msra.mxu0 %v4781
        %6011 = vmatpush.bf16.msra.mxu0 %v4777
        %6012 = vmatpush.bf16.msra.mxu0 %v4773
        %6013 = vmatpush.bf16.msra.mxu0 %v4769
        %6014 = vmatpush.bf16.msra.mxu0 %v4765
        %6015 = vmatpush.bf16.msra.mxu0 %v4761
        %6016 = vmatmul.bf16.gmra.mxu0 %v3192
        %v6017 = vpop.f32.mrf.mxu0
        %v6018 = vadd.f32 %v3137, %v6017
        %v6019 = vpop.f32.mrf.mxu0
        %v6020 = vadd.f32 %v3137, %v6019
        %6021 = vdwg.mxu0
        %6022 = vmatpush.bf16.msra.mxu0 %v4821
        %6023 = vmatpush.bf16.msra.mxu0 %v4817
        %6024 = vmatpush.bf16.msra.mxu0 %v4813
        %6025 = vmatpush.bf16.msra.mxu0 %v4809
        %6026 = vmatpush.bf16.msra.mxu0 %v4805
        %6027 = vmatpush.bf16.msra.mxu0 %v4801
        %6028 = vmatpush.bf16.msra.mxu0 %v4797
        %6029 = vmatpush.bf16.msra.mxu0 %v4793
        %6030 = vmatmul.bf16.gmra.mxu0 %v3193
        %v6031 = vpop.f32.mrf.mxu0
        %v6032 = vadd.f32 %v6018, %v6031
        %v6033 = vpop.f32.mrf.mxu0
        %v6034 = vadd.f32 %v6020, %v6033
        %6035 = vdwg.mxu0
        %6036 = vmatpush.bf16.msra.mxu0 %v4853
        %6037 = vmatpush.bf16.msra.mxu0 %v4849
        %6038 = vmatpush.bf16.msra.mxu0 %v4845
        %6039 = vmatpush.bf16.msra.mxu0 %v4841
        %6040 = vmatpush.bf16.msra.mxu0 %v4837
        %6041 = vmatpush.bf16.msra.mxu0 %v4833
        %6042 = vmatpush.bf16.msra.mxu0 %v4829
        %6043 = vmatpush.bf16.msra.mxu0 %v4825
        %6044 = vmatmul.bf16.gmra.mxu0 %v3194
        %v6045 = vpop.f32.mrf.mxu0
        %v6046 = vadd.f32 %v6032, %v6045
        %v6047 = vpop.f32.mrf.mxu0
        %v6048 = vadd.f32 %v6034, %v6047
        %6049 = vdwg.mxu0
        %6050 = vmatpush.bf16.msra.mxu0 %v4885
        %6051 = vmatpush.bf16.msra.mxu0 %v4881
        %6052 = vmatpush.bf16.msra.mxu0 %v4877
        %6053 = vmatpush.bf16.msra.mxu0 %v4873
        %6054 = vmatpush.bf16.msra.mxu0 %v4869
        %6055 = vmatpush.bf16.msra.mxu0 %v4865
        %6056 = vmatpush.bf16.msra.mxu0 %v4861
        %6057 = vmatpush.bf16.msra.mxu0 %v4857
        %6058 = vmatmul.bf16.gmra.mxu0 %v3195
        %v6059 = vpop.f32.mrf.mxu0
        %v6060 = vadd.f32 %v6046, %v6059
        %v6061 = vpop.f32.mrf.mxu0
        %v6062 = vadd.f32 %v6048, %v6061
        %6063 = vdwg.mxu0
        %6064 = vmatpush.bf16.msra.mxu0 %v4917
        %6065 = vmatpush.bf16.msra.mxu0 %v4913
        %6066 = vmatpush.bf16.msra.mxu0 %v4909
        %6067 = vmatpush.bf16.msra.mxu0 %v4905
        %6068 = vmatpush.bf16.msra.mxu0 %v4901
        %6069 = vmatpush.bf16.msra.mxu0 %v4897
        %6070 = vmatpush.bf16.msra.mxu0 %v4893
        %6071 = vmatpush.bf16.msra.mxu0 %v4889
        %6072 = vmatmul.bf16.gmra.mxu0 %v3196
        %v6073 = vpop.f32.mrf.mxu0
        %v6074 = vadd.f32 %v6060, %v6073
        %v6075 = vpop.f32.mrf.mxu0
        %v6076 = vadd.f32 %v6062, %v6075
        %6077 = vdwg.mxu0
        %6078 = vmatpush.bf16.msra.mxu0 %v4949
        %6079 = vmatpush.bf16.msra.mxu0 %v4945
        %6080 = vmatpush.bf16.msra.mxu0 %v4941
        %6081 = vmatpush.bf16.msra.mxu0 %v4937
        %6082 = vmatpush.bf16.msra.mxu0 %v4933
        %6083 = vmatpush.bf16.msra.mxu0 %v4929
        %6084 = vmatpush.bf16.msra.mxu0 %v4925
        %6085 = vmatpush.bf16.msra.mxu0 %v4921
        %6086 = vmatmul.bf16.gmra.mxu0 %v3197
        %v6087 = vpop.f32.mrf.mxu0
        %v6088 = vadd.f32 %v6074, %v6087
        %v6089 = vpop.f32.mrf.mxu0
        %v6090 = vadd.f32 %v6076, %v6089
        %6091 = vdwg.mxu0
        %6092 = vmatpush.bf16.msra.mxu0 %v4981
        %6093 = vmatpush.bf16.msra.mxu0 %v4977
        %6094 = vmatpush.bf16.msra.mxu0 %v4973
        %6095 = vmatpush.bf16.msra.mxu0 %v4969
        %6096 = vmatpush.bf16.msra.mxu0 %v4965
        %6097 = vmatpush.bf16.msra.mxu0 %v4961
        %6098 = vmatpush.bf16.msra.mxu0 %v4957
        %6099 = vmatpush.bf16.msra.mxu0 %v4953
        %6100 = vmatmul.bf16.gmra.mxu0 %v3198
        %v6101 = vpop.f32.mrf.mxu0
        %v6102 = vadd.f32 %v6088, %v6101
        %v6103 = vpop.f32.mrf.mxu0
        %v6104 = vadd.f32 %v6090, %v6103
        %6105 = vdwg.mxu0
        %6106 = vmatpush.bf16.msra.mxu0 %v5013
        %6107 = vmatpush.bf16.msra.mxu0 %v5009
        %6108 = vmatpush.bf16.msra.mxu0 %v5005
        %6109 = vmatpush.bf16.msra.mxu0 %v5001
        %6110 = vmatpush.bf16.msra.mxu0 %v4997
        %6111 = vmatpush.bf16.msra.mxu0 %v4993
        %6112 = vmatpush.bf16.msra.mxu0 %v4989
        %6113 = vmatpush.bf16.msra.mxu0 %v4985
        %6114 = vmatmul.bf16.gmra.mxu0 %v3199
        %v6115 = vpop.f32.mrf.mxu0
        %v6116 = vadd.f32 %v6102, %v6115
        %v6117 = vpop.f32.mrf.mxu0
        %v6118 = vadd.f32 %v6104, %v6117
        %6119 = vdwg.mxu0
        %6120 = vmatpush.bf16.msra.mxu0 %v5045
        %6121 = vmatpush.bf16.msra.mxu0 %v5041
        %6122 = vmatpush.bf16.msra.mxu0 %v5037
        %6123 = vmatpush.bf16.msra.mxu0 %v5033
        %6124 = vmatpush.bf16.msra.mxu0 %v5029
        %6125 = vmatpush.bf16.msra.mxu0 %v5025
        %6126 = vmatpush.bf16.msra.mxu0 %v5021
        %6127 = vmatpush.bf16.msra.mxu0 %v5017
        %6128 = vmatmul.bf16.gmra.mxu0 %v3200
        %v6129 = vpop.f32.mrf.mxu0
        %v6130 = vadd.f32 %v6116, %v6129
        %v6131 = vpop.f32.mrf.mxu0
        %v6132 = vadd.f32 %v6118, %v6131
        %6133 = vdwg.mxu0
        %6134 = vmatpush.bf16.msra.mxu0 %v5077
        %6135 = vmatpush.bf16.msra.mxu0 %v5073
        %6136 = vmatpush.bf16.msra.mxu0 %v5069
        %6137 = vmatpush.bf16.msra.mxu0 %v5065
        %6138 = vmatpush.bf16.msra.mxu0 %v5061
        %6139 = vmatpush.bf16.msra.mxu0 %v5057
        %6140 = vmatpush.bf16.msra.mxu0 %v5053
        %6141 = vmatpush.bf16.msra.mxu0 %v5049
        %6142 = vmatmul.bf16.gmra.mxu0 %v3201
        %v6143 = vpop.f32.mrf.mxu0
        %v6144 = vadd.f32 %v6130, %v6143
        %v6145 = vpop.f32.mrf.mxu0
        %v6146 = vadd.f32 %v6132, %v6145
        %6147 = vdwg.mxu0
        %6148 = vmatpush.bf16.msra.mxu0 %v5109
        %6149 = vmatpush.bf16.msra.mxu0 %v5105
        %6150 = vmatpush.bf16.msra.mxu0 %v5101
        %6151 = vmatpush.bf16.msra.mxu0 %v5097
        %6152 = vmatpush.bf16.msra.mxu0 %v5093
        %6153 = vmatpush.bf16.msra.mxu0 %v5089
        %6154 = vmatpush.bf16.msra.mxu0 %v5085
        %6155 = vmatpush.bf16.msra.mxu0 %v5081
        %6156 = vmatmul.bf16.gmra.mxu0 %v3202
        %v6157 = vpop.f32.mrf.mxu0
        %v6158 = vadd.f32 %v6144, %v6157
        %v6159 = vpop.f32.mrf.mxu0
        %v6160 = vadd.f32 %v6146, %v6159
        %6161 = vdwg.mxu0
        %6162 = vmatpush.bf16.msra.mxu0 %v5141
        %6163 = vmatpush.bf16.msra.mxu0 %v5137
        %6164 = vmatpush.bf16.msra.mxu0 %v5133
        %6165 = vmatpush.bf16.msra.mxu0 %v5129
        %6166 = vmatpush.bf16.msra.mxu0 %v5125
        %6167 = vmatpush.bf16.msra.mxu0 %v5121
        %6168 = vmatpush.bf16.msra.mxu0 %v5117
        %6169 = vmatpush.bf16.msra.mxu0 %v5113
        %6170 = vmatmul.bf16.gmra.mxu0 %v3203
        %v6171 = vpop.f32.mrf.mxu0
        %v6172 = vadd.f32 %v6158, %v6171
        %v6173 = vpop.f32.mrf.mxu0
        %v6174 = vadd.f32 %v6160, %v6173
        %6175 = vdwg.mxu0
        %6176 = vmatpush.bf16.msra.mxu0 %v5173
        %6177 = vmatpush.bf16.msra.mxu0 %v5169
        %6178 = vmatpush.bf16.msra.mxu0 %v5165
        %6179 = vmatpush.bf16.msra.mxu0 %v5161
        %6180 = vmatpush.bf16.msra.mxu0 %v5157
        %6181 = vmatpush.bf16.msra.mxu0 %v5153
        %6182 = vmatpush.bf16.msra.mxu0 %v5149
        %6183 = vmatpush.bf16.msra.mxu0 %v5145
        %6184 = vmatmul.bf16.gmra.mxu0 %v3204
        %v6185 = vpop.f32.mrf.mxu0
        %v6186 = vadd.f32 %v6172, %v6185
        %v6187 = vpop.f32.mrf.mxu0
        %v6188 = vadd.f32 %v6174, %v6187
        %6189 = vdwg.mxu0
        %6190 = vmatpush.bf16.msra.mxu0 %v5205
        %6191 = vmatpush.bf16.msra.mxu0 %v5201
        %6192 = vmatpush.bf16.msra.mxu0 %v5197
        %6193 = vmatpush.bf16.msra.mxu0 %v5193
        %6194 = vmatpush.bf16.msra.mxu0 %v5189
        %6195 = vmatpush.bf16.msra.mxu0 %v5185
        %6196 = vmatpush.bf16.msra.mxu0 %v5181
        %6197 = vmatpush.bf16.msra.mxu0 %v5177
        %6198 = vmatmul.bf16.gmra.mxu0 %v3205
        %v6199 = vpop.f32.mrf.mxu0
        %v6200 = vadd.f32 %v6186, %v6199
        %v6201 = vpop.f32.mrf.mxu0
        %v6202 = vadd.f32 %v6188, %v6201
        %6203 = vdwg.mxu0
        %6204 = vmatpush.bf16.msra.mxu0 %v5237
        %6205 = vmatpush.bf16.msra.mxu0 %v5233
        %6206 = vmatpush.bf16.msra.mxu0 %v5229
        %6207 = vmatpush.bf16.msra.mxu0 %v5225
        %6208 = vmatpush.bf16.msra.mxu0 %v5221
        %6209 = vmatpush.bf16.msra.mxu0 %v5217
        %6210 = vmatpush.bf16.msra.mxu0 %v5213
        %6211 = vmatpush.bf16.msra.mxu0 %v5209
        %6212 = vmatmul.bf16.gmra.mxu0 %v3206
        %v6213 = vpop.f32.mrf.mxu0
        %v6214 = vadd.f32 %v6200, %v6213
        %v6215 = vpop.f32.mrf.mxu0
        %v6216 = vadd.f32 %v6202, %v6215
        %6217 = vdwg.mxu0
        %6218 = vmatpush.bf16.msra.mxu0 %v5269
        %6219 = vmatpush.bf16.msra.mxu0 %v5265
        %6220 = vmatpush.bf16.msra.mxu0 %v5261
        %6221 = vmatpush.bf16.msra.mxu0 %v5257
        %6222 = vmatpush.bf16.msra.mxu0 %v5253
        %6223 = vmatpush.bf16.msra.mxu0 %v5249
        %6224 = vmatpush.bf16.msra.mxu0 %v5245
        %6225 = vmatpush.bf16.msra.mxu0 %v5241
        %6226 = vmatmul.bf16.gmra.mxu0 %v3207
        %v6227 = vpop.f32.mrf.mxu0
        %v6228 = vadd.f32 %v6214, %v6227
        %v6229 = vpop.f32.mrf.mxu0
        %v6230 = vadd.f32 %v6216, %v6229
        %6231 = vdwg.mxu0
        %6232 = vmatpush.bf16.msra.mxu0 %v4790
        %6233 = vmatpush.bf16.msra.mxu0 %v4786
        %6234 = vmatpush.bf16.msra.mxu0 %v4782
        %6235 = vmatpush.bf16.msra.mxu0 %v4778
        %6236 = vmatpush.bf16.msra.mxu0 %v4774
        %6237 = vmatpush.bf16.msra.mxu0 %v4770
        %6238 = vmatpush.bf16.msra.mxu0 %v4766
        %6239 = vmatpush.bf16.msra.mxu0 %v4762
        %6240 = vmatmul.bf16.gmra.mxu0 %v3192
        %v6241 = vpop.f32.mrf.mxu0
        %v6242 = vadd.f32 %v3138, %v6241
        %v6243 = vpop.f32.mrf.mxu0
        %v6244 = vadd.f32 %v3138, %v6243
        %6245 = vdwg.mxu0
        %6246 = vmatpush.bf16.msra.mxu0 %v4822
        %6247 = vmatpush.bf16.msra.mxu0 %v4818
        %6248 = vmatpush.bf16.msra.mxu0 %v4814
        %6249 = vmatpush.bf16.msra.mxu0 %v4810
        %6250 = vmatpush.bf16.msra.mxu0 %v4806
        %6251 = vmatpush.bf16.msra.mxu0 %v4802
        %6252 = vmatpush.bf16.msra.mxu0 %v4798
        %6253 = vmatpush.bf16.msra.mxu0 %v4794
        %6254 = vmatmul.bf16.gmra.mxu0 %v3193
        %v6255 = vpop.f32.mrf.mxu0
        %v6256 = vadd.f32 %v6242, %v6255
        %v6257 = vpop.f32.mrf.mxu0
        %v6258 = vadd.f32 %v6244, %v6257
        %6259 = vdwg.mxu0
        %6260 = vmatpush.bf16.msra.mxu0 %v4854
        %6261 = vmatpush.bf16.msra.mxu0 %v4850
        %6262 = vmatpush.bf16.msra.mxu0 %v4846
        %6263 = vmatpush.bf16.msra.mxu0 %v4842
        %6264 = vmatpush.bf16.msra.mxu0 %v4838
        %6265 = vmatpush.bf16.msra.mxu0 %v4834
        %6266 = vmatpush.bf16.msra.mxu0 %v4830
        %6267 = vmatpush.bf16.msra.mxu0 %v4826
        %6268 = vmatmul.bf16.gmra.mxu0 %v3194
        %v6269 = vpop.f32.mrf.mxu0
        %v6270 = vadd.f32 %v6256, %v6269
        %v6271 = vpop.f32.mrf.mxu0
        %v6272 = vadd.f32 %v6258, %v6271
        %6273 = vdwg.mxu0
        %6274 = vmatpush.bf16.msra.mxu0 %v4886
        %6275 = vmatpush.bf16.msra.mxu0 %v4882
        %6276 = vmatpush.bf16.msra.mxu0 %v4878
        %6277 = vmatpush.bf16.msra.mxu0 %v4874
        %6278 = vmatpush.bf16.msra.mxu0 %v4870
        %6279 = vmatpush.bf16.msra.mxu0 %v4866
        %6280 = vmatpush.bf16.msra.mxu0 %v4862
        %6281 = vmatpush.bf16.msra.mxu0 %v4858
        %6282 = vmatmul.bf16.gmra.mxu0 %v3195
        %v6283 = vpop.f32.mrf.mxu0
        %v6284 = vadd.f32 %v6270, %v6283
        %v6285 = vpop.f32.mrf.mxu0
        %v6286 = vadd.f32 %v6272, %v6285
        %6287 = vdwg.mxu0
        %6288 = vmatpush.bf16.msra.mxu0 %v4918
        %6289 = vmatpush.bf16.msra.mxu0 %v4914
        %6290 = vmatpush.bf16.msra.mxu0 %v4910
        %6291 = vmatpush.bf16.msra.mxu0 %v4906
        %6292 = vmatpush.bf16.msra.mxu0 %v4902
        %6293 = vmatpush.bf16.msra.mxu0 %v4898
        %6294 = vmatpush.bf16.msra.mxu0 %v4894
        %6295 = vmatpush.bf16.msra.mxu0 %v4890
        %6296 = vmatmul.bf16.gmra.mxu0 %v3196
        %v6297 = vpop.f32.mrf.mxu0
        %v6298 = vadd.f32 %v6284, %v6297
        %v6299 = vpop.f32.mrf.mxu0
        %v6300 = vadd.f32 %v6286, %v6299
        %6301 = vdwg.mxu0
        %6302 = vmatpush.bf16.msra.mxu0 %v4950
        %6303 = vmatpush.bf16.msra.mxu0 %v4946
        %6304 = vmatpush.bf16.msra.mxu0 %v4942
        %6305 = vmatpush.bf16.msra.mxu0 %v4938
        %6306 = vmatpush.bf16.msra.mxu0 %v4934
        %6307 = vmatpush.bf16.msra.mxu0 %v4930
        %6308 = vmatpush.bf16.msra.mxu0 %v4926
        %6309 = vmatpush.bf16.msra.mxu0 %v4922
        %6310 = vmatmul.bf16.gmra.mxu0 %v3197
        %v6311 = vpop.f32.mrf.mxu0
        %v6312 = vadd.f32 %v6298, %v6311
        %v6313 = vpop.f32.mrf.mxu0
        %v6314 = vadd.f32 %v6300, %v6313
        %6315 = vdwg.mxu0
        %6316 = vmatpush.bf16.msra.mxu0 %v4982
        %6317 = vmatpush.bf16.msra.mxu0 %v4978
        %6318 = vmatpush.bf16.msra.mxu0 %v4974
        %6319 = vmatpush.bf16.msra.mxu0 %v4970
        %6320 = vmatpush.bf16.msra.mxu0 %v4966
        %6321 = vmatpush.bf16.msra.mxu0 %v4962
        %6322 = vmatpush.bf16.msra.mxu0 %v4958
        %6323 = vmatpush.bf16.msra.mxu0 %v4954
        %6324 = vmatmul.bf16.gmra.mxu0 %v3198
        %v6325 = vpop.f32.mrf.mxu0
        %v6326 = vadd.f32 %v6312, %v6325
        %v6327 = vpop.f32.mrf.mxu0
        %v6328 = vadd.f32 %v6314, %v6327
        %6329 = vdwg.mxu0
        %6330 = vmatpush.bf16.msra.mxu0 %v5014
        %6331 = vmatpush.bf16.msra.mxu0 %v5010
        %6332 = vmatpush.bf16.msra.mxu0 %v5006
        %6333 = vmatpush.bf16.msra.mxu0 %v5002
        %6334 = vmatpush.bf16.msra.mxu0 %v4998
        %6335 = vmatpush.bf16.msra.mxu0 %v4994
        %6336 = vmatpush.bf16.msra.mxu0 %v4990
        %6337 = vmatpush.bf16.msra.mxu0 %v4986
        %6338 = vmatmul.bf16.gmra.mxu0 %v3199
        %v6339 = vpop.f32.mrf.mxu0
        %v6340 = vadd.f32 %v6326, %v6339
        %v6341 = vpop.f32.mrf.mxu0
        %v6342 = vadd.f32 %v6328, %v6341
        %6343 = vdwg.mxu0
        %6344 = vmatpush.bf16.msra.mxu0 %v5046
        %6345 = vmatpush.bf16.msra.mxu0 %v5042
        %6346 = vmatpush.bf16.msra.mxu0 %v5038
        %6347 = vmatpush.bf16.msra.mxu0 %v5034
        %6348 = vmatpush.bf16.msra.mxu0 %v5030
        %6349 = vmatpush.bf16.msra.mxu0 %v5026
        %6350 = vmatpush.bf16.msra.mxu0 %v5022
        %6351 = vmatpush.bf16.msra.mxu0 %v5018
        %6352 = vmatmul.bf16.gmra.mxu0 %v3200
        %v6353 = vpop.f32.mrf.mxu0
        %v6354 = vadd.f32 %v6340, %v6353
        %v6355 = vpop.f32.mrf.mxu0
        %v6356 = vadd.f32 %v6342, %v6355
        %6357 = vdwg.mxu0
        %6358 = vmatpush.bf16.msra.mxu0 %v5078
        %6359 = vmatpush.bf16.msra.mxu0 %v5074
        %6360 = vmatpush.bf16.msra.mxu0 %v5070
        %6361 = vmatpush.bf16.msra.mxu0 %v5066
        %6362 = vmatpush.bf16.msra.mxu0 %v5062
        %6363 = vmatpush.bf16.msra.mxu0 %v5058
        %6364 = vmatpush.bf16.msra.mxu0 %v5054
        %6365 = vmatpush.bf16.msra.mxu0 %v5050
        %6366 = vmatmul.bf16.gmra.mxu0 %v3201
        %v6367 = vpop.f32.mrf.mxu0
        %v6368 = vadd.f32 %v6354, %v6367
        %v6369 = vpop.f32.mrf.mxu0
        %v6370 = vadd.f32 %v6356, %v6369
        %6371 = vdwg.mxu0
        %6372 = vmatpush.bf16.msra.mxu0 %v5110
        %6373 = vmatpush.bf16.msra.mxu0 %v5106
        %6374 = vmatpush.bf16.msra.mxu0 %v5102
        %6375 = vmatpush.bf16.msra.mxu0 %v5098
        %6376 = vmatpush.bf16.msra.mxu0 %v5094
        %6377 = vmatpush.bf16.msra.mxu0 %v5090
        %6378 = vmatpush.bf16.msra.mxu0 %v5086
        %6379 = vmatpush.bf16.msra.mxu0 %v5082
        %6380 = vmatmul.bf16.gmra.mxu0 %v3202
        %v6381 = vpop.f32.mrf.mxu0
        %v6382 = vadd.f32 %v6368, %v6381
        %v6383 = vpop.f32.mrf.mxu0
        %v6384 = vadd.f32 %v6370, %v6383
        %6385 = vdwg.mxu0
        %6386 = vmatpush.bf16.msra.mxu0 %v5142
        %6387 = vmatpush.bf16.msra.mxu0 %v5138
        %6388 = vmatpush.bf16.msra.mxu0 %v5134
        %6389 = vmatpush.bf16.msra.mxu0 %v5130
        %6390 = vmatpush.bf16.msra.mxu0 %v5126
        %6391 = vmatpush.bf16.msra.mxu0 %v5122
        %6392 = vmatpush.bf16.msra.mxu0 %v5118
        %6393 = vmatpush.bf16.msra.mxu0 %v5114
        %6394 = vmatmul.bf16.gmra.mxu0 %v3203
        %v6395 = vpop.f32.mrf.mxu0
        %v6396 = vadd.f32 %v6382, %v6395
        %v6397 = vpop.f32.mrf.mxu0
        %v6398 = vadd.f32 %v6384, %v6397
        %6399 = vdwg.mxu0
        %6400 = vmatpush.bf16.msra.mxu0 %v5174
        %6401 = vmatpush.bf16.msra.mxu0 %v5170
        %6402 = vmatpush.bf16.msra.mxu0 %v5166
        %6403 = vmatpush.bf16.msra.mxu0 %v5162
        %6404 = vmatpush.bf16.msra.mxu0 %v5158
        %6405 = vmatpush.bf16.msra.mxu0 %v5154
        %6406 = vmatpush.bf16.msra.mxu0 %v5150
        %6407 = vmatpush.bf16.msra.mxu0 %v5146
        %6408 = vmatmul.bf16.gmra.mxu0 %v3204
        %v6409 = vpop.f32.mrf.mxu0
        %v6410 = vadd.f32 %v6396, %v6409
        %v6411 = vpop.f32.mrf.mxu0
        %v6412 = vadd.f32 %v6398, %v6411
        %6413 = vdwg.mxu0
        %6414 = vmatpush.bf16.msra.mxu0 %v5206
        %6415 = vmatpush.bf16.msra.mxu0 %v5202
        %6416 = vmatpush.bf16.msra.mxu0 %v5198
        %6417 = vmatpush.bf16.msra.mxu0 %v5194
        %6418 = vmatpush.bf16.msra.mxu0 %v5190
        %6419 = vmatpush.bf16.msra.mxu0 %v5186
        %6420 = vmatpush.bf16.msra.mxu0 %v5182
        %6421 = vmatpush.bf16.msra.mxu0 %v5178
        %6422 = vmatmul.bf16.gmra.mxu0 %v3205
        %v6423 = vpop.f32.mrf.mxu0
        %v6424 = vadd.f32 %v6410, %v6423
        %v6425 = vpop.f32.mrf.mxu0
        %v6426 = vadd.f32 %v6412, %v6425
        %6427 = vdwg.mxu0
        %6428 = vmatpush.bf16.msra.mxu0 %v5238
        %6429 = vmatpush.bf16.msra.mxu0 %v5234
        %6430 = vmatpush.bf16.msra.mxu0 %v5230
        %6431 = vmatpush.bf16.msra.mxu0 %v5226
        %6432 = vmatpush.bf16.msra.mxu0 %v5222
        %6433 = vmatpush.bf16.msra.mxu0 %v5218
        %6434 = vmatpush.bf16.msra.mxu0 %v5214
        %6435 = vmatpush.bf16.msra.mxu0 %v5210
        %6436 = vmatmul.bf16.gmra.mxu0 %v3206
        %v6437 = vpop.f32.mrf.mxu0
        %v6438 = vadd.f32 %v6424, %v6437
        %v6439 = vpop.f32.mrf.mxu0
        %v6440 = vadd.f32 %v6426, %v6439
        %6441 = vdwg.mxu0
        %6442 = vmatpush.bf16.msra.mxu0 %v5270
        %6443 = vmatpush.bf16.msra.mxu0 %v5266
        %6444 = vmatpush.bf16.msra.mxu0 %v5262
        %6445 = vmatpush.bf16.msra.mxu0 %v5258
        %6446 = vmatpush.bf16.msra.mxu0 %v5254
        %6447 = vmatpush.bf16.msra.mxu0 %v5250
        %6448 = vmatpush.bf16.msra.mxu0 %v5246
        %6449 = vmatpush.bf16.msra.mxu0 %v5242
        %6450 = vmatmul.bf16.gmra.mxu0 %v3207
        %v6451 = vpop.f32.mrf.mxu0
        %v6452 = vadd.f32 %v6438, %v6451
        %v6453 = vpop.f32.mrf.mxu0
        %v6454 = vadd.f32 %v6440, %v6453
        %6455 = vdwg.mxu0
        %6456 = vmatpush.bf16.msra.mxu0 %v4791
        %6457 = vmatpush.bf16.msra.mxu0 %v4787
        %6458 = vmatpush.bf16.msra.mxu0 %v4783
        %6459 = vmatpush.bf16.msra.mxu0 %v4779
        %6460 = vmatpush.bf16.msra.mxu0 %v4775
        %6461 = vmatpush.bf16.msra.mxu0 %v4771
        %6462 = vmatpush.bf16.msra.mxu0 %v4767
        %6463 = vmatpush.bf16.msra.mxu0 %v4763
        %6464 = vmatmul.bf16.gmra.mxu0 %v3192
        %v6465 = vpop.f32.mrf.mxu0
        %v6466 = vadd.f32 %v3139, %v6465
        %v6467 = vpop.f32.mrf.mxu0
        %v6468 = vadd.f32 %v3139, %v6467
        %6469 = vdwg.mxu0
        %6470 = vmatpush.bf16.msra.mxu0 %v4823
        %6471 = vmatpush.bf16.msra.mxu0 %v4819
        %6472 = vmatpush.bf16.msra.mxu0 %v4815
        %6473 = vmatpush.bf16.msra.mxu0 %v4811
        %6474 = vmatpush.bf16.msra.mxu0 %v4807
        %6475 = vmatpush.bf16.msra.mxu0 %v4803
        %6476 = vmatpush.bf16.msra.mxu0 %v4799
        %6477 = vmatpush.bf16.msra.mxu0 %v4795
        %6478 = vmatmul.bf16.gmra.mxu0 %v3193
        %v6479 = vpop.f32.mrf.mxu0
        %v6480 = vadd.f32 %v6466, %v6479
        %v6481 = vpop.f32.mrf.mxu0
        %v6482 = vadd.f32 %v6468, %v6481
        %6483 = vdwg.mxu0
        %6484 = vmatpush.bf16.msra.mxu0 %v4855
        %6485 = vmatpush.bf16.msra.mxu0 %v4851
        %6486 = vmatpush.bf16.msra.mxu0 %v4847
        %6487 = vmatpush.bf16.msra.mxu0 %v4843
        %6488 = vmatpush.bf16.msra.mxu0 %v4839
        %6489 = vmatpush.bf16.msra.mxu0 %v4835
        %6490 = vmatpush.bf16.msra.mxu0 %v4831
        %6491 = vmatpush.bf16.msra.mxu0 %v4827
        %6492 = vmatmul.bf16.gmra.mxu0 %v3194
        %v6493 = vpop.f32.mrf.mxu0
        %v6494 = vadd.f32 %v6480, %v6493
        %v6495 = vpop.f32.mrf.mxu0
        %v6496 = vadd.f32 %v6482, %v6495
        %6497 = vdwg.mxu0
        %6498 = vmatpush.bf16.msra.mxu0 %v4887
        %6499 = vmatpush.bf16.msra.mxu0 %v4883
        %6500 = vmatpush.bf16.msra.mxu0 %v4879
        %6501 = vmatpush.bf16.msra.mxu0 %v4875
        %6502 = vmatpush.bf16.msra.mxu0 %v4871
        %6503 = vmatpush.bf16.msra.mxu0 %v4867
        %6504 = vmatpush.bf16.msra.mxu0 %v4863
        %6505 = vmatpush.bf16.msra.mxu0 %v4859
        %6506 = vmatmul.bf16.gmra.mxu0 %v3195
        %v6507 = vpop.f32.mrf.mxu0
        %v6508 = vadd.f32 %v6494, %v6507
        %v6509 = vpop.f32.mrf.mxu0
        %v6510 = vadd.f32 %v6496, %v6509
        %6511 = vdwg.mxu0
        %6512 = vmatpush.bf16.msra.mxu0 %v4919
        %6513 = vmatpush.bf16.msra.mxu0 %v4915
        %6514 = vmatpush.bf16.msra.mxu0 %v4911
        %6515 = vmatpush.bf16.msra.mxu0 %v4907
        %6516 = vmatpush.bf16.msra.mxu0 %v4903
        %6517 = vmatpush.bf16.msra.mxu0 %v4899
        %6518 = vmatpush.bf16.msra.mxu0 %v4895
        %6519 = vmatpush.bf16.msra.mxu0 %v4891
        %6520 = vmatmul.bf16.gmra.mxu0 %v3196
        %v6521 = vpop.f32.mrf.mxu0
        %v6522 = vadd.f32 %v6508, %v6521
        %v6523 = vpop.f32.mrf.mxu0
        %v6524 = vadd.f32 %v6510, %v6523
        %6525 = vdwg.mxu0
        %6526 = vmatpush.bf16.msra.mxu0 %v4951
        %6527 = vmatpush.bf16.msra.mxu0 %v4947
        %6528 = vmatpush.bf16.msra.mxu0 %v4943
        %6529 = vmatpush.bf16.msra.mxu0 %v4939
        %6530 = vmatpush.bf16.msra.mxu0 %v4935
        %6531 = vmatpush.bf16.msra.mxu0 %v4931
        %6532 = vmatpush.bf16.msra.mxu0 %v4927
        %6533 = vmatpush.bf16.msra.mxu0 %v4923
        %6534 = vmatmul.bf16.gmra.mxu0 %v3197
        %v6535 = vpop.f32.mrf.mxu0
        %v6536 = vadd.f32 %v6522, %v6535
        %v6537 = vpop.f32.mrf.mxu0
        %v6538 = vadd.f32 %v6524, %v6537
        %6539 = vdwg.mxu0
        %6540 = vmatpush.bf16.msra.mxu0 %v4983
        %6541 = vmatpush.bf16.msra.mxu0 %v4979
        %6542 = vmatpush.bf16.msra.mxu0 %v4975
        %6543 = vmatpush.bf16.msra.mxu0 %v4971
        %6544 = vmatpush.bf16.msra.mxu0 %v4967
        %6545 = vmatpush.bf16.msra.mxu0 %v4963
        %6546 = vmatpush.bf16.msra.mxu0 %v4959
        %6547 = vmatpush.bf16.msra.mxu0 %v4955
        %6548 = vmatmul.bf16.gmra.mxu0 %v3198
        %v6549 = vpop.f32.mrf.mxu0
        %v6550 = vadd.f32 %v6536, %v6549
        %v6551 = vpop.f32.mrf.mxu0
        %v6552 = vadd.f32 %v6538, %v6551
        %6553 = vdwg.mxu0
        %6554 = vmatpush.bf16.msra.mxu0 %v5015
        %6555 = vmatpush.bf16.msra.mxu0 %v5011
        %6556 = vmatpush.bf16.msra.mxu0 %v5007
        %6557 = vmatpush.bf16.msra.mxu0 %v5003
        %6558 = vmatpush.bf16.msra.mxu0 %v4999
        %6559 = vmatpush.bf16.msra.mxu0 %v4995
        %6560 = vmatpush.bf16.msra.mxu0 %v4991
        %6561 = vmatpush.bf16.msra.mxu0 %v4987
        %6562 = vmatmul.bf16.gmra.mxu0 %v3199
        %v6563 = vpop.f32.mrf.mxu0
        %v6564 = vadd.f32 %v6550, %v6563
        %v6565 = vpop.f32.mrf.mxu0
        %v6566 = vadd.f32 %v6552, %v6565
        %6567 = vdwg.mxu0
        %6568 = vmatpush.bf16.msra.mxu0 %v5047
        %6569 = vmatpush.bf16.msra.mxu0 %v5043
        %6570 = vmatpush.bf16.msra.mxu0 %v5039
        %6571 = vmatpush.bf16.msra.mxu0 %v5035
        %6572 = vmatpush.bf16.msra.mxu0 %v5031
        %6573 = vmatpush.bf16.msra.mxu0 %v5027
        %6574 = vmatpush.bf16.msra.mxu0 %v5023
        %6575 = vmatpush.bf16.msra.mxu0 %v5019
        %6576 = vmatmul.bf16.gmra.mxu0 %v3200
        %v6577 = vpop.f32.mrf.mxu0
        %v6578 = vadd.f32 %v6564, %v6577
        %v6579 = vpop.f32.mrf.mxu0
        %v6580 = vadd.f32 %v6566, %v6579
        %6581 = vdwg.mxu0
        %6582 = vmatpush.bf16.msra.mxu0 %v5079
        %6583 = vmatpush.bf16.msra.mxu0 %v5075
        %6584 = vmatpush.bf16.msra.mxu0 %v5071
        %6585 = vmatpush.bf16.msra.mxu0 %v5067
        %6586 = vmatpush.bf16.msra.mxu0 %v5063
        %6587 = vmatpush.bf16.msra.mxu0 %v5059
        %6588 = vmatpush.bf16.msra.mxu0 %v5055
        %6589 = vmatpush.bf16.msra.mxu0 %v5051
        %6590 = vmatmul.bf16.gmra.mxu0 %v3201
        %v6591 = vpop.f32.mrf.mxu0
        %v6592 = vadd.f32 %v6578, %v6591
        %v6593 = vpop.f32.mrf.mxu0
        %v6594 = vadd.f32 %v6580, %v6593
        %6595 = vdwg.mxu0
        %6596 = vmatpush.bf16.msra.mxu0 %v5111
        %6597 = vmatpush.bf16.msra.mxu0 %v5107
        %6598 = vmatpush.bf16.msra.mxu0 %v5103
        %6599 = vmatpush.bf16.msra.mxu0 %v5099
        %6600 = vmatpush.bf16.msra.mxu0 %v5095
        %6601 = vmatpush.bf16.msra.mxu0 %v5091
        %6602 = vmatpush.bf16.msra.mxu0 %v5087
        %6603 = vmatpush.bf16.msra.mxu0 %v5083
        %6604 = vmatmul.bf16.gmra.mxu0 %v3202
        %v6605 = vpop.f32.mrf.mxu0
        %v6606 = vadd.f32 %v6592, %v6605
        %v6607 = vpop.f32.mrf.mxu0
        %v6608 = vadd.f32 %v6594, %v6607
        %6609 = vdwg.mxu0
        %6610 = vmatpush.bf16.msra.mxu0 %v5143
        %6611 = vmatpush.bf16.msra.mxu0 %v5139
        %6612 = vmatpush.bf16.msra.mxu0 %v5135
        %6613 = vmatpush.bf16.msra.mxu0 %v5131
        %6614 = vmatpush.bf16.msra.mxu0 %v5127
        %6615 = vmatpush.bf16.msra.mxu0 %v5123
        %6616 = vmatpush.bf16.msra.mxu0 %v5119
        %6617 = vmatpush.bf16.msra.mxu0 %v5115
        %6618 = vmatmul.bf16.gmra.mxu0 %v3203
        %v6619 = vpop.f32.mrf.mxu0
        %v6620 = vadd.f32 %v6606, %v6619
        %v6621 = vpop.f32.mrf.mxu0
        %v6622 = vadd.f32 %v6608, %v6621
        %6623 = vdwg.mxu0
        %6624 = vmatpush.bf16.msra.mxu0 %v5175
        %6625 = vmatpush.bf16.msra.mxu0 %v5171
        %6626 = vmatpush.bf16.msra.mxu0 %v5167
        %6627 = vmatpush.bf16.msra.mxu0 %v5163
        %6628 = vmatpush.bf16.msra.mxu0 %v5159
        %6629 = vmatpush.bf16.msra.mxu0 %v5155
        %6630 = vmatpush.bf16.msra.mxu0 %v5151
        %6631 = vmatpush.bf16.msra.mxu0 %v5147
        %6632 = vmatmul.bf16.gmra.mxu0 %v3204
        %v6633 = vpop.f32.mrf.mxu0
        %v6634 = vadd.f32 %v6620, %v6633
        %v6635 = vpop.f32.mrf.mxu0
        %v6636 = vadd.f32 %v6622, %v6635
        %6637 = vdwg.mxu0
        %6638 = vmatpush.bf16.msra.mxu0 %v5207
        %6639 = vmatpush.bf16.msra.mxu0 %v5203
        %6640 = vmatpush.bf16.msra.mxu0 %v5199
        %6641 = vmatpush.bf16.msra.mxu0 %v5195
        %6642 = vmatpush.bf16.msra.mxu0 %v5191
        %6643 = vmatpush.bf16.msra.mxu0 %v5187
        %6644 = vmatpush.bf16.msra.mxu0 %v5183
        %6645 = vmatpush.bf16.msra.mxu0 %v5179
        %6646 = vmatmul.bf16.gmra.mxu0 %v3205
        %v6647 = vpop.f32.mrf.mxu0
        %v6648 = vadd.f32 %v6634, %v6647
        %v6649 = vpop.f32.mrf.mxu0
        %v6650 = vadd.f32 %v6636, %v6649
        %6651 = vdwg.mxu0
        %6652 = vmatpush.bf16.msra.mxu0 %v5239
        %6653 = vmatpush.bf16.msra.mxu0 %v5235
        %6654 = vmatpush.bf16.msra.mxu0 %v5231
        %6655 = vmatpush.bf16.msra.mxu0 %v5227
        %6656 = vmatpush.bf16.msra.mxu0 %v5223
        %6657 = vmatpush.bf16.msra.mxu0 %v5219
        %6658 = vmatpush.bf16.msra.mxu0 %v5215
        %6659 = vmatpush.bf16.msra.mxu0 %v5211
        %6660 = vmatmul.bf16.gmra.mxu0 %v3206
        %v6661 = vpop.f32.mrf.mxu0
        %v6662 = vadd.f32 %v6648, %v6661
        %v6663 = vpop.f32.mrf.mxu0
        %v6664 = vadd.f32 %v6650, %v6663
        %6665 = vdwg.mxu0
        %6666 = vmatpush.bf16.msra.mxu0 %v5271
        %6667 = vmatpush.bf16.msra.mxu0 %v5267
        %6668 = vmatpush.bf16.msra.mxu0 %v5263
        %6669 = vmatpush.bf16.msra.mxu0 %v5259
        %6670 = vmatpush.bf16.msra.mxu0 %v5255
        %6671 = vmatpush.bf16.msra.mxu0 %v5251
        %6672 = vmatpush.bf16.msra.mxu0 %v5247
        %6673 = vmatpush.bf16.msra.mxu0 %v5243
        %6674 = vmatmul.bf16.gmra.mxu0 %v3207
        %v6675 = vpop.f32.mrf.mxu0
        %v6676 = vadd.f32 %v6662, %v6675
        %v6677 = vpop.f32.mrf.mxu0
        %v6678 = vadd.f32 %v6664, %v6677
        %6679 = vdwg.mxu0
        %v6680 = vmax.f32 %v6004, 0.0
        %v6681 = vmax.f32 %v6228, 0.0
        %v6682 = vmax.f32 %v6452, 0.0
        %v6683 = vmax.f32 %v6676, 0.0
        %v6684 = vmax.f32 %v6006, 0.0
        %v6685 = vmax.f32 %v6230, 0.0
        %v6686 = vmax.f32 %v6454, 0.0
        %v6687 = vmax.f32 %v6678, 0.0
        %6688 = vst [vmem:[%s435] sm:$0xff] %v6680
        %6689 = vst [vmem:[%s435 + $0x8] sm:$0xff] %v6681
        %6690 = vst [vmem:[%s435 + $0x10] sm:$0xff] %v6682
        %6691 = vst [vmem:[%s435 + $0x18] sm:$0xff] %v6683
        %6692 = vst [vmem:[%s435 + $0x20] sm:$0xff] %v6684
        %6693 = vst [vmem:[%s435 + $0x28] sm:$0xff] %v6685
        %6694 = vst [vmem:[%s435 + $0x30] sm:$0xff] %v6686
        %6695 = vst [vmem:[%s435 + $0x38] sm:$0xff] %v6687
        %s6696 = sand.u32 %s211, 1
        %s6697 = scalar_lea.sflag [#allocation5], %s6696
        %s6698 = sand.u32 %s211, 1
        %s6699 = smul.addr %s6698, 64
        %s6700 = scalar_lea.vmem [#allocation15], %s6699
        // Predicated region
        $region81: #{tpu_custom_call.1} parent=47 // pred_check
          %p6701 = pneg %p221
        $region82: #{tpu_custom_call.1} parent=47 // pred_check_branch
          %6703 = sbr.rel (%p6701) target = $region84
        $region83: #{tpu_custom_call.1} parent=47 // pred_region
          %s6704 = smul.u32 2, %s31
          %s6705 = smul.u32 4, %s32
          %6707 = vsyncadd %s6697, 0
          %s6708 = smul.addr %s6704, 8
          %s6709 = sadd.s32 %s6705, %s6708
          %s6710 = smul.addr %s6709, 8
          %s6711 = scalar_lea.hbm %s7, %s6710
          %s6712 = sshll.u32 %s6700, 4
          %s6713 = int_to_ptr.vmem [resolvable:$true] %s6712
          %s6714 = sshll.u32 %s6711, 4
          %s6715 = int_to_ptr.hbm [resolvable:$true] %s6714
          %6720 = dma.vmem_to_hbm [thread:$0]  %s6713, 1024, %s6715, %s6697, 512, 1024, 32
        $region84: #{tpu_custom_call.1} parent=47 // pred_fallthru
          _
      $region48: #{tpu_custom_call.1} parent=5 // pred_fallthru
        _
      %p6721 = scmp.le.s32.totalorder 2, %s22
      // Predicated region
      $region85: #{tpu_custom_call.1} parent=5 // pred_check
        %p6722 = pneg %p6721
      $region86: #{tpu_custom_call.1} parent=5 // pred_check_branch
        %6724 = sbr.rel (%p6722) target = $region88
      $region87: #{tpu_custom_call.1} parent=5 // pred_region
        %s6725 = ssub.s32 %s22, 2
        // Predicated region
        $region89: #{tpu_custom_call.1} parent=87 // pred_check
          %p6726 = pneg %p227
        $region90: #{tpu_custom_call.1} parent=87 // pred_check_branch
          %6728 = sbr.rel (%p6726) target = $region92
        $region91: #{tpu_custom_call.1} parent=87 // pred_region
          %s6729 = sand.u32 %s212, 1
          %s6730 = scalar_lea.sflag [#allocation5], %s6729
          %s6731 = sand.u32 %s212, 1
          %s6732 = smul.addr %s6731, 64
          %s6733 = scalar_lea.vmem [#allocation15], %s6732
          %6735 = dma.done %s6730, 1024
        $region92: #{tpu_custom_call.1} parent=87 // pred_fallthru
          _
      $region88: #{tpu_custom_call.1} parent=5 // pred_fallthru
        _
    $region6: #{tpu_custom_call.1} parent=1 // loop_footer
      %s26 = sadd.s32 1, %s22
    $region7: #{tpu_custom_call.1} parent=1 // loop_footer_branch
      %21 = sbr.rel target = $region3
    $region8: #{tpu_custom_call.1} parent=1 // loop_exit
      _
    %6736 = vsyncpa [#allocation4], 1
    %s6737 = scalar_lea.sflag [#allocation4], 1
    %6738 = vsyncpa %s6737, 1
    %6739 = vsyncpa [#allocation7], 1
    %6740 = vsyncpa [#allocation10], 1
    %6741 = vsyncpa [#allocation13], 1
    %s6742 = scalar_lea.sflag [#allocation13], 1
    %6743 = vsyncpa %s6742, 1
    %6744 = vsyncpa [#allocation5], 1
    %s6745 = scalar_lea.sflag [#allocation5], 1
    %6746 = vsyncpa %s6745, 1

</llo_original>
